<compile_context>
chip_gen: v5e
topology: v5e:2x2
jax: 0.10.0
libtpu: 0.0.40
codegen_flags: <defaults>
</compile_context>

<pallas_src>
from types import SimpleNamespace

import jax
import jax.numpy as jnp
from jax.experimental import pallas as pl
from jax.experimental.pallas import tpu as pltpu

# ----------------------------- model constants -----------------------------
D = 32            # hidden size
NUM_HEADS = 4
HEAD_DIM = D // NUM_HEADS
FFN = 64
PATCH = 8
C_IMG = 4
VOCAB = 100
MAX_LEN = 16
NEG_INF = -1e9
LN_EPS = 1e-6     # TODO(synk): real XVLM/BERT configs use 1e-5 / 1e-12


# --------------------------- BlockSpec helpers ------------------------------
def _fspec(shape):
    """Full (grid-constant) block: same block every grid step."""
    zeros = (0,) * len(shape)
    return pl.BlockSpec(shape, lambda i, _z=zeros: _z)


def _bspec(shape):
    """Per-grid-step block along the leading (batch) axis."""
    rest = (0,) * (len(shape) - 1)
    return pl.BlockSpec(shape, lambda i, _r=rest: (i,) + _r)


# ------------------------ in-kernel building blocks --------------------------
def _layernorm(x, ln_stack, idx):
    """LayerNorm over last dim; ln_stack rows are [g0, b0, g1, b1, ...]."""
    g = ln_stack[2 * idx:2 * idx + 1, :]
    b = ln_stack[2 * idx + 1:2 * idx + 2, :]
    mu = jnp.mean(x, axis=-1, keepdims=True)
    var = jnp.mean((x - mu) ** 2, axis=-1, keepdims=True)
    return (x - mu) * jax.lax.rsqrt(var + LN_EPS) * g + b


def _mha(xq, xkv, bias, wqkv, bqkv, wo, bo):
    """Multi-head attention on 2-D per-sequence tiles.

    xq: [Sq, D], xkv: [Sk, D], bias: [1, Sk] additive mask or None.
    Fused [D, 3D] QKV matmul; heads processed with static lane slices; the output
    projection is folded into the per-head loop (avoids in-kernel concatenation).
    """
    qkv_q = jnp.dot(xq, wqkv, preferred_element_type=jnp.float32) + bqkv
    if xq is xkv:
        qkv_k = qkv_q
    else:
        qkv_k = jnp.dot(xkv, wqkv, preferred_element_type=jnp.float32) + bqkv
    q = qkv_q[:, :D]
    k = qkv_k[:, D:2 * D]
    v = qkv_k[:, 2 * D:]
    scale = 1.0 / float(HEAD_DIM) ** 0.5
    out = jnp.zeros((xq.shape[0], D), jnp.float32) + bo
    for h in range(NUM_HEADS):
        lo, hi = h * HEAD_DIM, (h + 1) * HEAD_DIM
        qh, kh, vh = q[:, lo:hi], k[:, lo:hi], v[:, lo:hi]
        s = jax.lax.dot_general(qh, kh, (((1,), (1,)), ((), ())),
                                preferred_element_type=jnp.float32) * scale
        if bias is not None:
            s = s + bias
        s = s - jnp.max(s, axis=-1, keepdims=True)
        p = jnp.exp(s)
        p = p * pl.reciprocal(jnp.sum(p, axis=-1, keepdims=True), approx=True)
        oh = jnp.dot(p, vh, preferred_element_type=jnp.float32)
        out = out + jnp.dot(oh, wo[lo:hi, :], preferred_element_type=jnp.float32)
    return out


def _ffn(x, w1, b1, w2, b2):
    h = jnp.dot(x, w1, preferred_element_type=jnp.float32) + b1
    # TODO(synk): PyTorch nn.GELU default is exact (erf) GELU; tanh approx used here.
    h = jax.nn.gelu(h, approximate=True)
    return jnp.dot(h, w2, preferred_element_type=jnp.float32) + b2


# ----------------------------- fused Pallas kernels ---------------------------
def _vision_kernel(patch_ref, base_ref, pw_ref, wqkv_ref, bqkv_ref, wo_ref, bo_ref,
                   ln_ref, w1_ref, b1_ref, w2_ref, b2_ref, o_ref):
    # patch projection (cls/pos/bias pre-folded into `base`) + pre-norm ViT block
    patches = patch_ref[0].astype(jnp.float32)                     # [S, Cpp]
    x = jnp.dot(patches, pw_ref[...], preferred_element_type=jnp.float32) + base_ref[0]
    ln = ln_ref[...]
    h = _layernorm(x, ln, 0)
    x = x + _mha(h, h, None, wqkv_ref[...], bqkv_ref[...], wo_ref[...], bo_ref[...])
    h = _layernorm(x, ln, 1)
    x = x + _ffn(h, w1_ref[...], b1_ref[...], w2_ref[...], b2_ref[...])
    x = _layernorm(x, ln, 2)
    o_ref[0] = x.astype(o_ref.dtype)


def _text_kernel(x_ref, mask_ref, ln_ref, wqkv_ref, bqkv_ref, wo_ref, bo_ref,
                 w1_ref, b1_ref, w2_ref, b2_ref, o_ref):
    # embedding LayerNorm + post-norm BERT block; additive bias built from raw mask
    x = x_ref[0].astype(jnp.float32)                               # [L, D]
    bias = (1.0 - mask_ref[0]) * NEG_INF                           # [1, L]
    ln = ln_ref[...]
    x = _layernorm(x, ln, 0)
    a = _mha(x, x, bias, wqkv_ref[...], bqkv_ref[...], wo_ref[...], bo_ref[...])
    x = _layernorm(x + a, ln, 1)
    f = _ffn(x, w1_ref[...], b1_ref[...], w2_ref[...], b2_ref[...])
    x = _layernorm(x + f, ln, 2)
    o_ref[0] = x.astype(o_ref.dtype)


def _cross_itm_kernel(x_ref, mask_ref, img_ref, ln_ref,
                      s_wqkv, s_bqkv, s_wo, s_bo,
                      c_wqkv, c_bqkv, c_wo, c_bo,
                      w1_ref, b1_ref, w2_ref, b2_ref,
                      itm_w_ref, itm_b_ref, o_ref):
    # fusion block (self-attn + cross-attn + FFN) + ITM head + softmax, all fused
    x = x_ref[0].astype(jnp.float32)                               # [L, D]
    img = img_ref[0].astype(jnp.float32)                           # [Sv, D]
    bias = (1.0 - mask_ref[0]) * NEG_INF                           # [1, L]
    ln = ln_ref[...]
    a = _mha(x, x, bias, s_wqkv[...], s_bqkv[...], s_wo[...], s_bo[...])
    x = _layernorm(x + a, ln, 0)
    ca = _mha(x, img, None, c_wqkv[...], c_bqkv[...], c_wo[...], c_bo[...])   # image atts all-ones
    x = _layernorm(x + ca, ln, 1)
    f = _ffn(x, w1_ref[...], b1_ref[...], w2_ref[...], b2_ref[...])
    x = _layernorm(x + f, ln, 2)
    logits = jnp.dot(x, itm_w_ref[...], preferred_element_type=jnp.float32) + itm_b_ref[...]
    logits = logits[0:1, :]                                        # CLS token only
    logits = logits - jnp.max(logits, axis=-1, keepdims=True)
    e = jnp.exp(logits)
    probs = e / jnp.sum(e, axis=-1, keepdims=True)                 # exact normalization
    o_ref[0] = probs.astype(o_ref.dtype)


# ------------------------------- encoder wrappers ------------------------------
def vision_encoder(params, images):
    v = params["vit"]
    B, C, H, W = images.shape
    ph, pw = H // PATCH, W // PATCH
    Np = ph * pw
    S = Np + 1
    Cpp = C * PATCH * PATCH
    # NCHW -> [B, num_patches, C*P*P] (channel-major per patch == Conv2d(P, stride=P))
    patches = images.reshape(B, C, ph, PATCH, pw, PATCH)
    patches = patches.transpose(0, 2, 4, 1, 3, 5).reshape(B, Np, Cpp)
    # prepend an all-zero "patch" row for the CLS slot so cls+pos+bias fold into `base`
    patches = jnp.concatenate([jnp.zeros((B, 1, Cpp), jnp.float32), patches], axis=1)
    pos = params["vis_pos"][0]                                     # [S, D]
    base_cls = params["cls_token"].reshape(1, D) + pos[0:1]
    base_rest = pos[1:] + v["patch_b"]
    base = jnp.broadcast_to(jnp.concatenate([base_cls, base_rest], axis=0)[None], (B, S, D))
    out = pl.pallas_call(
        _vision_kernel,
        out_shape=jax.ShapeDtypeStruct((B, S, D), jnp.float32),
        grid=(B,),
        in_specs=[
            _bspec((1, S, Cpp)),
            _bspec((1, S, D)),
            _fspec((Cpp, D)),
            _fspec((D, 3 * D)), _fspec((1, 3 * D)),
            _fspec((D, D)), _fspec((1, D)),
            _fspec((6, D)),
            _fspec((D, FFN)), _fspec((1, FFN)),
            _fspec((FFN, D)), _fspec((1, D)),
        ],
        out_specs=_bspec((1, S, D)),
        compiler_params=pltpu.CompilerParams(dimension_semantics=("parallel",)),
    )(patches, base, v["patch_w"],
      v["attn"]["wqkv"], v["attn"]["bqkv"], v["attn"]["wo"], v["attn"]["bo"],
      v["ln"], v["ffn_w1"], v["ffn_b1"], v["ffn_w2"], v["ffn_b2"])
    return out


def text_encoder(params, ids, masks):
    t = params["text"]
    N, L = ids.shape
    # embedding gather + positional add stay in plain JAX
    x = params["word_emb"][ids] + params["text_pos"][:L][None, :, :]      # [N, L, D]
    mask3 = masks.astype(jnp.float32).reshape(N, 1, L)
    out = pl.pallas_call(
        _text_kernel,
        out_shape=jax.ShapeDtypeStruct((N, L, D), jnp.float32),
        grid=(N,),
        in_specs=[
            _bspec((1, L, D)),
            _bspec((1, 1, L)),
            _fspec((6, D)),
            _fspec((D, 3 * D)), _fspec((1, 3 * D)),
            _fspec((D, D)), _fspec((1, D)),
            _fspec((D, FFN)), _fspec((1, FFN)),
            _fspec((FFN, D)), _fspec((1, D)),
        ],
        out_specs=_bspec((1, L, D)),
        compiler_params=pltpu.CompilerParams(dimension_semantics=("parallel",)),
    )(x, mask3, t["ln"],
      t["attn"]["wqkv"], t["attn"]["bqkv"], t["attn"]["wo"], t["attn"]["bo"],
      t["ffn_w1"], t["ffn_b1"], t["ffn_w2"], t["ffn_b2"])
    return out


def cross_itm_encoder(params, text_embeds, masks, img2):
    c = params["cross"]
    N, L, _ = text_embeds.shape
    Sv = img2.shape[1]
    mask3 = masks.astype(jnp.float32).reshape(N, 1, L)
    probs = pl.pallas_call(
        _cross_itm_kernel,
        out_shape=jax.ShapeDtypeStruct((N, 1, 2), jnp.float32),
        grid=(N,),
        in_specs=[
            _bspec((1, L, D)),
            _bspec((1, 1, L)),
            _bspec((1, Sv, D)),
            _fspec((6, D)),
            _fspec((D, 3 * D)), _fspec((1, 3 * D)), _fspec((D, D)), _fspec((1, D)),  # self-attn
            _fspec((D, 3 * D)), _fspec((1, 3 * D)), _fspec((D, D)), _fspec((1, D)),  # cross-attn
            _fspec((D, FFN)), _fspec((1, FFN)), _fspec((FFN, D)), _fspec((1, D)),
            _fspec((D, 2)), _fspec((1, 2)),
        ],
        out_specs=_bspec((1, 1, 2)),
        compiler_params=pltpu.CompilerParams(dimension_semantics=("parallel",)),
    )(text_embeds, mask3, img2, c["ln"],
      c["self_attn"]["wqkv"], c["self_attn"]["bqkv"], c["self_attn"]["wo"], c["self_attn"]["bo"],
      c["cross_attn"]["wqkv"], c["cross_attn"]["bqkv"], c["cross_attn"]["wo"], c["cross_attn"]["bo"],
      c["ffn_w1"], c["ffn_b1"], c["ffn_w2"], c["ffn_b2"],
      params["itm_w"], params["itm_b"])
    return probs.reshape(N, 2)


# ------------------------------ XVLMForITM forward ------------------------------
@jax.jit
def _forward_impl(params, images, cap_ids, cap_mask, foil_ids, foil_mask):
    B = images.shape[0]
    image_embeds = vision_encoder(params, images)                       # [B, Sv, D]
    # batch captions + foils along batch (2B) so text/fusion kernels run once each
    ids = jnp.concatenate([cap_ids, foil_ids], axis=0)                  # [2B, L]
    masks = jnp.concatenate([cap_mask, foil_mask], axis=0).astype(jnp.float32)
    text_embeds = text_encoder(params, ids, masks)                      # [2B, L, D]
    img2 = jnp.concatenate([image_embeds, image_embeds], axis=0)        # [2B, Sv, D]
    probs = cross_itm_encoder(params, text_embeds, masks, img2)         # [2B, 2]
    return probs[:B], probs[B:]


def xvlm_for_itm_forward(params, images, captions, foils):
    cap_ids = jnp.squeeze(captions.input_ids, axis=0)     # torch.squeeze(.., dim=0)
    foil_ids = jnp.squeeze(foils.input_ids, axis=0)
    cap_probs, foil_probs = _forward_impl(params, images, cap_ids, captions.attention_mask,
                                          foil_ids, foils.attention_mask)
    return [cap_probs, foil_probs]


# ------------------------------ parameter init -------------------------------
def _init_dense(key, fan_in, fan_out):
    kw, kb = jax.random.split(key)
    w = jax.random.normal(kw, (fan_in, fan_out), jnp.float32) * (1.0 / float(fan_in) ** 0.5)
    b = jax.random.normal(kb, (1, fan_out), jnp.float32) * 0.01
    return w, b


def _init_attn(key):
    k1, k2 = jax.random.split(key)
    wqkv, bqkv = _init_dense(k1, D, 3 * D)
    wo, bo = _init_dense(k2, D, D)
    return {"wqkv": wqkv, "bqkv": bqkv, "wo": wo, "bo": bo}


def _init_ln_stack(n):
    rows = []
    for _ in range(n):
        rows.append(jnp.ones((1, D), jnp.float32))    # gamma
        rows.append(jnp.zeros((1, D), jnp.float32))   # beta
    return jnp.concatenate(rows, axis=0)              # [2n, D]


def init_params(key, num_patches):
    ks = iter(jax.random.split(key, 16))
    Cpp = C_IMG * PATCH * PATCH
    params = {}
    # vision
    pw, pb = _init_dense(next(ks), Cpp, D)
    vit = {"patch_w": pw, "patch_b": pb, "attn": _init_attn(next(ks)), "ln": _init_ln_stack(3)}
    vit["ffn_w1"], vit["ffn_b1"] = _init_dense(next(ks), D, FFN)
    vit["ffn_w2"], vit["ffn_b2"] = _init_dense(next(ks), FFN, D)
    params["vit"] = vit
    params["cls_token"] = jax.random.normal(next(ks), (1, 1, D), jnp.float32) * 0.02
    params["vis_pos"] = jax.random.normal(next(ks), (1, num_patches + 1, D), jnp.float32) * 0.02
    # text
    params["word_emb"] = jax.random.normal(next(ks), (VOCAB, D), jnp.float32) * 0.02
    params["text_pos"] = jax.random.normal(next(ks), (MAX_LEN, D), jnp.float32) * 0.02
    txt = {"attn": _init_attn(next(ks)), "ln": _init_ln_stack(3)}
    txt["ffn_w1"], txt["ffn_b1"] = _init_dense(next(ks), D, FFN)
    txt["ffn_w2"], txt["ffn_b2"] = _init_dense(next(ks), FFN, D)
    params["text"] = txt
    # cross / fusion
    crs = {"self_attn": _init_attn(next(ks)), "cross_attn": _init_attn(next(ks)),
           "ln": _init_ln_stack(3)}
    crs["ffn_w1"], crs["ffn_b1"] = _init_dense(next(ks), D, FFN)
    crs["ffn_w2"], crs["ffn_b2"] = _init_dense(next(ks), FFN, D)
    params["cross"] = crs
    # itm head
    params["itm_w"], params["itm_b"] = _init_dense(next(ks), D, 2)
    return params


# ----------------------------------- main ------------------------------------
if __name__ == "__main__":
    key = jax.random.PRNGKey(0)
    k_img, k_cap, k_foil, k_params = jax.random.split(key, 4)

    B, H, W, L = 2, 16, 16, 8
    num_patches = (H // PATCH) * (W // PATCH)

    images = jax.random.normal(k_img, (B, C_IMG, H, W), jnp.float32)   # NCHW

    cap_ids = jax.random.randint(k_cap, (1, B, L), 0, VOCAB, jnp.int32)   # leading dummy dim, squeezed in forward
    foil_ids = jax.random.randint(k_foil, (1, B, L), 0, VOCAB, jnp.int32)
    cap_mask = jnp.ones((B, L), jnp.int32)
    foil_mask = jnp.ones((B, L), jnp.int32).at[:, -1].set(0)            # exercise key-side masking

    captions = SimpleNamespace(input_ids=cap_ids, attention_mask=cap_mask)
    foils = SimpleNamespace(input_ids=foil_ids, attention_mask=foil_mask)

    params = init_params(k_params, num_patches)

    prob_scores = xvlm_for_itm_forward(params, images, captions, foils)
    prob_scores = [jax.block_until_ready(p) for p in prob_scores]

    assert prob_scores[0].shape == (B, 2) and prob_scores[1].shape == (B, 2)
    assert jnp.allclose(jnp.sum(prob_scores[0], axis=1), 1.0, atol=1e-5)
    assert jnp.allclose(jnp.sum(prob_scores[1], axis=1), 1.0, atol=1e-5)
    # TODO(synk): real XVLM uses many transformer layers / pretrained weights; this is a 1-layer synthetic stand-in.
    print("KERNEL_OK")
</pallas_src>

<mosaic_0001>
module attributes {stable_mosaic.version = 11 : i64} {
  func.func @_text_kernel(%arg0: i32, %arg1: memref<1x8x32xf32, #tpu.memory_space<vmem>>, %arg2: memref<1x1x8xf32, #tpu.memory_space<vmem>>, %arg3: memref<6x32xf32, #tpu.memory_space<vmem>>, %arg4: memref<32x96xf32, #tpu.memory_space<vmem>>, %arg5: memref<1x96xf32, #tpu.memory_space<vmem>>, %arg6: memref<32x32xf32, #tpu.memory_space<vmem>>, %arg7: memref<1x32xf32, #tpu.memory_space<vmem>>, %arg8: memref<32x64xf32, #tpu.memory_space<vmem>>, %arg9: memref<1x64xf32, #tpu.memory_space<vmem>>, %arg10: memref<64x32xf32, #tpu.memory_space<vmem>>, %arg11: memref<1x32xf32, #tpu.memory_space<vmem>>, %arg12: memref<1x8x32xf32, #tpu.memory_space<vmem>>) attributes {dimension_semantics = [#tpu.dimension_semantics<parallel>], iteration_bounds = array<i64: 4>, scalar_prefetch = 0 : i64, scratch_operands = 0 : i64, tpu.core_type = #tpu.core_type<tc>, window_params = [{transform_indices = @transform_0, window_bounds = array<i64: 1, 8, 32>}, {transform_indices = @transform_1, window_bounds = array<i64: 1, 1, 8>}, {pipeline_mode = #tpu.pipeline_mode<synchronous>, transform_indices = @transform_2, window_bounds = array<i64: 6, 32>}, {pipeline_mode = #tpu.pipeline_mode<synchronous>, transform_indices = @transform_3, window_bounds = array<i64: 32, 96>}, {pipeline_mode = #tpu.pipeline_mode<synchronous>, transform_indices = @transform_4, window_bounds = array<i64: 1, 96>}, {pipeline_mode = #tpu.pipeline_mode<synchronous>, transform_indices = @transform_5, window_bounds = array<i64: 32, 32>}, {pipeline_mode = #tpu.pipeline_mode<synchronous>, transform_indices = @transform_6, window_bounds = array<i64: 1, 32>}, {pipeline_mode = #tpu.pipeline_mode<synchronous>, transform_indices = @transform_7, window_bounds = array<i64: 32, 64>}, {pipeline_mode = #tpu.pipeline_mode<synchronous>, transform_indices = @transform_8, window_bounds = array<i64: 1, 64>}, {pipeline_mode = #tpu.pipeline_mode<synchronous>, transform_indices = @transform_9, window_bounds = array<i64: 64, 32>}, {pipeline_mode = #tpu.pipeline_mode<synchronous>, transform_indices = @transform_10, window_bounds = array<i64: 1, 32>}, {transform_indices = @transform_11, window_bounds = array<i64: 1, 8, 32>}]} {
    %c0 = arith.constant 0 : index
    %c0_0 = arith.constant 0 : index
    %c0_1 = arith.constant 0 : index
    %0 = vector.load %arg1[%c0, %c0_0, %c0_1] : memref<1x8x32xf32, #tpu.memory_space<vmem>>, vector<1x8x32xf32>
    %1 = vector.shape_cast %0 : vector<1x8x32xf32> to vector<8x32xf32>
    %c0_2 = arith.constant 0 : index
    %c0_3 = arith.constant 0 : index
    %c0_4 = arith.constant 0 : index
    %2 = vector.load %arg2[%c0_2, %c0_3, %c0_4] : memref<1x1x8xf32, #tpu.memory_space<vmem>>, vector<1x1x8xf32>
    %3 = vector.shape_cast %2 : vector<1x1x8xf32> to vector<1x8xf32>
    %cst = arith.constant 1.000000e+00 : f32
    %4 = vector.broadcast %cst : f32 to vector<1x8xf32>
    %5 = arith.subf %4, %3 : vector<1x8xf32>
    %cst_5 = arith.constant -1.000000e+09 : f32
    %6 = vector.broadcast %cst_5 : f32 to vector<1x8xf32>
    %7 = arith.mulf %5, %6 : vector<1x8xf32>
    %c0_6 = arith.constant 0 : index
    %c0_7 = arith.constant 0 : index
    %8 = vector.load %arg3[%c0_6, %c0_7] : memref<6x32xf32, #tpu.memory_space<vmem>>, vector<6x32xf32>
    %9 = vector.extract_strided_slice %8 {offsets = [0, 0], sizes = [1, 32], strides = [1, 1]} : vector<6x32xf32> to vector<1x32xf32>
    %10 = vector.extract_strided_slice %8 {offsets = [1, 0], sizes = [1, 32], strides = [1, 1]} : vector<6x32xf32> to vector<1x32xf32>
    %cst_8 = arith.constant dense<0.000000e+00> : vector<8xf32>
    %11 = vector.multi_reduction <add>, %1, %cst_8 [1] : vector<8x32xf32> to vector<8xf32>
    %12 = vector.shape_cast %11 : vector<8xf32> to vector<8x1xf32>
    %cst_9 = arith.constant 3.200000e+01 : f32
    %13 = vector.broadcast %cst_9 : f32 to vector<8x1xf32>
    %14 = arith.divf %12, %13 : vector<8x1xf32>
    %15 = vector.broadcast %14 : vector<8x1xf32> to vector<8x32xf32>
    %16 = arith.subf %1, %15 : vector<8x32xf32>
    %17 = arith.mulf %16, %16 : vector<8x32xf32>
    %cst_10 = arith.constant dense<0.000000e+00> : vector<8xf32>
    %18 = vector.multi_reduction <add>, %17, %cst_10 [1] : vector<8x32xf32> to vector<8xf32>
    %19 = vector.shape_cast %18 : vector<8xf32> to vector<8x1xf32>
    %cst_11 = arith.constant 3.200000e+01 : f32
    %20 = vector.broadcast %cst_11 : f32 to vector<8x1xf32>
    %21 = arith.divf %19, %20 : vector<8x1xf32>
    %22 = vector.broadcast %14 : vector<8x1xf32> to vector<8x32xf32>
    %23 = arith.subf %1, %22 : vector<8x32xf32>
    %cst_12 = arith.constant 9.99999997E-7 : f32
    %24 = vector.broadcast %cst_12 : f32 to vector<8x1xf32>
    %25 = arith.addf %21, %24 : vector<8x1xf32>
    %26 = math.rsqrt %25 : vector<8x1xf32>
    %27 = vector.broadcast %26 : vector<8x1xf32> to vector<8x32xf32>
    %28 = arith.mulf %23, %27 : vector<8x32xf32>
    %29 = vector.broadcast %9 : vector<1x32xf32> to vector<8x32xf32>
    %30 = arith.mulf %28, %29 : vector<8x32xf32>
    %31 = vector.broadcast %10 : vector<1x32xf32> to vector<8x32xf32>
    %32 = arith.addf %30, %31 : vector<8x32xf32>
    %c0_13 = arith.constant 0 : index
    %c0_14 = arith.constant 0 : index
    %33 = vector.load %arg4[%c0_13, %c0_14] : memref<32x96xf32, #tpu.memory_space<vmem>>, vector<32x96xf32>
    %c0_15 = arith.constant 0 : index
    %c0_16 = arith.constant 0 : index
    %34 = vector.load %arg5[%c0_15, %c0_16] : memref<1x96xf32, #tpu.memory_space<vmem>>, vector<1x96xf32>
    %c0_17 = arith.constant 0 : index
    %c0_18 = arith.constant 0 : index
    %35 = vector.load %arg6[%c0_17, %c0_18] : memref<32x32xf32, #tpu.memory_space<vmem>>, vector<32x32xf32>
    %c0_19 = arith.constant 0 : index
    %c0_20 = arith.constant 0 : index
    %36 = vector.load %arg7[%c0_19, %c0_20] : memref<1x32xf32, #tpu.memory_space<vmem>>, vector<1x32xf32>
    %cst_21 = arith.constant dense<0.000000e+00> : vector<8x96xf32>
    %37 = tpu.matmul %32, %33, %cst_21 {dimension_numbers = #tpu.dot_dimension_numbers<[1], [0], [0], [1], [0, 0, 1, 1], [], []>} : vector<8x32xf32>, vector<32x96xf32>, vector<8x96xf32> -> vector<8x96xf32>
    %38 = vector.broadcast %34 : vector<1x96xf32> to vector<8x96xf32>
    %39 = arith.addf %37, %38 : vector<8x96xf32>
    %40 = vector.extract_strided_slice %39 {offsets = [0, 0], sizes = [8, 32], strides = [1, 1]} : vector<8x96xf32> to vector<8x32xf32>
    %41 = vector.extract_strided_slice %39 {offsets = [0, 32], sizes = [8, 32], strides = [1, 1]} : vector<8x96xf32> to vector<8x32xf32>
    %42 = vector.extract_strided_slice %39 {offsets = [0, 64], sizes = [8, 32], strides = [1, 1]} : vector<8x96xf32> to vector<8x32xf32>
    %cst_22 = arith.constant 0.000000e+00 : f32
    %43 = vector.broadcast %cst_22 : f32 to vector<8x32xf32>
    %44 = vector.broadcast %36 : vector<1x32xf32> to vector<8x32xf32>
    %45 = arith.addf %43, %44 : vector<8x32xf32>
    %46 = vector.extract_strided_slice %40 {offsets = [0, 0], sizes = [8, 8], strides = [1, 1]} : vector<8x32xf32> to vector<8x8xf32>
    %47 = vector.extract_strided_slice %41 {offsets = [0, 0], sizes = [8, 8], strides = [1, 1]} : vector<8x32xf32> to vector<8x8xf32>
    %48 = vector.extract_strided_slice %42 {offsets = [0, 0], sizes = [8, 8], strides = [1, 1]} : vector<8x32xf32> to vector<8x8xf32>
    %cst_23 = arith.constant dense<0.000000e+00> : vector<8x8xf32>
    %49 = tpu.matmul %46, %47, %cst_23 {dimension_numbers = #tpu.dot_dimension_numbers<[1], [1], [0], [0], [0, 0, 1, 0], [], []>} : vector<8x8xf32>, vector<8x8xf32>, vector<8x8xf32> -> vector<8x8xf32>
    %cst_24 = arith.constant 0.353553385 : f32
    %50 = vector.broadcast %cst_24 : f32 to vector<8x8xf32>
    %51 = arith.mulf %49, %50 : vector<8x8xf32>
    %52 = vector.broadcast %7 : vector<1x8xf32> to vector<8x8xf32>
    %53 = arith.addf %51, %52 : vector<8x8xf32>
    %cst_25 = arith.constant dense<0xFF800000> : vector<8xf32>
    %54 = vector.multi_reduction <maximumf>, %53, %cst_25 [1] : vector<8x8xf32> to vector<8xf32>
    %55 = vector.shape_cast %54 : vector<8xf32> to vector<8x1xf32>
    %56 = vector.broadcast %55 : vector<8x1xf32> to vector<8x8xf32>
    %57 = arith.subf %53, %56 : vector<8x8xf32>
    %58 = math.exp %57 : vector<8x8xf32>
    %cst_26 = arith.constant dense<0.000000e+00> : vector<8xf32>
    %59 = vector.multi_reduction <add>, %58, %cst_26 [1] : vector<8x8xf32> to vector<8xf32>
    %60 = vector.shape_cast %59 : vector<8xf32> to vector<8x1xf32>
    %61 = tpu.reciprocal %60 {approx = true} : vector<8x1xf32> -> vector<8x1xf32>
    %62 = vector.broadcast %61 : vector<8x1xf32> to vector<8x8xf32>
    %63 = arith.mulf %58, %62 : vector<8x8xf32>
    %cst_27 = arith.constant dense<0.000000e+00> : vector<8x8xf32>
    %64 = tpu.matmul %63, %48, %cst_27 {dimension_numbers = #tpu.dot_dimension_numbers<[1], [0], [0], [1], [0, 0, 1, 1], [], []>} : vector<8x8xf32>, vector<8x8xf32>, vector<8x8xf32> -> vector<8x8xf32>
    %65 = vector.extract_strided_slice %35 {offsets = [0, 0], sizes = [8, 32], strides = [1, 1]} : vector<32x32xf32> to vector<8x32xf32>
    %cst_28 = arith.constant dense<0.000000e+00> : vector<8x32xf32>
    %66 = tpu.matmul %64, %65, %cst_28 {dimension_numbers = #tpu.dot_dimension_numbers<[1], [0], [0], [1], [0, 0, 1, 1], [], []>} : vector<8x8xf32>, vector<8x32xf32>, vector<8x32xf32> -> vector<8x32xf32>
    %67 = arith.addf %45, %66 : vector<8x32xf32>
    %68 = vector.extract_strided_slice %40 {offsets = [0, 8], sizes = [8, 8], strides = [1, 1]} : vector<8x32xf32> to vector<8x8xf32>
    %69 = vector.extract_strided_slice %41 {offsets = [0, 8], sizes = [8, 8], strides = [1, 1]} : vector<8x32xf32> to vector<8x8xf32>
    %70 = vector.extract_strided_slice %42 {offsets = [0, 8], sizes = [8, 8], strides = [1, 1]} : vector<8x32xf32> to vector<8x8xf32>
    %cst_29 = arith.constant dense<0.000000e+00> : vector<8x8xf32>
    %71 = tpu.matmul %68, %69, %cst_29 {dimension_numbers = #tpu.dot_dimension_numbers<[1], [1], [0], [0], [0, 0, 1, 0], [], []>} : vector<8x8xf32>, vector<8x8xf32>, vector<8x8xf32> -> vector<8x8xf32>
    %cst_30 = arith.constant 0.353553385 : f32
    %72 = vector.broadcast %cst_30 : f32 to vector<8x8xf32>
    %73 = arith.mulf %71, %72 : vector<8x8xf32>
    %74 = vector.broadcast %7 : vector<1x8xf32> to vector<8x8xf32>
    %75 = arith.addf %73, %74 : vector<8x8xf32>
    %cst_31 = arith.constant dense<0xFF800000> : vector<8xf32>
    %76 = vector.multi_reduction <maximumf>, %75, %cst_31 [1] : vector<8x8xf32> to vector<8xf32>
    %77 = vector.shape_cast %76 : vector<8xf32> to vector<8x1xf32>
    %78 = vector.broadcast %77 : vector<8x1xf32> to vector<8x8xf32>
    %79 = arith.subf %75, %78 : vector<8x8xf32>
    %80 = math.exp %79 : vector<8x8xf32>
    %cst_32 = arith.constant dense<0.000000e+00> : vector<8xf32>
    %81 = vector.multi_reduction <add>, %80, %cst_32 [1] : vector<8x8xf32> to vector<8xf32>
    %82 = vector.shape_cast %81 : vector<8xf32> to vector<8x1xf32>
    %83 = tpu.reciprocal %82 {approx = true} : vector<8x1xf32> -> vector<8x1xf32>
    %84 = vector.broadcast %83 : vector<8x1xf32> to vector<8x8xf32>
    %85 = arith.mulf %80, %84 : vector<8x8xf32>
    %cst_33 = arith.constant dense<0.000000e+00> : vector<8x8xf32>
    %86 = tpu.matmul %85, %70, %cst_33 {dimension_numbers = #tpu.dot_dimension_numbers<[1], [0], [0], [1], [0, 0, 1, 1], [], []>} : vector<8x8xf32>, vector<8x8xf32>, vector<8x8xf32> -> vector<8x8xf32>
    %87 = vector.extract_strided_slice %35 {offsets = [8, 0], sizes = [8, 32], strides = [1, 1]} : vector<32x32xf32> to vector<8x32xf32>
    %cst_34 = arith.constant dense<0.000000e+00> : vector<8x32xf32>
    %88 = tpu.matmul %86, %87, %cst_34 {dimension_numbers = #tpu.dot_dimension_numbers<[1], [0], [0], [1], [0, 0, 1, 1], [], []>} : vector<8x8xf32>, vector<8x32xf32>, vector<8x32xf32> -> vector<8x32xf32>
    %89 = arith.addf %67, %88 : vector<8x32xf32>
    %90 = vector.extract_strided_slice %40 {offsets = [0, 16], sizes = [8, 8], strides = [1, 1]} : vector<8x32xf32> to vector<8x8xf32>
    %91 = vector.extract_strided_slice %41 {offsets = [0, 16], sizes = [8, 8], strides = [1, 1]} : vector<8x32xf32> to vector<8x8xf32>
    %92 = vector.extract_strided_slice %42 {offsets = [0, 16], sizes = [8, 8], strides = [1, 1]} : vector<8x32xf32> to vector<8x8xf32>
    %cst_35 = arith.constant dense<0.000000e+00> : vector<8x8xf32>
    %93 = tpu.matmul %90, %91, %cst_35 {dimension_numbers = #tpu.dot_dimension_numbers<[1], [1], [0], [0], [0, 0, 1, 0], [], []>} : vector<8x8xf32>, vector<8x8xf32>, vector<8x8xf32> -> vector<8x8xf32>
    %cst_36 = arith.constant 0.353553385 : f32
    %94 = vector.broadcast %cst_36 : f32 to vector<8x8xf32>
    %95 = arith.mulf %93, %94 : vector<8x8xf32>
    %96 = vector.broadcast %7 : vector<1x8xf32> to vector<8x8xf32>
    %97 = arith.addf %95, %96 : vector<8x8xf32>
    %cst_37 = arith.constant dense<0xFF800000> : vector<8xf32>
    %98 = vector.multi_reduction <maximumf>, %97, %cst_37 [1] : vector<8x8xf32> to vector<8xf32>
    %99 = vector.shape_cast %98 : vector<8xf32> to vector<8x1xf32>
    %100 = vector.broadcast %99 : vector<8x1xf32> to vector<8x8xf32>
    %101 = arith.subf %97, %100 : vector<8x8xf32>
    %102 = math.exp %101 : vector<8x8xf32>
    %cst_38 = arith.constant dense<0.000000e+00> : vector<8xf32>
    %103 = vector.multi_reduction <add>, %102, %cst_38 [1] : vector<8x8xf32> to vector<8xf32>
    %104 = vector.shape_cast %103 : vector<8xf32> to vector<8x1xf32>
    %105 = tpu.reciprocal %104 {approx = true} : vector<8x1xf32> -> vector<8x1xf32>
    %106 = vector.broadcast %105 : vector<8x1xf32> to vector<8x8xf32>
    %107 = arith.mulf %102, %106 : vector<8x8xf32>
    %cst_39 = arith.constant dense<0.000000e+00> : vector<8x8xf32>
    %108 = tpu.matmul %107, %92, %cst_39 {dimension_numbers = #tpu.dot_dimension_numbers<[1], [0], [0], [1], [0, 0, 1, 1], [], []>} : vector<8x8xf32>, vector<8x8xf32>, vector<8x8xf32> -> vector<8x8xf32>
    %109 = vector.extract_strided_slice %35 {offsets = [16, 0], sizes = [8, 32], strides = [1, 1]} : vector<32x32xf32> to vector<8x32xf32>
    %cst_40 = arith.constant dense<0.000000e+00> : vector<8x32xf32>
    %110 = tpu.matmul %108, %109, %cst_40 {dimension_numbers = #tpu.dot_dimension_numbers<[1], [0], [0], [1], [0, 0, 1, 1], [], []>} : vector<8x8xf32>, vector<8x32xf32>, vector<8x32xf32> -> vector<8x32xf32>
    %111 = arith.addf %89, %110 : vector<8x32xf32>
    %112 = vector.extract_strided_slice %40 {offsets = [0, 24], sizes = [8, 8], strides = [1, 1]} : vector<8x32xf32> to vector<8x8xf32>
    %113 = vector.extract_strided_slice %41 {offsets = [0, 24], sizes = [8, 8], strides = [1, 1]} : vector<8x32xf32> to vector<8x8xf32>
    %114 = vector.extract_strided_slice %42 {offsets = [0, 24], sizes = [8, 8], strides = [1, 1]} : vector<8x32xf32> to vector<8x8xf32>
    %cst_41 = arith.constant dense<0.000000e+00> : vector<8x8xf32>
    %115 = tpu.matmul %112, %113, %cst_41 {dimension_numbers = #tpu.dot_dimension_numbers<[1], [1], [0], [0], [0, 0, 1, 0], [], []>} : vector<8x8xf32>, vector<8x8xf32>, vector<8x8xf32> -> vector<8x8xf32>
    %cst_42 = arith.constant 0.353553385 : f32
    %116 = vector.broadcast %cst_42 : f32 to vector<8x8xf32>
    %117 = arith.mulf %115, %116 : vector<8x8xf32>
    %118 = vector.broadcast %7 : vector<1x8xf32> to vector<8x8xf32>
    %119 = arith.addf %117, %118 : vector<8x8xf32>
    %cst_43 = arith.constant dense<0xFF800000> : vector<8xf32>
    %120 = vector.multi_reduction <maximumf>, %119, %cst_43 [1] : vector<8x8xf32> to vector<8xf32>
    %121 = vector.shape_cast %120 : vector<8xf32> to vector<8x1xf32>
    %122 = vector.broadcast %121 : vector<8x1xf32> to vector<8x8xf32>
    %123 = arith.subf %119, %122 : vector<8x8xf32>
    %124 = math.exp %123 : vector<8x8xf32>
    %cst_44 = arith.constant dense<0.000000e+00> : vector<8xf32>
    %125 = vector.multi_reduction <add>, %124, %cst_44 [1] : vector<8x8xf32> to vector<8xf32>
    %126 = vector.shape_cast %125 : vector<8xf32> to vector<8x1xf32>
    %127 = tpu.reciprocal %126 {approx = true} : vector<8x1xf32> -> vector<8x1xf32>
    %128 = vector.broadcast %127 : vector<8x1xf32> to vector<8x8xf32>
    %129 = arith.mulf %124, %128 : vector<8x8xf32>
    %cst_45 = arith.constant dense<0.000000e+00> : vector<8x8xf32>
    %130 = tpu.matmul %129, %114, %cst_45 {dimension_numbers = #tpu.dot_dimension_numbers<[1], [0], [0], [1], [0, 0, 1, 1], [], []>} : vector<8x8xf32>, vector<8x8xf32>, vector<8x8xf32> -> vector<8x8xf32>
    %131 = vector.extract_strided_slice %35 {offsets = [24, 0], sizes = [8, 32], strides = [1, 1]} : vector<32x32xf32> to vector<8x32xf32>
    %cst_46 = arith.constant dense<0.000000e+00> : vector<8x32xf32>
    %132 = tpu.matmul %130, %131, %cst_46 {dimension_numbers = #tpu.dot_dimension_numbers<[1], [0], [0], [1], [0, 0, 1, 1], [], []>} : vector<8x8xf32>, vector<8x32xf32>, vector<8x32xf32> -> vector<8x32xf32>
    %133 = arith.addf %111, %132 : vector<8x32xf32>
    %134 = arith.addf %32, %133 : vector<8x32xf32>
    %135 = vector.extract_strided_slice %8 {offsets = [2, 0], sizes = [1, 32], strides = [1, 1]} : vector<6x32xf32> to vector<1x32xf32>
    %136 = vector.extract_strided_slice %8 {offsets = [3, 0], sizes = [1, 32], strides = [1, 1]} : vector<6x32xf32> to vector<1x32xf32>
    %cst_47 = arith.constant dense<0.000000e+00> : vector<8xf32>
    %137 = vector.multi_reduction <add>, %134, %cst_47 [1] : vector<8x32xf32> to vector<8xf32>
    %138 = vector.shape_cast %137 : vector<8xf32> to vector<8x1xf32>
    %cst_48 = arith.constant 3.200000e+01 : f32
    %139 = vector.broadcast %cst_48 : f32 to vector<8x1xf32>
    %140 = arith.divf %138, %139 : vector<8x1xf32>
    %141 = vector.broadcast %140 : vector<8x1xf32> to vector<8x32xf32>
    %142 = arith.subf %134, %141 : vector<8x32xf32>
    %143 = arith.mulf %142, %142 : vector<8x32xf32>
    %cst_49 = arith.constant dense<0.000000e+00> : vector<8xf32>
    %144 = vector.multi_reduction <add>, %143, %cst_49 [1] : vector<8x32xf32> to vector<8xf32>
    %145 = vector.shape_cast %144 : vector<8xf32> to vector<8x1xf32>
    %cst_50 = arith.constant 3.200000e+01 : f32
    %146 = vector.broadcast %cst_50 : f32 to vector<8x1xf32>
    %147 = arith.divf %145, %146 : vector<8x1xf32>
    %148 = vector.broadcast %140 : vector<8x1xf32> to vector<8x32xf32>
    %149 = arith.subf %134, %148 : vector<8x32xf32>
    %cst_51 = arith.constant 9.99999997E-7 : f32
    %150 = vector.broadcast %cst_51 : f32 to vector<8x1xf32>
    %151 = arith.addf %147, %150 : vector<8x1xf32>
    %152 = math.rsqrt %151 : vector<8x1xf32>
    %153 = vector.broadcast %152 : vector<8x1xf32> to vector<8x32xf32>
    %154 = arith.mulf %149, %153 : vector<8x32xf32>
    %155 = vector.broadcast %135 : vector<1x32xf32> to vector<8x32xf32>
    %156 = arith.mulf %154, %155 : vector<8x32xf32>
    %157 = vector.broadcast %136 : vector<1x32xf32> to vector<8x32xf32>
    %158 = arith.addf %156, %157 : vector<8x32xf32>
    %c0_52 = arith.constant 0 : index
    %c0_53 = arith.constant 0 : index
    %159 = vector.load %arg8[%c0_52, %c0_53] : memref<32x64xf32, #tpu.memory_space<vmem>>, vector<32x64xf32>
    %c0_54 = arith.constant 0 : index
    %c0_55 = arith.constant 0 : index
    %160 = vector.load %arg9[%c0_54, %c0_55] : memref<1x64xf32, #tpu.memory_space<vmem>>, vector<1x64xf32>
    %c0_56 = arith.constant 0 : index
    %c0_57 = arith.constant 0 : index
    %161 = vector.load %arg10[%c0_56, %c0_57] : memref<64x32xf32, #tpu.memory_space<vmem>>, vector<64x32xf32>
    %c0_58 = arith.constant 0 : index
    %c0_59 = arith.constant 0 : index
    %162 = vector.load %arg11[%c0_58, %c0_59] : memref<1x32xf32, #tpu.memory_space<vmem>>, vector<1x32xf32>
    %cst_60 = arith.constant dense<0.000000e+00> : vector<8x64xf32>
    %163 = tpu.matmul %158, %159, %cst_60 {dimension_numbers = #tpu.dot_dimension_numbers<[1], [0], [0], [1], [0, 0, 1, 1], [], []>} : vector<8x32xf32>, vector<32x64xf32>, vector<8x64xf32> -> vector<8x64xf32>
    %164 = vector.broadcast %160 : vector<1x64xf32> to vector<8x64xf32>
    %165 = arith.addf %163, %164 : vector<8x64xf32>
    %166 = arith.mulf %165, %165 : vector<8x64xf32>
    %167 = arith.mulf %165, %166 : vector<8x64xf32>
    %cst_61 = arith.constant 4.471500e-02 : f32
    %168 = vector.broadcast %cst_61 : f32 to vector<8x64xf32>
    %169 = arith.mulf %168, %167 : vector<8x64xf32>
    %170 = arith.addf %165, %169 : vector<8x64xf32>
    %cst_62 = arith.constant 0.797884583 : f32
    %171 = vector.broadcast %cst_62 : f32 to vector<8x64xf32>
    %172 = arith.mulf %171, %170 : vector<8x64xf32>
    %173 = math.tanh %172 : vector<8x64xf32>
    %cst_63 = arith.constant 1.000000e+00 : f32
    %174 = vector.broadcast %cst_63 : f32 to vector<8x64xf32>
    %175 = arith.addf %174, %173 : vector<8x64xf32>
    %cst_64 = arith.constant 5.000000e-01 : f32
    %176 = vector.broadcast %cst_64 : f32 to vector<8x64xf32>
    %177 = arith.mulf %176, %175 : vector<8x64xf32>
    %178 = arith.mulf %165, %177 : vector<8x64xf32>
    %cst_65 = arith.constant dense<0.000000e+00> : vector<8x32xf32>
    %179 = tpu.matmul %178, %161, %cst_65 {dimension_numbers = #tpu.dot_dimension_numbers<[1], [0], [0], [1], [0, 0, 1, 1], [], []>} : vector<8x64xf32>, vector<64x32xf32>, vector<8x32xf32> -> vector<8x32xf32>
    %180 = vector.broadcast %162 : vector<1x32xf32> to vector<8x32xf32>
    %181 = arith.addf %179, %180 : vector<8x32xf32>
    %182 = arith.addf %158, %181 : vector<8x32xf32>
    %183 = vector.extract_strided_slice %8 {offsets = [4, 0], sizes = [1, 32], strides = [1, 1]} : vector<6x32xf32> to vector<1x32xf32>
    %184 = vector.extract_strided_slice %8 {offsets = [5, 0], sizes = [1, 32], strides = [1, 1]} : vector<6x32xf32> to vector<1x32xf32>
    %cst_66 = arith.constant dense<0.000000e+00> : vector<8xf32>
    %185 = vector.multi_reduction <add>, %182, %cst_66 [1] : vector<8x32xf32> to vector<8xf32>
    %186 = vector.shape_cast %185 : vector<8xf32> to vector<8x1xf32>
    %cst_67 = arith.constant 3.200000e+01 : f32
    %187 = vector.broadcast %cst_67 : f32 to vector<8x1xf32>
    %188 = arith.divf %186, %187 : vector<8x1xf32>
    %189 = vector.broadcast %188 : vector<8x1xf32> to vector<8x32xf32>
    %190 = arith.subf %182, %189 : vector<8x32xf32>
    %191 = arith.mulf %190, %190 : vector<8x32xf32>
    %cst_68 = arith.constant dense<0.000000e+00> : vector<8xf32>
    %192 = vector.multi_reduction <add>, %191, %cst_68 [1] : vector<8x32xf32> to vector<8xf32>
    %193 = vector.shape_cast %192 : vector<8xf32> to vector<8x1xf32>
    %cst_69 = arith.constant 3.200000e+01 : f32
    %194 = vector.broadcast %cst_69 : f32 to vector<8x1xf32>
    %195 = arith.divf %193, %194 : vector<8x1xf32>
    %196 = vector.broadcast %188 : vector<8x1xf32> to vector<8x32xf32>
    %197 = arith.subf %182, %196 : vector<8x32xf32>
    %cst_70 = arith.constant 9.99999997E-7 : f32
    %198 = vector.broadcast %cst_70 : f32 to vector<8x1xf32>
    %199 = arith.addf %195, %198 : vector<8x1xf32>
    %200 = math.rsqrt %199 : vector<8x1xf32>
    %201 = vector.broadcast %200 : vector<8x1xf32> to vector<8x32xf32>
    %202 = arith.mulf %197, %201 : vector<8x32xf32>
    %203 = vector.broadcast %183 : vector<1x32xf32> to vector<8x32xf32>
    %204 = arith.mulf %202, %203 : vector<8x32xf32>
    %205 = vector.broadcast %184 : vector<1x32xf32> to vector<8x32xf32>
    %206 = arith.addf %204, %205 : vector<8x32xf32>
    %c0_71 = arith.constant 0 : index
    %c0_72 = arith.constant 0 : index
    %c0_73 = arith.constant 0 : index
    %207 = vector.load %arg12[%c0_71, %c0_72, %c0_73] : memref<1x8x32xf32, #tpu.memory_space<vmem>>, vector<1x8x32xf32>
    %208 = vector.shape_cast %207 : vector<1x8x32xf32> to vector<8x32xf32>
    %209 = vector.shape_cast %206 : vector<8x32xf32> to vector<1x8x32xf32>
    tpu.vector_store %arg12[%c0_71, %c0_72, %c0_73], %209 {strides = array<i32>} : memref<1x8x32xf32, #tpu.memory_space<vmem>>, vector<1x8x32xf32>,
    return
  }
  func.func @transform_0(%arg0: i32) -> (i32, i32, i32) {
    %c0_i32 = arith.constant 0 : i32
    %c0_i32_0 = arith.constant 0 : i32
    %c0_i32_1 = arith.constant 0 : i32
    return %arg0, %c0_i32, %c0_i32_0 : i32, i32, i32
  }
  func.func @transform_1(%arg0: i32) -> (i32, i32, i32) {
    %c0_i32 = arith.constant 0 : i32
    %c0_i32_0 = arith.constant 0 : i32
    %c0_i32_1 = arith.constant 0 : i32
    return %arg0, %c0_i32, %c0_i32_0 : i32, i32, i32
  }
  func.func @transform_2(%arg0: i32) -> (i32, i32) {
    %c0_i32 = arith.constant 0 : i32
    %c0_i32_0 = arith.constant 0 : i32
    %c0_i32_1 = arith.constant 0 : i32
    return %c0_i32, %c0_i32_0 : i32, i32
  }
  func.func @transform_3(%arg0: i32) -> (i32, i32) {
    %c0_i32 = arith.constant 0 : i32
    %c0_i32_0 = arith.constant 0 : i32
    %c0_i32_1 = arith.constant 0 : i32
    return %c0_i32, %c0_i32_0 : i32, i32
  }
  func.func @transform_4(%arg0: i32) -> (i32, i32) {
    %c0_i32 = arith.constant 0 : i32
    %c0_i32_0 = arith.constant 0 : i32
    %c0_i32_1 = arith.constant 0 : i32
    return %c0_i32, %c0_i32_0 : i32, i32
  }
  func.func @transform_5(%arg0: i32) -> (i32, i32) {
    %c0_i32 = arith.constant 0 : i32
    %c0_i32_0 = arith.constant 0 : i32
    %c0_i32_1 = arith.constant 0 : i32
    return %c0_i32, %c0_i32_0 : i32, i32
  }
  func.func @transform_6(%arg0: i32) -> (i32, i32) {
    %c0_i32 = arith.constant 0 : i32
    %c0_i32_0 = arith.constant 0 : i32
    %c0_i32_1 = arith.constant 0 : i32
    return %c0_i32, %c0_i32_0 : i32, i32
  }
  func.func @transform_7(%arg0: i32) -> (i32, i32) {
    %c0_i32 = arith.constant 0 : i32
    %c0_i32_0 = arith.constant 0 : i32
    %c0_i32_1 = arith.constant 0 : i32
    return %c0_i32, %c0_i32_0 : i32, i32
  }
  func.func @transform_8(%arg0: i32) -> (i32, i32) {
    %c0_i32 = arith.constant 0 : i32
    %c0_i32_0 = arith.constant 0 : i32
    %c0_i32_1 = arith.constant 0 : i32
    return %c0_i32, %c0_i32_0 : i32, i32
  }
  func.func @transform_9(%arg0: i32) -> (i32, i32) {
    %c0_i32 = arith.constant 0 : i32
    %c0_i32_0 = arith.constant 0 : i32
    %c0_i32_1 = arith.constant 0 : i32
    return %c0_i32, %c0_i32_0 : i32, i32
  }
  func.func @transform_10(%arg0: i32) -> (i32, i32) {
    %c0_i32 = arith.constant 0 : i32
    %c0_i32_0 = arith.constant 0 : i32
    %c0_i32_1 = arith.constant 0 : i32
    return %c0_i32, %c0_i32_0 : i32, i32
  }
  func.func @transform_11(%arg0: i32) -> (i32, i32, i32) {
    %c0_i32 = arith.constant 0 : i32
    %c0_i32_0 = arith.constant 0 : i32
    %c0_i32_1 = arith.constant 0 : i32
    return %arg0, %c0_i32, %c0_i32_0 : i32, i32, i32
  }
}

module attributes {stable_mosaic.version = 11 : i64} {
  func.func @_vision_kernel(%arg0: i32, %arg1: memref<1x5x256xf32, #tpu.memory_space<vmem>>, %arg2: memref<1x5x32xf32, #tpu.memory_space<vmem>>, %arg3: memref<256x32xf32, #tpu.memory_space<vmem>>, %arg4: memref<32x96xf32, #tpu.memory_space<vmem>>, %arg5: memref<1x96xf32, #tpu.memory_space<vmem>>, %arg6: memref<32x32xf32, #tpu.memory_space<vmem>>, %arg7: memref<1x32xf32, #tpu.memory_space<vmem>>, %arg8: memref<6x32xf32, #tpu.memory_space<vmem>>, %arg9: memref<32x64xf32, #tpu.memory_space<vmem>>, %arg10: memref<1x64xf32, #tpu.memory_space<vmem>>, %arg11: memref<64x32xf32, #tpu.memory_space<vmem>>, %arg12: memref<1x32xf32, #tpu.memory_space<vmem>>, %arg13: memref<1x5x32xf32, #tpu.memory_space<vmem>>) attributes {dimension_semantics = [#tpu.dimension_semantics<parallel>], iteration_bounds = array<i64: 2>, scalar_prefetch = 0 : i64, scratch_operands = 0 : i64, tpu.core_type = #tpu.core_type<tc>, window_params = [{transform_indices = @transform_0, window_bounds = array<i64: 1, 5, 256>}, {transform_indices = @transform_1, window_bounds = array<i64: 1, 5, 32>}, {pipeline_mode = #tpu.pipeline_mode<synchronous>, transform_indices = @transform_2, window_bounds = array<i64: 256, 32>}, {pipeline_mode = #tpu.pipeline_mode<synchronous>, transform_indices = @transform_3, window_bounds = array<i64: 32, 96>}, {pipeline_mode = #tpu.pipeline_mode<synchronous>, transform_indices = @transform_4, window_bounds = array<i64: 1, 96>}, {pipeline_mode = #tpu.pipeline_mode<synchronous>, transform_indices = @transform_5, window_bounds = array<i64: 32, 32>}, {pipeline_mode = #tpu.pipeline_mode<synchronous>, transform_indices = @transform_6, window_bounds = array<i64: 1, 32>}, {pipeline_mode = #tpu.pipeline_mode<synchronous>, transform_indices = @transform_7, window_bounds = array<i64: 6, 32>}, {pipeline_mode = #tpu.pipeline_mode<synchronous>, transform_indices = @transform_8, window_bounds = array<i64: 32, 64>}, {pipeline_mode = #tpu.pipeline_mode<synchronous>, transform_indices = @transform_9, window_bounds = array<i64: 1, 64>}, {pipeline_mode = #tpu.pipeline_mode<synchronous>, transform_indices = @transform_10, window_bounds = array<i64: 64, 32>}, {pipeline_mode = #tpu.pipeline_mode<synchronous>, transform_indices = @transform_11, window_bounds = array<i64: 1, 32>}, {transform_indices = @transform_12, window_bounds = array<i64: 1, 5, 32>}]} {
    %c0 = arith.constant 0 : index
    %c0_0 = arith.constant 0 : index
    %c0_1 = arith.constant 0 : index
    %0 = vector.load %arg1[%c0, %c0_0, %c0_1] : memref<1x5x256xf32, #tpu.memory_space<vmem>>, vector<1x5x256xf32>
    %1 = vector.shape_cast %0 : vector<1x5x256xf32> to vector<5x256xf32>
    %c0_2 = arith.constant 0 : index
    %c0_3 = arith.constant 0 : index
    %2 = vector.load %arg3[%c0_2, %c0_3] : memref<256x32xf32, #tpu.memory_space<vmem>>, vector<256x32xf32>
    %cst = arith.constant dense<0.000000e+00> : vector<5x32xf32>
    %3 = tpu.matmul %1, %2, %cst {dimension_numbers = #tpu.dot_dimension_numbers<[1], [0], [0], [1], [0, 0, 1, 1], [], []>} : vector<5x256xf32>, vector<256x32xf32>, vector<5x32xf32> -> vector<5x32xf32>
    %c0_4 = arith.constant 0 : index
    %c0_5 = arith.constant 0 : index
    %c0_6 = arith.constant 0 : index
    %4 = vector.load %arg2[%c0_4, %c0_5, %c0_6] : memref<1x5x32xf32, #tpu.memory_space<vmem>>, vector<1x5x32xf32>
    %5 = vector.shape_cast %4 : vector<1x5x32xf32> to vector<5x32xf32>
    %6 = arith.addf %3, %5 : vector<5x32xf32>
    %c0_7 = arith.constant 0 : index
    %c0_8 = arith.constant 0 : index
    %7 = vector.load %arg8[%c0_7, %c0_8] : memref<6x32xf32, #tpu.memory_space<vmem>>, vector<6x32xf32>
    %8 = vector.extract_strided_slice %7 {offsets = [0, 0], sizes = [1, 32], strides = [1, 1]} : vector<6x32xf32> to vector<1x32xf32>
    %9 = vector.extract_strided_slice %7 {offsets = [1, 0], sizes = [1, 32], strides = [1, 1]} : vector<6x32xf32> to vector<1x32xf32>
    %cst_9 = arith.constant dense<0.000000e+00> : vector<5xf32>
    %10 = vector.multi_reduction <add>, %6, %cst_9 [1] : vector<5x32xf32> to vector<5xf32>
    %11 = vector.shape_cast %10 : vector<5xf32> to vector<5x1xf32>
    %cst_10 = arith.constant 3.200000e+01 : f32
    %12 = vector.broadcast %cst_10 : f32 to vector<5x1xf32>
    %13 = arith.divf %11, %12 : vector<5x1xf32>
    %14 = vector.broadcast %13 : vector<5x1xf32> to vector<5x32xf32>
    %15 = arith.subf %6, %14 : vector<5x32xf32>
    %16 = arith.mulf %15, %15 : vector<5x32xf32>
    %cst_11 = arith.constant dense<0.000000e+00> : vector<5xf32>
    %17 = vector.multi_reduction <add>, %16, %cst_11 [1] : vector<5x32xf32> to vector<5xf32>
    %18 = vector.shape_cast %17 : vector<5xf32> to vector<5x1xf32>
    %cst_12 = arith.constant 3.200000e+01 : f32
    %19 = vector.broadcast %cst_12 : f32 to vector<5x1xf32>
    %20 = arith.divf %18, %19 : vector<5x1xf32>
    %21 = vector.broadcast %13 : vector<5x1xf32> to vector<5x32xf32>
    %22 = arith.subf %6, %21 : vector<5x32xf32>
    %cst_13 = arith.constant 9.99999997E-7 : f32
    %23 = vector.broadcast %cst_13 : f32 to vector<5x1xf32>
    %24 = arith.addf %20, %23 : vector<5x1xf32>
    %25 = math.rsqrt %24 : vector<5x1xf32>
    %26 = vector.broadcast %25 : vector<5x1xf32> to vector<5x32xf32>
    %27 = arith.mulf %22, %26 : vector<5x32xf32>
    %28 = vector.broadcast %8 : vector<1x32xf32> to vector<5x32xf32>
    %29 = arith.mulf %27, %28 : vector<5x32xf32>
    %30 = vector.broadcast %9 : vector<1x32xf32> to vector<5x32xf32>
    %31 = arith.addf %29, %30 : vector<5x32xf32>
    %c0_14 = arith.constant 0 : index
    %c0_15 = arith.constant 0 : index
    %32 = vector.load %arg4[%c0_14, %c0_15] : memref<32x96xf32, #tpu.memory_space<vmem>>, vector<32x96xf32>
    %c0_16 = arith.constant 0 : index
    %c0_17 = arith.constant 0 : index
    %33 = vector.load %arg5[%c0_16, %c0_17] : memref<1x96xf32, #tpu.memory_space<vmem>>, vector<1x96xf32>
    %c0_18 = arith.constant 0 : index
    %c0_19 = arith.constant 0 : index
    %34 = vector.load %arg6[%c0_18, %c0_19] : memref<32x32xf32, #tpu.memory_space<vmem>>, vector<32x32xf32>
    %c0_20 = arith.constant 0 : index
    %c0_21 = arith.constant 0 : index
    %35 = vector.load %arg7[%c0_20, %c0_21] : memref<1x32xf32, #tpu.memory_space<vmem>>, vector<1x32xf32>
    %cst_22 = arith.constant dense<0.000000e+00> : vector<5x96xf32>
    %36 = tpu.matmul %31, %32, %cst_22 {dimension_numbers = #tpu.dot_dimension_numbers<[1], [0], [0], [1], [0, 0, 1, 1], [], []>} : vector<5x32xf32>, vector<32x96xf32>, vector<5x96xf32> -> vector<5x96xf32>
    %37 = vector.broadcast %33 : vector<1x96xf32> to vector<5x96xf32>
    %38 = arith.addf %36, %37 : vector<5x96xf32>
    %39 = vector.extract_strided_slice %38 {offsets = [0, 0], sizes = [5, 32], strides = [1, 1]} : vector<5x96xf32> to vector<5x32xf32>
    %40 = vector.extract_strided_slice %38 {offsets = [0, 32], sizes = [5, 32], strides = [1, 1]} : vector<5x96xf32> to vector<5x32xf32>
    %41 = vector.extract_strided_slice %38 {offsets = [0, 64], sizes = [5, 32], strides = [1, 1]} : vector<5x96xf32> to vector<5x32xf32>
    %cst_23 = arith.constant 0.000000e+00 : f32
    %42 = vector.broadcast %cst_23 : f32 to vector<5x32xf32>
    %43 = vector.broadcast %35 : vector<1x32xf32> to vector<5x32xf32>
    %44 = arith.addf %42, %43 : vector<5x32xf32>
    %45 = vector.extract_strided_slice %39 {offsets = [0, 0], sizes = [5, 8], strides = [1, 1]} : vector<5x32xf32> to vector<5x8xf32>
    %46 = vector.extract_strided_slice %40 {offsets = [0, 0], sizes = [5, 8], strides = [1, 1]} : vector<5x32xf32> to vector<5x8xf32>
    %47 = vector.extract_strided_slice %41 {offsets = [0, 0], sizes = [5, 8], strides = [1, 1]} : vector<5x32xf32> to vector<5x8xf32>
    %cst_24 = arith.constant dense<0.000000e+00> : vector<5x5xf32>
    %48 = tpu.matmul %45, %46, %cst_24 {dimension_numbers = #tpu.dot_dimension_numbers<[1], [1], [0], [0], [0, 0, 1, 0], [], []>} : vector<5x8xf32>, vector<5x8xf32>, vector<5x5xf32> -> vector<5x5xf32>
    %cst_25 = arith.constant 0.353553385 : f32
    %49 = vector.broadcast %cst_25 : f32 to vector<5x5xf32>
    %50 = arith.mulf %48, %49 : vector<5x5xf32>
    %cst_26 = arith.constant dense<0xFF800000> : vector<5xf32>
    %51 = vector.multi_reduction <maximumf>, %50, %cst_26 [1] : vector<5x5xf32> to vector<5xf32>
    %52 = vector.shape_cast %51 : vector<5xf32> to vector<5x1xf32>
    %53 = vector.broadcast %52 : vector<5x1xf32> to vector<5x5xf32>
    %54 = arith.subf %50, %53 : vector<5x5xf32>
    %55 = math.exp %54 : vector<5x5xf32>
    %cst_27 = arith.constant dense<0.000000e+00> : vector<5xf32>
    %56 = vector.multi_reduction <add>, %55, %cst_27 [1] : vector<5x5xf32> to vector<5xf32>
    %57 = vector.shape_cast %56 : vector<5xf32> to vector<5x1xf32>
    %58 = tpu.reciprocal %57 {approx = true} : vector<5x1xf32> -> vector<5x1xf32>
    %59 = vector.broadcast %58 : vector<5x1xf32> to vector<5x5xf32>
    %60 = arith.mulf %55, %59 : vector<5x5xf32>
    %cst_28 = arith.constant dense<0.000000e+00> : vector<5x8xf32>
    %61 = tpu.matmul %60, %47, %cst_28 {dimension_numbers = #tpu.dot_dimension_numbers<[1], [0], [0], [1], [0, 0, 1, 1], [], []>} : vector<5x5xf32>, vector<5x8xf32>, vector<5x8xf32> -> vector<5x8xf32>
    %62 = vector.extract_strided_slice %34 {offsets = [0, 0], sizes = [8, 32], strides = [1, 1]} : vector<32x32xf32> to vector<8x32xf32>
    %cst_29 = arith.constant dense<0.000000e+00> : vector<5x32xf32>
    %63 = tpu.matmul %61, %62, %cst_29 {dimension_numbers = #tpu.dot_dimension_numbers<[1], [0], [0], [1], [0, 0, 1, 1], [], []>} : vector<5x8xf32>, vector<8x32xf32>, vector<5x32xf32> -> vector<5x32xf32>
    %64 = arith.addf %44, %63 : vector<5x32xf32>
    %65 = vector.extract_strided_slice %39 {offsets = [0, 8], sizes = [5, 8], strides = [1, 1]} : vector<5x32xf32> to vector<5x8xf32>
    %66 = vector.extract_strided_slice %40 {offsets = [0, 8], sizes = [5, 8], strides = [1, 1]} : vector<5x32xf32> to vector<5x8xf32>
    %67 = vector.extract_strided_slice %41 {offsets = [0, 8], sizes = [5, 8], strides = [1, 1]} : vector<5x32xf32> to vector<5x8xf32>
    %cst_30 = arith.constant dense<0.000000e+00> : vector<5x5xf32>
    %68 = tpu.matmul %65, %66, %cst_30 {dimension_numbers = #tpu.dot_dimension_numbers<[1], [1], [0], [0], [0, 0, 1, 0], [], []>} : vector<5x8xf32>, vector<5x8xf32>, vector<5x5xf32> -> vector<5x5xf32>
    %cst_31 = arith.constant 0.353553385 : f32
    %69 = vector.broadcast %cst_31 : f32 to vector<5x5xf32>
    %70 = arith.mulf %68, %69 : vector<5x5xf32>
    %cst_32 = arith.constant dense<0xFF800000> : vector<5xf32>
    %71 = vector.multi_reduction <maximumf>, %70, %cst_32 [1] : vector<5x5xf32> to vector<5xf32>
    %72 = vector.shape_cast %71 : vector<5xf32> to vector<5x1xf32>
    %73 = vector.broadcast %72 : vector<5x1xf32> to vector<5x5xf32>
    %74 = arith.subf %70, %73 : vector<5x5xf32>
    %75 = math.exp %74 : vector<5x5xf32>
    %cst_33 = arith.constant dense<0.000000e+00> : vector<5xf32>
    %76 = vector.multi_reduction <add>, %75, %cst_33 [1] : vector<5x5xf32> to vector<5xf32>
    %77 = vector.shape_cast %76 : vector<5xf32> to vector<5x1xf32>
    %78 = tpu.reciprocal %77 {approx = true} : vector<5x1xf32> -> vector<5x1xf32>
    %79 = vector.broadcast %78 : vector<5x1xf32> to vector<5x5xf32>
    %80 = arith.mulf %75, %79 : vector<5x5xf32>
    %cst_34 = arith.constant dense<0.000000e+00> : vector<5x8xf32>
    %81 = tpu.matmul %80, %67, %cst_34 {dimension_numbers = #tpu.dot_dimension_numbers<[1], [0], [0], [1], [0, 0, 1, 1], [], []>} : vector<5x5xf32>, vector<5x8xf32>, vector<5x8xf32> -> vector<5x8xf32>
    %82 = vector.extract_strided_slice %34 {offsets = [8, 0], sizes = [8, 32], strides = [1, 1]} : vector<32x32xf32> to vector<8x32xf32>
    %cst_35 = arith.constant dense<0.000000e+00> : vector<5x32xf32>
    %83 = tpu.matmul %81, %82, %cst_35 {dimension_numbers = #tpu.dot_dimension_numbers<[1], [0], [0], [1], [0, 0, 1, 1], [], []>} : vector<5x8xf32>, vector<8x32xf32>, vector<5x32xf32> -> vector<5x32xf32>
    %84 = arith.addf %64, %83 : vector<5x32xf32>
    %85 = vector.extract_strided_slice %39 {offsets = [0, 16], sizes = [5, 8], strides = [1, 1]} : vector<5x32xf32> to vector<5x8xf32>
    %86 = vector.extract_strided_slice %40 {offsets = [0, 16], sizes = [5, 8], strides = [1, 1]} : vector<5x32xf32> to vector<5x8xf32>
    %87 = vector.extract_strided_slice %41 {offsets = [0, 16], sizes = [5, 8], strides = [1, 1]} : vector<5x32xf32> to vector<5x8xf32>
    %cst_36 = arith.constant dense<0.000000e+00> : vector<5x5xf32>
    %88 = tpu.matmul %85, %86, %cst_36 {dimension_numbers = #tpu.dot_dimension_numbers<[1], [1], [0], [0], [0, 0, 1, 0], [], []>} : vector<5x8xf32>, vector<5x8xf32>, vector<5x5xf32> -> vector<5x5xf32>
    %cst_37 = arith.constant 0.353553385 : f32
    %89 = vector.broadcast %cst_37 : f32 to vector<5x5xf32>
    %90 = arith.mulf %88, %89 : vector<5x5xf32>
    %cst_38 = arith.constant dense<0xFF800000> : vector<5xf32>
    %91 = vector.multi_reduction <maximumf>, %90, %cst_38 [1] : vector<5x5xf32> to vector<5xf32>
    %92 = vector.shape_cast %91 : vector<5xf32> to vector<5x1xf32>
    %93 = vector.broadcast %92 : vector<5x1xf32> to vector<5x5xf32>
    %94 = arith.subf %90, %93 : vector<5x5xf32>
    %95 = math.exp %94 : vector<5x5xf32>
    %cst_39 = arith.constant dense<0.000000e+00> : vector<5xf32>
    %96 = vector.multi_reduction <add>, %95, %cst_39 [1] : vector<5x5xf32> to vector<5xf32>
    %97 = vector.shape_cast %96 : vector<5xf32> to vector<5x1xf32>
    %98 = tpu.reciprocal %97 {approx = true} : vector<5x1xf32> -> vector<5x1xf32>
    %99 = vector.broadcast %98 : vector<5x1xf32> to vector<5x5xf32>
    %100 = arith.mulf %95, %99 : vector<5x5xf32>
    %cst_40 = arith.constant dense<0.000000e+00> : vector<5x8xf32>
    %101 = tpu.matmul %100, %87, %cst_40 {dimension_numbers = #tpu.dot_dimension_numbers<[1], [0], [0], [1], [0, 0, 1, 1], [], []>} : vector<5x5xf32>, vector<5x8xf32>, vector<5x8xf32> -> vector<5x8xf32>
    %102 = vector.extract_strided_slice %34 {offsets = [16, 0], sizes = [8, 32], strides = [1, 1]} : vector<32x32xf32> to vector<8x32xf32>
    %cst_41 = arith.constant dense<0.000000e+00> : vector<5x32xf32>
    %103 = tpu.matmul %101, %102, %cst_41 {dimension_numbers = #tpu.dot_dimension_numbers<[1], [0], [0], [1], [0, 0, 1, 1], [], []>} : vector<5x8xf32>, vector<8x32xf32>, vector<5x32xf32> -> vector<5x32xf32>
    %104 = arith.addf %84, %103 : vector<5x32xf32>
    %105 = vector.extract_strided_slice %39 {offsets = [0, 24], sizes = [5, 8], strides = [1, 1]} : vector<5x32xf32> to vector<5x8xf32>
    %106 = vector.extract_strided_slice %40 {offsets = [0, 24], sizes = [5, 8], strides = [1, 1]} : vector<5x32xf32> to vector<5x8xf32>
    %107 = vector.extract_strided_slice %41 {offsets = [0, 24], sizes = [5, 8], strides = [1, 1]} : vector<5x32xf32> to vector<5x8xf32>
    %cst_42 = arith.constant dense<0.000000e+00> : vector<5x5xf32>
    %108 = tpu.matmul %105, %106, %cst_42 {dimension_numbers = #tpu.dot_dimension_numbers<[1], [1], [0], [0], [0, 0, 1, 0], [], []>} : vector<5x8xf32>, vector<5x8xf32>, vector<5x5xf32> -> vector<5x5xf32>
    %cst_43 = arith.constant 0.353553385 : f32
    %109 = vector.broadcast %cst_43 : f32 to vector<5x5xf32>
    %110 = arith.mulf %108, %109 : vector<5x5xf32>
    %cst_44 = arith.constant dense<0xFF800000> : vector<5xf32>
    %111 = vector.multi_reduction <maximumf>, %110, %cst_44 [1] : vector<5x5xf32> to vector<5xf32>
    %112 = vector.shape_cast %111 : vector<5xf32> to vector<5x1xf32>
    %113 = vector.broadcast %112 : vector<5x1xf32> to vector<5x5xf32>
    %114 = arith.subf %110, %113 : vector<5x5xf32>
    %115 = math.exp %114 : vector<5x5xf32>
    %cst_45 = arith.constant dense<0.000000e+00> : vector<5xf32>
    %116 = vector.multi_reduction <add>, %115, %cst_45 [1] : vector<5x5xf32> to vector<5xf32>
    %117 = vector.shape_cast %116 : vector<5xf32> to vector<5x1xf32>
    %118 = tpu.reciprocal %117 {approx = true} : vector<5x1xf32> -> vector<5x1xf32>
    %119 = vector.broadcast %118 : vector<5x1xf32> to vector<5x5xf32>
    %120 = arith.mulf %115, %119 : vector<5x5xf32>
    %cst_46 = arith.constant dense<0.000000e+00> : vector<5x8xf32>
    %121 = tpu.matmul %120, %107, %cst_46 {dimension_numbers = #tpu.dot_dimension_numbers<[1], [0], [0], [1], [0, 0, 1, 1], [], []>} : vector<5x5xf32>, vector<5x8xf32>, vector<5x8xf32> -> vector<5x8xf32>
    %122 = vector.extract_strided_slice %34 {offsets = [24, 0], sizes = [8, 32], strides = [1, 1]} : vector<32x32xf32> to vector<8x32xf32>
    %cst_47 = arith.constant dense<0.000000e+00> : vector<5x32xf32>
    %123 = tpu.matmul %121, %122, %cst_47 {dimension_numbers = #tpu.dot_dimension_numbers<[1], [0], [0], [1], [0, 0, 1, 1], [], []>} : vector<5x8xf32>, vector<8x32xf32>, vector<5x32xf32> -> vector<5x32xf32>
    %124 = arith.addf %104, %123 : vector<5x32xf32>
    %125 = arith.addf %6, %124 : vector<5x32xf32>
    %126 = vector.extract_strided_slice %7 {offsets = [2, 0], sizes = [1, 32], strides = [1, 1]} : vector<6x32xf32> to vector<1x32xf32>
    %127 = vector.extract_strided_slice %7 {offsets = [3, 0], sizes = [1, 32], strides = [1, 1]} : vector<6x32xf32> to vector<1x32xf32>
    %cst_48 = arith.constant dense<0.000000e+00> : vector<5xf32>
    %128 = vector.multi_reduction <add>, %125, %cst_48 [1] : vector<5x32xf32> to vector<5xf32>
    %129 = vector.shape_cast %128 : vector<5xf32> to vector<5x1xf32>
    %cst_49 = arith.constant 3.200000e+01 : f32
    %130 = vector.broadcast %cst_49 : f32 to vector<5x1xf32>
    %131 = arith.divf %129, %130 : vector<5x1xf32>
    %132 = vector.broadcast %131 : vector<5x1xf32> to vector<5x32xf32>
    %133 = arith.subf %125, %132 : vector<5x32xf32>
    %134 = arith.mulf %133, %133 : vector<5x32xf32>
    %cst_50 = arith.constant dense<0.000000e+00> : vector<5xf32>
    %135 = vector.multi_reduction <add>, %134, %cst_50 [1] : vector<5x32xf32> to vector<5xf32>
    %136 = vector.shape_cast %135 : vector<5xf32> to vector<5x1xf32>
    %cst_51 = arith.constant 3.200000e+01 : f32
    %137 = vector.broadcast %cst_51 : f32 to vector<5x1xf32>
    %138 = arith.divf %136, %137 : vector<5x1xf32>
    %139 = vector.broadcast %131 : vector<5x1xf32> to vector<5x32xf32>
    %140 = arith.subf %125, %139 : vector<5x32xf32>
    %cst_52 = arith.constant 9.99999997E-7 : f32
    %141 = vector.broadcast %cst_52 : f32 to vector<5x1xf32>
    %142 = arith.addf %138, %141 : vector<5x1xf32>
    %143 = math.rsqrt %142 : vector<5x1xf32>
    %144 = vector.broadcast %143 : vector<5x1xf32> to vector<5x32xf32>
    %145 = arith.mulf %140, %144 : vector<5x32xf32>
    %146 = vector.broadcast %126 : vector<1x32xf32> to vector<5x32xf32>
    %147 = arith.mulf %145, %146 : vector<5x32xf32>
    %148 = vector.broadcast %127 : vector<1x32xf32> to vector<5x32xf32>
    %149 = arith.addf %147, %148 : vector<5x32xf32>
    %c0_53 = arith.constant 0 : index
    %c0_54 = arith.constant 0 : index
    %150 = vector.load %arg9[%c0_53, %c0_54] : memref<32x64xf32, #tpu.memory_space<vmem>>, vector<32x64xf32>
    %c0_55 = arith.constant 0 : index
    %c0_56 = arith.constant 0 : index
    %151 = vector.load %arg10[%c0_55, %c0_56] : memref<1x64xf32, #tpu.memory_space<vmem>>, vector<1x64xf32>
    %c0_57 = arith.constant 0 : index
    %c0_58 = arith.constant 0 : index
    %152 = vector.load %arg11[%c0_57, %c0_58] : memref<64x32xf32, #tpu.memory_space<vmem>>, vector<64x32xf32>
    %c0_59 = arith.constant 0 : index
    %c0_60 = arith.constant 0 : index
    %153 = vector.load %arg12[%c0_59, %c0_60] : memref<1x32xf32, #tpu.memory_space<vmem>>, vector<1x32xf32>
    %cst_61 = arith.constant dense<0.000000e+00> : vector<5x64xf32>
    %154 = tpu.matmul %149, %150, %cst_61 {dimension_numbers = #tpu.dot_dimension_numbers<[1], [0], [0], [1], [0, 0, 1, 1], [], []>} : vector<5x32xf32>, vector<32x64xf32>, vector<5x64xf32> -> vector<5x64xf32>
    %155 = vector.broadcast %151 : vector<1x64xf32> to vector<5x64xf32>
    %156 = arith.addf %154, %155 : vector<5x64xf32>
    %157 = arith.mulf %156, %156 : vector<5x64xf32>
    %158 = arith.mulf %156, %157 : vector<5x64xf32>
    %cst_62 = arith.constant 4.471500e-02 : f32
    %159 = vector.broadcast %cst_62 : f32 to vector<5x64xf32>
    %160 = arith.mulf %159, %158 : vector<5x64xf32>
    %161 = arith.addf %156, %160 : vector<5x64xf32>
    %cst_63 = arith.constant 0.797884583 : f32
    %162 = vector.broadcast %cst_63 : f32 to vector<5x64xf32>
    %163 = arith.mulf %162, %161 : vector<5x64xf32>
    %164 = math.tanh %163 : vector<5x64xf32>
    %cst_64 = arith.constant 1.000000e+00 : f32
    %165 = vector.broadcast %cst_64 : f32 to vector<5x64xf32>
    %166 = arith.addf %165, %164 : vector<5x64xf32>
    %cst_65 = arith.constant 5.000000e-01 : f32
    %167 = vector.broadcast %cst_65 : f32 to vector<5x64xf32>
    %168 = arith.mulf %167, %166 : vector<5x64xf32>
    %169 = arith.mulf %156, %168 : vector<5x64xf32>
    %cst_66 = arith.constant dense<0.000000e+00> : vector<5x32xf32>
    %170 = tpu.matmul %169, %152, %cst_66 {dimension_numbers = #tpu.dot_dimension_numbers<[1], [0], [0], [1], [0, 0, 1, 1], [], []>} : vector<5x64xf32>, vector<64x32xf32>, vector<5x32xf32> -> vector<5x32xf32>
    %171 = vector.broadcast %153 : vector<1x32xf32> to vector<5x32xf32>
    %172 = arith.addf %170, %171 : vector<5x32xf32>
    %173 = arith.addf %125, %172 : vector<5x32xf32>
    %174 = vector.extract_strided_slice %7 {offsets = [4, 0], sizes = [1, 32], strides = [1, 1]} : vector<6x32xf32> to vector<1x32xf32>
    %175 = vector.extract_strided_slice %7 {offsets = [5, 0], sizes = [1, 32], strides = [1, 1]} : vector<6x32xf32> to vector<1x32xf32>
    %cst_67 = arith.constant dense<0.000000e+00> : vector<5xf32>
    %176 = vector.multi_reduction <add>, %173, %cst_67 [1] : vector<5x32xf32> to vector<5xf32>
    %177 = vector.shape_cast %176 : vector<5xf32> to vector<5x1xf32>
    %cst_68 = arith.constant 3.200000e+01 : f32
    %178 = vector.broadcast %cst_68 : f32 to vector<5x1xf32>
    %179 = arith.divf %177, %178 : vector<5x1xf32>
    %180 = vector.broadcast %179 : vector<5x1xf32> to vector<5x32xf32>
    %181 = arith.subf %173, %180 : vector<5x32xf32>
    %182 = arith.mulf %181, %181 : vector<5x32xf32>
    %cst_69 = arith.constant dense<0.000000e+00> : vector<5xf32>
    %183 = vector.multi_reduction <add>, %182, %cst_69 [1] : vector<5x32xf32> to vector<5xf32>
    %184 = vector.shape_cast %183 : vector<5xf32> to vector<5x1xf32>
    %cst_70 = arith.constant 3.200000e+01 : f32
    %185 = vector.broadcast %cst_70 : f32 to vector<5x1xf32>
    %186 = arith.divf %184, %185 : vector<5x1xf32>
    %187 = vector.broadcast %179 : vector<5x1xf32> to vector<5x32xf32>
    %188 = arith.subf %173, %187 : vector<5x32xf32>
    %cst_71 = arith.constant 9.99999997E-7 : f32
    %189 = vector.broadcast %cst_71 : f32 to vector<5x1xf32>
    %190 = arith.addf %186, %189 : vector<5x1xf32>
    %191 = math.rsqrt %190 : vector<5x1xf32>
    %192 = vector.broadcast %191 : vector<5x1xf32> to vector<5x32xf32>
    %193 = arith.mulf %188, %192 : vector<5x32xf32>
    %194 = vector.broadcast %174 : vector<1x32xf32> to vector<5x32xf32>
    %195 = arith.mulf %193, %194 : vector<5x32xf32>
    %196 = vector.broadcast %175 : vector<1x32xf32> to vector<5x32xf32>
    %197 = arith.addf %195, %196 : vector<5x32xf32>
    %c0_72 = arith.constant 0 : index
    %c0_73 = arith.constant 0 : index
    %c0_74 = arith.constant 0 : index
    %198 = vector.load %arg13[%c0_72, %c0_73, %c0_74] : memref<1x5x32xf32, #tpu.memory_space<vmem>>, vector<1x5x32xf32>
    %199 = vector.shape_cast %198 : vector<1x5x32xf32> to vector<5x32xf32>
    %200 = vector.shape_cast %197 : vector<5x32xf32> to vector<1x5x32xf32>
    tpu.vector_store %arg13[%c0_72, %c0_73, %c0_74], %200 {strides = array<i32>} : memref<1x5x32xf32, #tpu.memory_space<vmem>>, vector<1x5x32xf32>,
    return
  }
  func.func @transform_0(%arg0: i32) -> (i32, i32, i32) {
    %c0_i32 = arith.constant 0 : i32
    %c0_i32_0 = arith.constant 0 : i32
    %c0_i32_1 = arith.constant 0 : i32
    return %arg0, %c0_i32, %c0_i32_0 : i32, i32, i32
  }
  func.func @transform_1(%arg0: i32) -> (i32, i32, i32) {
    %c0_i32 = arith.constant 0 : i32
    %c0_i32_0 = arith.constant 0 : i32
    %c0_i32_1 = arith.constant 0 : i32
    return %arg0, %c0_i32, %c0_i32_0 : i32, i32, i32
  }
  func.func @transform_2(%arg0: i32) -> (i32, i32) {
    %c0_i32 = arith.constant 0 : i32
    %c0_i32_0 = arith.constant 0 : i32
    %c0_i32_1 = arith.constant 0 : i32
    return %c0_i32, %c0_i32_0 : i32, i32
  }
  func.func @transform_3(%arg0: i32) -> (i32, i32) {
    %c0_i32 = arith.constant 0 : i32
    %c0_i32_0 = arith.constant 0 : i32
    %c0_i32_1 = arith.constant 0 : i32
    return %c0_i32, %c0_i32_0 : i32, i32
  }
  func.func @transform_4(%arg0: i32) -> (i32, i32) {
    %c0_i32 = arith.constant 0 : i32
    %c0_i32_0 = arith.constant 0 : i32
    %c0_i32_1 = arith.constant 0 : i32
    return %c0_i32, %c0_i32_0 : i32, i32
  }
  func.func @transform_5(%arg0: i32) -> (i32, i32) {
    %c0_i32 = arith.constant 0 : i32
    %c0_i32_0 = arith.constant 0 : i32
    %c0_i32_1 = arith.constant 0 : i32
    return %c0_i32, %c0_i32_0 : i32, i32
  }
  func.func @transform_6(%arg0: i32) -> (i32, i32) {
    %c0_i32 = arith.constant 0 : i32
    %c0_i32_0 = arith.constant 0 : i32
    %c0_i32_1 = arith.constant 0 : i32
    return %c0_i32, %c0_i32_0 : i32, i32
  }
  func.func @transform_7(%arg0: i32) -> (i32, i32) {
    %c0_i32 = arith.constant 0 : i32
    %c0_i32_0 = arith.constant 0 : i32
    %c0_i32_1 = arith.constant 0 : i32
    return %c0_i32, %c0_i32_0 : i32, i32
  }
  func.func @transform_8(%arg0: i32) -> (i32, i32) {
    %c0_i32 = arith.constant 0 : i32
    %c0_i32_0 = arith.constant 0 : i32
    %c0_i32_1 = arith.constant 0 : i32
    return %c0_i32, %c0_i32_0 : i32, i32
  }
  func.func @transform_9(%arg0: i32) -> (i32, i32) {
    %c0_i32 = arith.constant 0 : i32
    %c0_i32_0 = arith.constant 0 : i32
    %c0_i32_1 = arith.constant 0 : i32
    return %c0_i32, %c0_i32_0 : i32, i32
  }
  func.func @transform_10(%arg0: i32) -> (i32, i32) {
    %c0_i32 = arith.constant 0 : i32
    %c0_i32_0 = arith.constant 0 : i32
    %c0_i32_1 = arith.constant 0 : i32
    return %c0_i32, %c0_i32_0 : i32, i32
  }
  func.func @transform_11(%arg0: i32) -> (i32, i32) {
    %c0_i32 = arith.constant 0 : i32
    %c0_i32_0 = arith.constant 0 : i32
    %c0_i32_1 = arith.constant 0 : i32
    return %c0_i32, %c0_i32_0 : i32, i32
  }
  func.func @transform_12(%arg0: i32) -> (i32, i32, i32) {
    %c0_i32 = arith.constant 0 : i32
    %c0_i32_0 = arith.constant 0 : i32
    %c0_i32_1 = arith.constant 0 : i32
    return %arg0, %c0_i32, %c0_i32_0 : i32, i32, i32
  }
}

module attributes {stable_mosaic.version = 11 : i64} {
  func.func @_cross_itm_kernel(%arg0: i32, %arg1: memref<1x8x32xf32, #tpu.memory_space<vmem>>, %arg2: memref<1x1x8xf32, #tpu.memory_space<vmem>>, %arg3: memref<1x5x32xf32, #tpu.memory_space<vmem>>, %arg4: memref<6x32xf32, #tpu.memory_space<vmem>>, %arg5: memref<32x96xf32, #tpu.memory_space<vmem>>, %arg6: memref<1x96xf32, #tpu.memory_space<vmem>>, %arg7: memref<32x32xf32, #tpu.memory_space<vmem>>, %arg8: memref<1x32xf32, #tpu.memory_space<vmem>>, %arg9: memref<32x96xf32, #tpu.memory_space<vmem>>, %arg10: memref<1x96xf32, #tpu.memory_space<vmem>>, %arg11: memref<32x32xf32, #tpu.memory_space<vmem>>, %arg12: memref<1x32xf32, #tpu.memory_space<vmem>>, %arg13: memref<32x64xf32, #tpu.memory_space<vmem>>, %arg14: memref<1x64xf32, #tpu.memory_space<vmem>>, %arg15: memref<64x32xf32, #tpu.memory_space<vmem>>, %arg16: memref<1x32xf32, #tpu.memory_space<vmem>>, %arg17: memref<32x2xf32, #tpu.memory_space<vmem>>, %arg18: memref<1x2xf32, #tpu.memory_space<vmem>>, %arg19: memref<1x1x2xf32, #tpu.memory_space<vmem>>) attributes {dimension_semantics = [#tpu.dimension_semantics<parallel>], iteration_bounds = array<i64: 4>, scalar_prefetch = 0 : i64, scratch_operands = 0 : i64, tpu.core_type = #tpu.core_type<tc>, window_params = [{transform_indices = @transform_0, window_bounds = array<i64: 1, 8, 32>}, {transform_indices = @transform_1, window_bounds = array<i64: 1, 1, 8>}, {transform_indices = @transform_2, window_bounds = array<i64: 1, 5, 32>}, {pipeline_mode = #tpu.pipeline_mode<synchronous>, transform_indices = @transform_3, window_bounds = array<i64: 6, 32>}, {pipeline_mode = #tpu.pipeline_mode<synchronous>, transform_indices = @transform_4, window_bounds = array<i64: 32, 96>}, {pipeline_mode = #tpu.pipeline_mode<synchronous>, transform_indices = @transform_5, window_bounds = array<i64: 1, 96>}, {pipeline_mode = #tpu.pipeline_mode<synchronous>, transform_indices = @transform_6, window_bounds = array<i64: 32, 32>}, {pipeline_mode = #tpu.pipeline_mode<synchronous>, transform_indices = @transform_7, window_bounds = array<i64: 1, 32>}, {pipeline_mode = #tpu.pipeline_mode<synchronous>, transform_indices = @transform_8, window_bounds = array<i64: 32, 96>}, {pipeline_mode = #tpu.pipeline_mode<synchronous>, transform_indices = @transform_9, window_bounds = array<i64: 1, 96>}, {pipeline_mode = #tpu.pipeline_mode<synchronous>, transform_indices = @transform_10, window_bounds = array<i64: 32, 32>}, {pipeline_mode = #tpu.pipeline_mode<synchronous>, transform_indices = @transform_11, window_bounds = array<i64: 1, 32>}, {pipeline_mode = #tpu.pipeline_mode<synchronous>, transform_indices = @transform_12, window_bounds = array<i64: 32, 64>}, {pipeline_mode = #tpu.pipeline_mode<synchronous>, transform_indices = @transform_13, window_bounds = array<i64: 1, 64>}, {pipeline_mode = #tpu.pipeline_mode<synchronous>, transform_indices = @transform_14, window_bounds = array<i64: 64, 32>}, {pipeline_mode = #tpu.pipeline_mode<synchronous>, transform_indices = @transform_15, window_bounds = array<i64: 1, 32>}, {pipeline_mode = #tpu.pipeline_mode<synchronous>, transform_indices = @transform_16, window_bounds = array<i64: 32, 2>}, {pipeline_mode = #tpu.pipeline_mode<synchronous>, transform_indices = @transform_17, window_bounds = array<i64: 1, 2>}, {transform_indices = @transform_18, window_bounds = array<i64: 1, 1, 2>}]} {
    %c0 = arith.constant 0 : index
    %c0_0 = arith.constant 0 : index
    %c0_1 = arith.constant 0 : index
    %0 = vector.load %arg1[%c0, %c0_0, %c0_1] : memref<1x8x32xf32, #tpu.memory_space<vmem>>, vector<1x8x32xf32>
    %1 = vector.shape_cast %0 : vector<1x8x32xf32> to vector<8x32xf32>
    %c0_2 = arith.constant 0 : index
    %c0_3 = arith.constant 0 : index
    %c0_4 = arith.constant 0 : index
    %2 = vector.load %arg3[%c0_2, %c0_3, %c0_4] : memref<1x5x32xf32, #tpu.memory_space<vmem>>, vector<1x5x32xf32>
    %3 = vector.shape_cast %2 : vector<1x5x32xf32> to vector<5x32xf32>
    %c0_5 = arith.constant 0 : index
    %c0_6 = arith.constant 0 : index
    %c0_7 = arith.constant 0 : index
    %4 = vector.load %arg2[%c0_5, %c0_6, %c0_7] : memref<1x1x8xf32, #tpu.memory_space<vmem>>, vector<1x1x8xf32>
    %5 = vector.shape_cast %4 : vector<1x1x8xf32> to vector<1x8xf32>
    %cst = arith.constant 1.000000e+00 : f32
    %6 = vector.broadcast %cst : f32 to vector<1x8xf32>
    %7 = arith.subf %6, %5 : vector<1x8xf32>
    %cst_8 = arith.constant -1.000000e+09 : f32
    %8 = vector.broadcast %cst_8 : f32 to vector<1x8xf32>
    %9 = arith.mulf %7, %8 : vector<1x8xf32>
    %c0_9 = arith.constant 0 : index
    %c0_10 = arith.constant 0 : index
    %10 = vector.load %arg4[%c0_9, %c0_10] : memref<6x32xf32, #tpu.memory_space<vmem>>, vector<6x32xf32>
    %c0_11 = arith.constant 0 : index
    %c0_12 = arith.constant 0 : index
    %11 = vector.load %arg5[%c0_11, %c0_12] : memref<32x96xf32, #tpu.memory_space<vmem>>, vector<32x96xf32>
    %c0_13 = arith.constant 0 : index
    %c0_14 = arith.constant 0 : index
    %12 = vector.load %arg6[%c0_13, %c0_14] : memref<1x96xf32, #tpu.memory_space<vmem>>, vector<1x96xf32>
    %c0_15 = arith.constant 0 : index
    %c0_16 = arith.constant 0 : index
    %13 = vector.load %arg7[%c0_15, %c0_16] : memref<32x32xf32, #tpu.memory_space<vmem>>, vector<32x32xf32>
    %c0_17 = arith.constant 0 : index
    %c0_18 = arith.constant 0 : index
    %14 = vector.load %arg8[%c0_17, %c0_18] : memref<1x32xf32, #tpu.memory_space<vmem>>, vector<1x32xf32>
    %cst_19 = arith.constant dense<0.000000e+00> : vector<8x96xf32>
    %15 = tpu.matmul %1, %11, %cst_19 {dimension_numbers = #tpu.dot_dimension_numbers<[1], [0], [0], [1], [0, 0, 1, 1], [], []>} : vector<8x32xf32>, vector<32x96xf32>, vector<8x96xf32> -> vector<8x96xf32>
    %16 = vector.broadcast %12 : vector<1x96xf32> to vector<8x96xf32>
    %17 = arith.addf %15, %16 : vector<8x96xf32>
    %18 = vector.extract_strided_slice %17 {offsets = [0, 0], sizes = [8, 32], strides = [1, 1]} : vector<8x96xf32> to vector<8x32xf32>
    %19 = vector.extract_strided_slice %17 {offsets = [0, 32], sizes = [8, 32], strides = [1, 1]} : vector<8x96xf32> to vector<8x32xf32>
    %20 = vector.extract_strided_slice %17 {offsets = [0, 64], sizes = [8, 32], strides = [1, 1]} : vector<8x96xf32> to vector<8x32xf32>
    %cst_20 = arith.constant 0.000000e+00 : f32
    %21 = vector.broadcast %cst_20 : f32 to vector<8x32xf32>
    %22 = vector.broadcast %14 : vector<1x32xf32> to vector<8x32xf32>
    %23 = arith.addf %21, %22 : vector<8x32xf32>
    %24 = vector.extract_strided_slice %18 {offsets = [0, 0], sizes = [8, 8], strides = [1, 1]} : vector<8x32xf32> to vector<8x8xf32>
    %25 = vector.extract_strided_slice %19 {offsets = [0, 0], sizes = [8, 8], strides = [1, 1]} : vector<8x32xf32> to vector<8x8xf32>
    %26 = vector.extract_strided_slice %20 {offsets = [0, 0], sizes = [8, 8], strides = [1, 1]} : vector<8x32xf32> to vector<8x8xf32>
    %cst_21 = arith.constant dense<0.000000e+00> : vector<8x8xf32>
    %27 = tpu.matmul %24, %25, %cst_21 {dimension_numbers = #tpu.dot_dimension_numbers<[1], [1], [0], [0], [0, 0, 1, 0], [], []>} : vector<8x8xf32>, vector<8x8xf32>, vector<8x8xf32> -> vector<8x8xf32>
    %cst_22 = arith.constant 0.353553385 : f32
    %28 = vector.broadcast %cst_22 : f32 to vector<8x8xf32>
    %29 = arith.mulf %27, %28 : vector<8x8xf32>
    %30 = vector.broadcast %9 : vector<1x8xf32> to vector<8x8xf32>
    %31 = arith.addf %29, %30 : vector<8x8xf32>
    %cst_23 = arith.constant dense<0xFF800000> : vector<8xf32>
    %32 = vector.multi_reduction <maximumf>, %31, %cst_23 [1] : vector<8x8xf32> to vector<8xf32>
    %33 = vector.shape_cast %32 : vector<8xf32> to vector<8x1xf32>
    %34 = vector.broadcast %33 : vector<8x1xf32> to vector<8x8xf32>
    %35 = arith.subf %31, %34 : vector<8x8xf32>
    %36 = math.exp %35 : vector<8x8xf32>
    %cst_24 = arith.constant dense<0.000000e+00> : vector<8xf32>
    %37 = vector.multi_reduction <add>, %36, %cst_24 [1] : vector<8x8xf32> to vector<8xf32>
    %38 = vector.shape_cast %37 : vector<8xf32> to vector<8x1xf32>
    %39 = tpu.reciprocal %38 {approx = true} : vector<8x1xf32> -> vector<8x1xf32>
    %40 = vector.broadcast %39 : vector<8x1xf32> to vector<8x8xf32>
    %41 = arith.mulf %36, %40 : vector<8x8xf32>
    %cst_25 = arith.constant dense<0.000000e+00> : vector<8x8xf32>
    %42 = tpu.matmul %41, %26, %cst_25 {dimension_numbers = #tpu.dot_dimension_numbers<[1], [0], [0], [1], [0, 0, 1, 1], [], []>} : vector<8x8xf32>, vector<8x8xf32>, vector<8x8xf32> -> vector<8x8xf32>
    %43 = vector.extract_strided_slice %13 {offsets = [0, 0], sizes = [8, 32], strides = [1, 1]} : vector<32x32xf32> to vector<8x32xf32>
    %cst_26 = arith.constant dense<0.000000e+00> : vector<8x32xf32>
    %44 = tpu.matmul %42, %43, %cst_26 {dimension_numbers = #tpu.dot_dimension_numbers<[1], [0], [0], [1], [0, 0, 1, 1], [], []>} : vector<8x8xf32>, vector<8x32xf32>, vector<8x32xf32> -> vector<8x32xf32>
    %45 = arith.addf %23, %44 : vector<8x32xf32>
    %46 = vector.extract_strided_slice %18 {offsets = [0, 8], sizes = [8, 8], strides = [1, 1]} : vector<8x32xf32> to vector<8x8xf32>
    %47 = vector.extract_strided_slice %19 {offsets = [0, 8], sizes = [8, 8], strides = [1, 1]} : vector<8x32xf32> to vector<8x8xf32>
    %48 = vector.extract_strided_slice %20 {offsets = [0, 8], sizes = [8, 8], strides = [1, 1]} : vector<8x32xf32> to vector<8x8xf32>
    %cst_27 = arith.constant dense<0.000000e+00> : vector<8x8xf32>
    %49 = tpu.matmul %46, %47, %cst_27 {dimension_numbers = #tpu.dot_dimension_numbers<[1], [1], [0], [0], [0, 0, 1, 0], [], []>} : vector<8x8xf32>, vector<8x8xf32>, vector<8x8xf32> -> vector<8x8xf32>
    %cst_28 = arith.constant 0.353553385 : f32
    %50 = vector.broadcast %cst_28 : f32 to vector<8x8xf32>
    %51 = arith.mulf %49, %50 : vector<8x8xf32>
    %52 = vector.broadcast %9 : vector<1x8xf32> to vector<8x8xf32>
    %53 = arith.addf %51, %52 : vector<8x8xf32>
    %cst_29 = arith.constant dense<0xFF800000> : vector<8xf32>
    %54 = vector.multi_reduction <maximumf>, %53, %cst_29 [1] : vector<8x8xf32> to vector<8xf32>
    %55 = vector.shape_cast %54 : vector<8xf32> to vector<8x1xf32>
    %56 = vector.broadcast %55 : vector<8x1xf32> to vector<8x8xf32>
    %57 = arith.subf %53, %56 : vector<8x8xf32>
    %58 = math.exp %57 : vector<8x8xf32>
    %cst_30 = arith.constant dense<0.000000e+00> : vector<8xf32>
    %59 = vector.multi_reduction <add>, %58, %cst_30 [1] : vector<8x8xf32> to vector<8xf32>
    %60 = vector.shape_cast %59 : vector<8xf32> to vector<8x1xf32>
    %61 = tpu.reciprocal %60 {approx = true} : vector<8x1xf32> -> vector<8x1xf32>
    %62 = vector.broadcast %61 : vector<8x1xf32> to vector<8x8xf32>
    %63 = arith.mulf %58, %62 : vector<8x8xf32>
    %cst_31 = arith.constant dense<0.000000e+00> : vector<8x8xf32>
    %64 = tpu.matmul %63, %48, %cst_31 {dimension_numbers = #tpu.dot_dimension_numbers<[1], [0], [0], [1], [0, 0, 1, 1], [], []>} : vector<8x8xf32>, vector<8x8xf32>, vector<8x8xf32> -> vector<8x8xf32>
    %65 = vector.extract_strided_slice %13 {offsets = [8, 0], sizes = [8, 32], strides = [1, 1]} : vector<32x32xf32> to vector<8x32xf32>
    %cst_32 = arith.constant dense<0.000000e+00> : vector<8x32xf32>
    %66 = tpu.matmul %64, %65, %cst_32 {dimension_numbers = #tpu.dot_dimension_numbers<[1], [0], [0], [1], [0, 0, 1, 1], [], []>} : vector<8x8xf32>, vector<8x32xf32>, vector<8x32xf32> -> vector<8x32xf32>
    %67 = arith.addf %45, %66 : vector<8x32xf32>
    %68 = vector.extract_strided_slice %18 {offsets = [0, 16], sizes = [8, 8], strides = [1, 1]} : vector<8x32xf32> to vector<8x8xf32>
    %69 = vector.extract_strided_slice %19 {offsets = [0, 16], sizes = [8, 8], strides = [1, 1]} : vector<8x32xf32> to vector<8x8xf32>
    %70 = vector.extract_strided_slice %20 {offsets = [0, 16], sizes = [8, 8], strides = [1, 1]} : vector<8x32xf32> to vector<8x8xf32>
    %cst_33 = arith.constant dense<0.000000e+00> : vector<8x8xf32>
    %71 = tpu.matmul %68, %69, %cst_33 {dimension_numbers = #tpu.dot_dimension_numbers<[1], [1], [0], [0], [0, 0, 1, 0], [], []>} : vector<8x8xf32>, vector<8x8xf32>, vector<8x8xf32> -> vector<8x8xf32>
    %cst_34 = arith.constant 0.353553385 : f32
    %72 = vector.broadcast %cst_34 : f32 to vector<8x8xf32>
    %73 = arith.mulf %71, %72 : vector<8x8xf32>
    %74 = vector.broadcast %9 : vector<1x8xf32> to vector<8x8xf32>
    %75 = arith.addf %73, %74 : vector<8x8xf32>
    %cst_35 = arith.constant dense<0xFF800000> : vector<8xf32>
    %76 = vector.multi_reduction <maximumf>, %75, %cst_35 [1] : vector<8x8xf32> to vector<8xf32>
    %77 = vector.shape_cast %76 : vector<8xf32> to vector<8x1xf32>
    %78 = vector.broadcast %77 : vector<8x1xf32> to vector<8x8xf32>
    %79 = arith.subf %75, %78 : vector<8x8xf32>
    %80 = math.exp %79 : vector<8x8xf32>
    %cst_36 = arith.constant dense<0.000000e+00> : vector<8xf32>
    %81 = vector.multi_reduction <add>, %80, %cst_36 [1] : vector<8x8xf32> to vector<8xf32>
    %82 = vector.shape_cast %81 : vector<8xf32> to vector<8x1xf32>
    %83 = tpu.reciprocal %82 {approx = true} : vector<8x1xf32> -> vector<8x1xf32>
    %84 = vector.broadcast %83 : vector<8x1xf32> to vector<8x8xf32>
    %85 = arith.mulf %80, %84 : vector<8x8xf32>
    %cst_37 = arith.constant dense<0.000000e+00> : vector<8x8xf32>
    %86 = tpu.matmul %85, %70, %cst_37 {dimension_numbers = #tpu.dot_dimension_numbers<[1], [0], [0], [1], [0, 0, 1, 1], [], []>} : vector<8x8xf32>, vector<8x8xf32>, vector<8x8xf32> -> vector<8x8xf32>
    %87 = vector.extract_strided_slice %13 {offsets = [16, 0], sizes = [8, 32], strides = [1, 1]} : vector<32x32xf32> to vector<8x32xf32>
    %cst_38 = arith.constant dense<0.000000e+00> : vector<8x32xf32>
    %88 = tpu.matmul %86, %87, %cst_38 {dimension_numbers = #tpu.dot_dimension_numbers<[1], [0], [0], [1], [0, 0, 1, 1], [], []>} : vector<8x8xf32>, vector<8x32xf32>, vector<8x32xf32> -> vector<8x32xf32>
    %89 = arith.addf %67, %88 : vector<8x32xf32>
    %90 = vector.extract_strided_slice %18 {offsets = [0, 24], sizes = [8, 8], strides = [1, 1]} : vector<8x32xf32> to vector<8x8xf32>
    %91 = vector.extract_strided_slice %19 {offsets = [0, 24], sizes = [8, 8], strides = [1, 1]} : vector<8x32xf32> to vector<8x8xf32>
    %92 = vector.extract_strided_slice %20 {offsets = [0, 24], sizes = [8, 8], strides = [1, 1]} : vector<8x32xf32> to vector<8x8xf32>
    %cst_39 = arith.constant dense<0.000000e+00> : vector<8x8xf32>
    %93 = tpu.matmul %90, %91, %cst_39 {dimension_numbers = #tpu.dot_dimension_numbers<[1], [1], [0], [0], [0, 0, 1, 0], [], []>} : vector<8x8xf32>, vector<8x8xf32>, vector<8x8xf32> -> vector<8x8xf32>
    %cst_40 = arith.constant 0.353553385 : f32
    %94 = vector.broadcast %cst_40 : f32 to vector<8x8xf32>
    %95 = arith.mulf %93, %94 : vector<8x8xf32>
    %96 = vector.broadcast %9 : vector<1x8xf32> to vector<8x8xf32>
    %97 = arith.addf %95, %96 : vector<8x8xf32>
    %cst_41 = arith.constant dense<0xFF800000> : vector<8xf32>
    %98 = vector.multi_reduction <maximumf>, %97, %cst_41 [1] : vector<8x8xf32> to vector<8xf32>
    %99 = vector.shape_cast %98 : vector<8xf32> to vector<8x1xf32>
    %100 = vector.broadcast %99 : vector<8x1xf32> to vector<8x8xf32>
    %101 = arith.subf %97, %100 : vector<8x8xf32>
    %102 = math.exp %101 : vector<8x8xf32>
    %cst_42 = arith.constant dense<0.000000e+00> : vector<8xf32>
    %103 = vector.multi_reduction <add>, %102, %cst_42 [1] : vector<8x8xf32> to vector<8xf32>
    %104 = vector.shape_cast %103 : vector<8xf32> to vector<8x1xf32>
    %105 = tpu.reciprocal %104 {approx = true} : vector<8x1xf32> -> vector<8x1xf32>
    %106 = vector.broadcast %105 : vector<8x1xf32> to vector<8x8xf32>
    %107 = arith.mulf %102, %106 : vector<8x8xf32>
    %cst_43 = arith.constant dense<0.000000e+00> : vector<8x8xf32>
    %108 = tpu.matmul %107, %92, %cst_43 {dimension_numbers = #tpu.dot_dimension_numbers<[1], [0], [0], [1], [0, 0, 1, 1], [], []>} : vector<8x8xf32>, vector<8x8xf32>, vector<8x8xf32> -> vector<8x8xf32>
    %109 = vector.extract_strided_slice %13 {offsets = [24, 0], sizes = [8, 32], strides = [1, 1]} : vector<32x32xf32> to vector<8x32xf32>
    %cst_44 = arith.constant dense<0.000000e+00> : vector<8x32xf32>
    %110 = tpu.matmul %108, %109, %cst_44 {dimension_numbers = #tpu.dot_dimension_numbers<[1], [0], [0], [1], [0, 0, 1, 1], [], []>} : vector<8x8xf32>, vector<8x32xf32>, vector<8x32xf32> -> vector<8x32xf32>
    %111 = arith.addf %89, %110 : vector<8x32xf32>
    %112 = arith.addf %1, %111 : vector<8x32xf32>
    %113 = vector.extract_strided_slice %10 {offsets = [0, 0], sizes = [1, 32], strides = [1, 1]} : vector<6x32xf32> to vector<1x32xf32>
    %114 = vector.extract_strided_slice %10 {offsets = [1, 0], sizes = [1, 32], strides = [1, 1]} : vector<6x32xf32> to vector<1x32xf32>
    %cst_45 = arith.constant dense<0.000000e+00> : vector<8xf32>
    %115 = vector.multi_reduction <add>, %112, %cst_45 [1] : vector<8x32xf32> to vector<8xf32>
    %116 = vector.shape_cast %115 : vector<8xf32> to vector<8x1xf32>
    %cst_46 = arith.constant 3.200000e+01 : f32
    %117 = vector.broadcast %cst_46 : f32 to vector<8x1xf32>
    %118 = arith.divf %116, %117 : vector<8x1xf32>
    %119 = vector.broadcast %118 : vector<8x1xf32> to vector<8x32xf32>
    %120 = arith.subf %112, %119 : vector<8x32xf32>
    %121 = arith.mulf %120, %120 : vector<8x32xf32>
    %cst_47 = arith.constant dense<0.000000e+00> : vector<8xf32>
    %122 = vector.multi_reduction <add>, %121, %cst_47 [1] : vector<8x32xf32> to vector<8xf32>
    %123 = vector.shape_cast %122 : vector<8xf32> to vector<8x1xf32>
    %cst_48 = arith.constant 3.200000e+01 : f32
    %124 = vector.broadcast %cst_48 : f32 to vector<8x1xf32>
    %125 = arith.divf %123, %124 : vector<8x1xf32>
    %126 = vector.broadcast %118 : vector<8x1xf32> to vector<8x32xf32>
    %127 = arith.subf %112, %126 : vector<8x32xf32>
    %cst_49 = arith.constant 9.99999997E-7 : f32
    %128 = vector.broadcast %cst_49 : f32 to vector<8x1xf32>
    %129 = arith.addf %125, %128 : vector<8x1xf32>
    %130 = math.rsqrt %129 : vector<8x1xf32>
    %131 = vector.broadcast %130 : vector<8x1xf32> to vector<8x32xf32>
    %132 = arith.mulf %127, %131 : vector<8x32xf32>
    %133 = vector.broadcast %113 : vector<1x32xf32> to vector<8x32xf32>
    %134 = arith.mulf %132, %133 : vector<8x32xf32>
    %135 = vector.broadcast %114 : vector<1x32xf32> to vector<8x32xf32>
    %136 = arith.addf %134, %135 : vector<8x32xf32>
    %c0_50 = arith.constant 0 : index
    %c0_51 = arith.constant 0 : index
    %137 = vector.load %arg9[%c0_50, %c0_51] : memref<32x96xf32, #tpu.memory_space<vmem>>, vector<32x96xf32>
    %c0_52 = arith.constant 0 : index
    %c0_53 = arith.constant 0 : index
    %138 = vector.load %arg10[%c0_52, %c0_53] : memref<1x96xf32, #tpu.memory_space<vmem>>, vector<1x96xf32>
    %c0_54 = arith.constant 0 : index
    %c0_55 = arith.constant 0 : index
    %139 = vector.load %arg11[%c0_54, %c0_55] : memref<32x32xf32, #tpu.memory_space<vmem>>, vector<32x32xf32>
    %c0_56 = arith.constant 0 : index
    %c0_57 = arith.constant 0 : index
    %140 = vector.load %arg12[%c0_56, %c0_57] : memref<1x32xf32, #tpu.memory_space<vmem>>, vector<1x32xf32>
    %cst_58 = arith.constant dense<0.000000e+00> : vector<8x96xf32>
    %141 = tpu.matmul %136, %137, %cst_58 {dimension_numbers = #tpu.dot_dimension_numbers<[1], [0], [0], [1], [0, 0, 1, 1], [], []>} : vector<8x32xf32>, vector<32x96xf32>, vector<8x96xf32> -> vector<8x96xf32>
    %142 = vector.broadcast %138 : vector<1x96xf32> to vector<8x96xf32>
    %143 = arith.addf %141, %142 : vector<8x96xf32>
    %cst_59 = arith.constant dense<0.000000e+00> : vector<5x96xf32>
    %144 = tpu.matmul %3, %137, %cst_59 {dimension_numbers = #tpu.dot_dimension_numbers<[1], [0], [0], [1], [0, 0, 1, 1], [], []>} : vector<5x32xf32>, vector<32x96xf32>, vector<5x96xf32> -> vector<5x96xf32>
    %145 = vector.broadcast %138 : vector<1x96xf32> to vector<5x96xf32>
    %146 = arith.addf %144, %145 : vector<5x96xf32>
    %147 = vector.extract_strided_slice %143 {offsets = [0, 0], sizes = [8, 32], strides = [1, 1]} : vector<8x96xf32> to vector<8x32xf32>
    %148 = vector.extract_strided_slice %146 {offsets = [0, 32], sizes = [5, 32], strides = [1, 1]} : vector<5x96xf32> to vector<5x32xf32>
    %149 = vector.extract_strided_slice %146 {offsets = [0, 64], sizes = [5, 32], strides = [1, 1]} : vector<5x96xf32> to vector<5x32xf32>
    %cst_60 = arith.constant 0.000000e+00 : f32
    %150 = vector.broadcast %cst_60 : f32 to vector<8x32xf32>
    %151 = vector.broadcast %140 : vector<1x32xf32> to vector<8x32xf32>
    %152 = arith.addf %150, %151 : vector<8x32xf32>
    %153 = vector.extract_strided_slice %147 {offsets = [0, 0], sizes = [8, 8], strides = [1, 1]} : vector<8x32xf32> to vector<8x8xf32>
    %154 = vector.extract_strided_slice %148 {offsets = [0, 0], sizes = [5, 8], strides = [1, 1]} : vector<5x32xf32> to vector<5x8xf32>
    %155 = vector.extract_strided_slice %149 {offsets = [0, 0], sizes = [5, 8], strides = [1, 1]} : vector<5x32xf32> to vector<5x8xf32>
    %cst_61 = arith.constant dense<0.000000e+00> : vector<8x5xf32>
    %156 = tpu.matmul %153, %154, %cst_61 {dimension_numbers = #tpu.dot_dimension_numbers<[1], [1], [0], [0], [0, 0, 1, 0], [], []>} : vector<8x8xf32>, vector<5x8xf32>, vector<8x5xf32> -> vector<8x5xf32>
    %cst_62 = arith.constant 0.353553385 : f32
    %157 = vector.broadcast %cst_62 : f32 to vector<8x5xf32>
    %158 = arith.mulf %156, %157 : vector<8x5xf32>
    %cst_63 = arith.constant dense<0xFF800000> : vector<8xf32>
    %159 = vector.multi_reduction <maximumf>, %158, %cst_63 [1] : vector<8x5xf32> to vector<8xf32>
    %160 = vector.shape_cast %159 : vector<8xf32> to vector<8x1xf32>
    %161 = vector.broadcast %160 : vector<8x1xf32> to vector<8x5xf32>
    %162 = arith.subf %158, %161 : vector<8x5xf32>
    %163 = math.exp %162 : vector<8x5xf32>
    %cst_64 = arith.constant dense<0.000000e+00> : vector<8xf32>
    %164 = vector.multi_reduction <add>, %163, %cst_64 [1] : vector<8x5xf32> to vector<8xf32>
    %165 = vector.shape_cast %164 : vector<8xf32> to vector<8x1xf32>
    %166 = tpu.reciprocal %165 {approx = true} : vector<8x1xf32> -> vector<8x1xf32>
    %167 = vector.broadcast %166 : vector<8x1xf32> to vector<8x5xf32>
    %168 = arith.mulf %163, %167 : vector<8x5xf32>
    %cst_65 = arith.constant dense<0.000000e+00> : vector<8x8xf32>
    %169 = tpu.matmul %168, %155, %cst_65 {dimension_numbers = #tpu.dot_dimension_numbers<[1], [0], [0], [1], [0, 0, 1, 1], [], []>} : vector<8x5xf32>, vector<5x8xf32>, vector<8x8xf32> -> vector<8x8xf32>
    %170 = vector.extract_strided_slice %139 {offsets = [0, 0], sizes = [8, 32], strides = [1, 1]} : vector<32x32xf32> to vector<8x32xf32>
    %cst_66 = arith.constant dense<0.000000e+00> : vector<8x32xf32>
    %171 = tpu.matmul %169, %170, %cst_66 {dimension_numbers = #tpu.dot_dimension_numbers<[1], [0], [0], [1], [0, 0, 1, 1], [], []>} : vector<8x8xf32>, vector<8x32xf32>, vector<8x32xf32> -> vector<8x32xf32>
    %172 = arith.addf %152, %171 : vector<8x32xf32>
    %173 = vector.extract_strided_slice %147 {offsets = [0, 8], sizes = [8, 8], strides = [1, 1]} : vector<8x32xf32> to vector<8x8xf32>
    %174 = vector.extract_strided_slice %148 {offsets = [0, 8], sizes = [5, 8], strides = [1, 1]} : vector<5x32xf32> to vector<5x8xf32>
    %175 = vector.extract_strided_slice %149 {offsets = [0, 8], sizes = [5, 8], strides = [1, 1]} : vector<5x32xf32> to vector<5x8xf32>
    %cst_67 = arith.constant dense<0.000000e+00> : vector<8x5xf32>
    %176 = tpu.matmul %173, %174, %cst_67 {dimension_numbers = #tpu.dot_dimension_numbers<[1], [1], [0], [0], [0, 0, 1, 0], [], []>} : vector<8x8xf32>, vector<5x8xf32>, vector<8x5xf32> -> vector<8x5xf32>
    %cst_68 = arith.constant 0.353553385 : f32
    %177 = vector.broadcast %cst_68 : f32 to vector<8x5xf32>
    %178 = arith.mulf %176, %177 : vector<8x5xf32>
    %cst_69 = arith.constant dense<0xFF800000> : vector<8xf32>
    %179 = vector.multi_reduction <maximumf>, %178, %cst_69 [1] : vector<8x5xf32> to vector<8xf32>
    %180 = vector.shape_cast %179 : vector<8xf32> to vector<8x1xf32>
    %181 = vector.broadcast %180 : vector<8x1xf32> to vector<8x5xf32>
    %182 = arith.subf %178, %181 : vector<8x5xf32>
    %183 = math.exp %182 : vector<8x5xf32>
    %cst_70 = arith.constant dense<0.000000e+00> : vector<8xf32>
    %184 = vector.multi_reduction <add>, %183, %cst_70 [1] : vector<8x5xf32> to vector<8xf32>
    %185 = vector.shape_cast %184 : vector<8xf32> to vector<8x1xf32>
    %186 = tpu.reciprocal %185 {approx = true} : vector<8x1xf32> -> vector<8x1xf32>
    %187 = vector.broadcast %186 : vector<8x1xf32> to vector<8x5xf32>
    %188 = arith.mulf %183, %187 : vector<8x5xf32>
    %cst_71 = arith.constant dense<0.000000e+00> : vector<8x8xf32>
    %189 = tpu.matmul %188, %175, %cst_71 {dimension_numbers = #tpu.dot_dimension_numbers<[1], [0], [0], [1], [0, 0, 1, 1], [], []>} : vector<8x5xf32>, vector<5x8xf32>, vector<8x8xf32> -> vector<8x8xf32>
    %190 = vector.extract_strided_slice %139 {offsets = [8, 0], sizes = [8, 32], strides = [1, 1]} : vector<32x32xf32> to vector<8x32xf32>
    %cst_72 = arith.constant dense<0.000000e+00> : vector<8x32xf32>
    %191 = tpu.matmul %189, %190, %cst_72 {dimension_numbers = #tpu.dot_dimension_numbers<[1], [0], [0], [1], [0, 0, 1, 1], [], []>} : vector<8x8xf32>, vector<8x32xf32>, vector<8x32xf32> -> vector<8x32xf32>
    %192 = arith.addf %172, %191 : vector<8x32xf32>
    %193 = vector.extract_strided_slice %147 {offsets = [0, 16], sizes = [8, 8], strides = [1, 1]} : vector<8x32xf32> to vector<8x8xf32>
    %194 = vector.extract_strided_slice %148 {offsets = [0, 16], sizes = [5, 8], strides = [1, 1]} : vector<5x32xf32> to vector<5x8xf32>
    %195 = vector.extract_strided_slice %149 {offsets = [0, 16], sizes = [5, 8], strides = [1, 1]} : vector<5x32xf32> to vector<5x8xf32>
    %cst_73 = arith.constant dense<0.000000e+00> : vector<8x5xf32>
    %196 = tpu.matmul %193, %194, %cst_73 {dimension_numbers = #tpu.dot_dimension_numbers<[1], [1], [0], [0], [0, 0, 1, 0], [], []>} : vector<8x8xf32>, vector<5x8xf32>, vector<8x5xf32> -> vector<8x5xf32>
    %cst_74 = arith.constant 0.353553385 : f32
    %197 = vector.broadcast %cst_74 : f32 to vector<8x5xf32>
    %198 = arith.mulf %196, %197 : vector<8x5xf32>
    %cst_75 = arith.constant dense<0xFF800000> : vector<8xf32>
    %199 = vector.multi_reduction <maximumf>, %198, %cst_75 [1] : vector<8x5xf32> to vector<8xf32>
    %200 = vector.shape_cast %199 : vector<8xf32> to vector<8x1xf32>
    %201 = vector.broadcast %200 : vector<8x1xf32> to vector<8x5xf32>
    %202 = arith.subf %198, %201 : vector<8x5xf32>
    %203 = math.exp %202 : vector<8x5xf32>
    %cst_76 = arith.constant dense<0.000000e+00> : vector<8xf32>
    %204 = vector.multi_reduction <add>, %203, %cst_76 [1] : vector<8x5xf32> to vector<8xf32>
    %205 = vector.shape_cast %204 : vector<8xf32> to vector<8x1xf32>
    %206 = tpu.reciprocal %205 {approx = true} : vector<8x1xf32> -> vector<8x1xf32>
    %207 = vector.broadcast %206 : vector<8x1xf32> to vector<8x5xf32>
    %208 = arith.mulf %203, %207 : vector<8x5xf32>
    %cst_77 = arith.constant dense<0.000000e+00> : vector<8x8xf32>
    %209 = tpu.matmul %208, %195, %cst_77 {dimension_numbers = #tpu.dot_dimension_numbers<[1], [0], [0], [1], [0, 0, 1, 1], [], []>} : vector<8x5xf32>, vector<5x8xf32>, vector<8x8xf32> -> vector<8x8xf32>
    %210 = vector.extract_strided_slice %139 {offsets = [16, 0], sizes = [8, 32], strides = [1, 1]} : vector<32x32xf32> to vector<8x32xf32>
    %cst_78 = arith.constant dense<0.000000e+00> : vector<8x32xf32>
    %211 = tpu.matmul %209, %210, %cst_78 {dimension_numbers = #tpu.dot_dimension_numbers<[1], [0], [0], [1], [0, 0, 1, 1], [], []>} : vector<8x8xf32>, vector<8x32xf32>, vector<8x32xf32> -> vector<8x32xf32>
    %212 = arith.addf %192, %211 : vector<8x32xf32>
    %213 = vector.extract_strided_slice %147 {offsets = [0, 24], sizes = [8, 8], strides = [1, 1]} : vector<8x32xf32> to vector<8x8xf32>
    %214 = vector.extract_strided_slice %148 {offsets = [0, 24], sizes = [5, 8], strides = [1, 1]} : vector<5x32xf32> to vector<5x8xf32>
    %215 = vector.extract_strided_slice %149 {offsets = [0, 24], sizes = [5, 8], strides = [1, 1]} : vector<5x32xf32> to vector<5x8xf32>
    %cst_79 = arith.constant dense<0.000000e+00> : vector<8x5xf32>
    %216 = tpu.matmul %213, %214, %cst_79 {dimension_numbers = #tpu.dot_dimension_numbers<[1], [1], [0], [0], [0, 0, 1, 0], [], []>} : vector<8x8xf32>, vector<5x8xf32>, vector<8x5xf32> -> vector<8x5xf32>
    %cst_80 = arith.constant 0.353553385 : f32
    %217 = vector.broadcast %cst_80 : f32 to vector<8x5xf32>
    %218 = arith.mulf %216, %217 : vector<8x5xf32>
    %cst_81 = arith.constant dense<0xFF800000> : vector<8xf32>
    %219 = vector.multi_reduction <maximumf>, %218, %cst_81 [1] : vector<8x5xf32> to vector<8xf32>
    %220 = vector.shape_cast %219 : vector<8xf32> to vector<8x1xf32>
    %221 = vector.broadcast %220 : vector<8x1xf32> to vector<8x5xf32>
    %222 = arith.subf %218, %221 : vector<8x5xf32>
    %223 = math.exp %222 : vector<8x5xf32>
    %cst_82 = arith.constant dense<0.000000e+00> : vector<8xf32>
    %224 = vector.multi_reduction <add>, %223, %cst_82 [1] : vector<8x5xf32> to vector<8xf32>
    %225 = vector.shape_cast %224 : vector<8xf32> to vector<8x1xf32>
    %226 = tpu.reciprocal %225 {approx = true} : vector<8x1xf32> -> vector<8x1xf32>
    %227 = vector.broadcast %226 : vector<8x1xf32> to vector<8x5xf32>
    %228 = arith.mulf %223, %227 : vector<8x5xf32>
    %cst_83 = arith.constant dense<0.000000e+00> : vector<8x8xf32>
    %229 = tpu.matmul %228, %215, %cst_83 {dimension_numbers = #tpu.dot_dimension_numbers<[1], [0], [0], [1], [0, 0, 1, 1], [], []>} : vector<8x5xf32>, vector<5x8xf32>, vector<8x8xf32> -> vector<8x8xf32>
    %230 = vector.extract_strided_slice %139 {offsets = [24, 0], sizes = [8, 32], strides = [1, 1]} : vector<32x32xf32> to vector<8x32xf32>
    %cst_84 = arith.constant dense<0.000000e+00> : vector<8x32xf32>
    %231 = tpu.matmul %229, %230, %cst_84 {dimension_numbers = #tpu.dot_dimension_numbers<[1], [0], [0], [1], [0, 0, 1, 1], [], []>} : vector<8x8xf32>, vector<8x32xf32>, vector<8x32xf32> -> vector<8x32xf32>
    %232 = arith.addf %212, %231 : vector<8x32xf32>
    %233 = arith.addf %136, %232 : vector<8x32xf32>
    %234 = vector.extract_strided_slice %10 {offsets = [2, 0], sizes = [1, 32], strides = [1, 1]} : vector<6x32xf32> to vector<1x32xf32>
    %235 = vector.extract_strided_slice %10 {offsets = [3, 0], sizes = [1, 32], strides = [1, 1]} : vector<6x32xf32> to vector<1x32xf32>
    %cst_85 = arith.constant dense<0.000000e+00> : vector<8xf32>
    %236 = vector.multi_reduction <add>, %233, %cst_85 [1] : vector<8x32xf32> to vector<8xf32>
    %237 = vector.shape_cast %236 : vector<8xf32> to vector<8x1xf32>
    %cst_86 = arith.constant 3.200000e+01 : f32
    %238 = vector.broadcast %cst_86 : f32 to vector<8x1xf32>
    %239 = arith.divf %237, %238 : vector<8x1xf32>
    %240 = vector.broadcast %239 : vector<8x1xf32> to vector<8x32xf32>
    %241 = arith.subf %233, %240 : vector<8x32xf32>
    %242 = arith.mulf %241, %241 : vector<8x32xf32>
    %cst_87 = arith.constant dense<0.000000e+00> : vector<8xf32>
    %243 = vector.multi_reduction <add>, %242, %cst_87 [1] : vector<8x32xf32> to vector<8xf32>
    %244 = vector.shape_cast %243 : vector<8xf32> to vector<8x1xf32>
    %cst_88 = arith.constant 3.200000e+01 : f32
    %245 = vector.broadcast %cst_88 : f32 to vector<8x1xf32>
    %246 = arith.divf %244, %245 : vector<8x1xf32>
    %247 = vector.broadcast %239 : vector<8x1xf32> to vector<8x32xf32>
    %248 = arith.subf %233, %247 : vector<8x32xf32>
    %cst_89 = arith.constant 9.99999997E-7 : f32
    %249 = vector.broadcast %cst_89 : f32 to vector<8x1xf32>
    %250 = arith.addf %246, %249 : vector<8x1xf32>
    %251 = math.rsqrt %250 : vector<8x1xf32>
    %252 = vector.broadcast %251 : vector<8x1xf32> to vector<8x32xf32>
    %253 = arith.mulf %248, %252 : vector<8x32xf32>
    %254 = vector.broadcast %234 : vector<1x32xf32> to vector<8x32xf32>
    %255 = arith.mulf %253, %254 : vector<8x32xf32>
    %256 = vector.broadcast %235 : vector<1x32xf32> to vector<8x32xf32>
    %257 = arith.addf %255, %256 : vector<8x32xf32>
    %c0_90 = arith.constant 0 : index
    %c0_91 = arith.constant 0 : index
    %258 = vector.load %arg13[%c0_90, %c0_91] : memref<32x64xf32, #tpu.memory_space<vmem>>, vector<32x64xf32>
    %c0_92 = arith.constant 0 : index
    %c0_93 = arith.constant 0 : index
    %259 = vector.load %arg14[%c0_92, %c0_93] : memref<1x64xf32, #tpu.memory_space<vmem>>, vector<1x64xf32>
    %c0_94 = arith.constant 0 : index
    %c0_95 = arith.constant 0 : index
    %260 = vector.load %arg15[%c0_94, %c0_95] : memref<64x32xf32, #tpu.memory_space<vmem>>, vector<64x32xf32>
    %c0_96 = arith.constant 0 : index
    %c0_97 = arith.constant 0 : index
    %261 = vector.load %arg16[%c0_96, %c0_97] : memref<1x32xf32, #tpu.memory_space<vmem>>, vector<1x32xf32>
    %cst_98 = arith.constant dense<0.000000e+00> : vector<8x64xf32>
    %262 = tpu.matmul %257, %258, %cst_98 {dimension_numbers = #tpu.dot_dimension_numbers<[1], [0], [0], [1], [0, 0, 1, 1], [], []>} : vector<8x32xf32>, vector<32x64xf32>, vector<8x64xf32> -> vector<8x64xf32>
    %263 = vector.broadcast %259 : vector<1x64xf32> to vector<8x64xf32>
    %264 = arith.addf %262, %263 : vector<8x64xf32>
    %265 = arith.mulf %264, %264 : vector<8x64xf32>
    %266 = arith.mulf %264, %265 : vector<8x64xf32>
    %cst_99 = arith.constant 4.471500e-02 : f32
    %267 = vector.broadcast %cst_99 : f32 to vector<8x64xf32>
    %268 = arith.mulf %267, %266 : vector<8x64xf32>
    %269 = arith.addf %264, %268 : vector<8x64xf32>
    %cst_100 = arith.constant 0.797884583 : f32
    %270 = vector.broadcast %cst_100 : f32 to vector<8x64xf32>
    %271 = arith.mulf %270, %269 : vector<8x64xf32>
    %272 = math.tanh %271 : vector<8x64xf32>
    %cst_101 = arith.constant 1.000000e+00 : f32
    %273 = vector.broadcast %cst_101 : f32 to vector<8x64xf32>
    %274 = arith.addf %273, %272 : vector<8x64xf32>
    %cst_102 = arith.constant 5.000000e-01 : f32
    %275 = vector.broadcast %cst_102 : f32 to vector<8x64xf32>
    %276 = arith.mulf %275, %274 : vector<8x64xf32>
    %277 = arith.mulf %264, %276 : vector<8x64xf32>
    %cst_103 = arith.constant dense<0.000000e+00> : vector<8x32xf32>
    %278 = tpu.matmul %277, %260, %cst_103 {dimension_numbers = #tpu.dot_dimension_numbers<[1], [0], [0], [1], [0, 0, 1, 1], [], []>} : vector<8x64xf32>, vector<64x32xf32>, vector<8x32xf32> -> vector<8x32xf32>
    %279 = vector.broadcast %261 : vector<1x32xf32> to vector<8x32xf32>
    %280 = arith.addf %278, %279 : vector<8x32xf32>
    %281 = arith.addf %257, %280 : vector<8x32xf32>
    %282 = vector.extract_strided_slice %10 {offsets = [4, 0], sizes = [1, 32], strides = [1, 1]} : vector<6x32xf32> to vector<1x32xf32>
    %283 = vector.extract_strided_slice %10 {offsets = [5, 0], sizes = [1, 32], strides = [1, 1]} : vector<6x32xf32> to vector<1x32xf32>
    %cst_104 = arith.constant dense<0.000000e+00> : vector<8xf32>
    %284 = vector.multi_reduction <add>, %281, %cst_104 [1] : vector<8x32xf32> to vector<8xf32>
    %285 = vector.shape_cast %284 : vector<8xf32> to vector<8x1xf32>
    %cst_105 = arith.constant 3.200000e+01 : f32
    %286 = vector.broadcast %cst_105 : f32 to vector<8x1xf32>
    %287 = arith.divf %285, %286 : vector<8x1xf32>
    %288 = vector.broadcast %287 : vector<8x1xf32> to vector<8x32xf32>
    %289 = arith.subf %281, %288 : vector<8x32xf32>
    %290 = arith.mulf %289, %289 : vector<8x32xf32>
    %cst_106 = arith.constant dense<0.000000e+00> : vector<8xf32>
    %291 = vector.multi_reduction <add>, %290, %cst_106 [1] : vector<8x32xf32> to vector<8xf32>
    %292 = vector.shape_cast %291 : vector<8xf32> to vector<8x1xf32>
    %cst_107 = arith.constant 3.200000e+01 : f32
    %293 = vector.broadcast %cst_107 : f32 to vector<8x1xf32>
    %294 = arith.divf %292, %293 : vector<8x1xf32>
    %295 = vector.broadcast %287 : vector<8x1xf32> to vector<8x32xf32>
    %296 = arith.subf %281, %295 : vector<8x32xf32>
    %cst_108 = arith.constant 9.99999997E-7 : f32
    %297 = vector.broadcast %cst_108 : f32 to vector<8x1xf32>
    %298 = arith.addf %294, %297 : vector<8x1xf32>
    %299 = math.rsqrt %298 : vector<8x1xf32>
    %300 = vector.broadcast %299 : vector<8x1xf32> to vector<8x32xf32>
    %301 = arith.mulf %296, %300 : vector<8x32xf32>
    %302 = vector.broadcast %282 : vector<1x32xf32> to vector<8x32xf32>
    %303 = arith.mulf %301, %302 : vector<8x32xf32>
    %304 = vector.broadcast %283 : vector<1x32xf32> to vector<8x32xf32>
    %305 = arith.addf %303, %304 : vector<8x32xf32>
    %c0_109 = arith.constant 0 : index
    %c0_110 = arith.constant 0 : index
    %306 = vector.load %arg17[%c0_109, %c0_110] : memref<32x2xf32, #tpu.memory_space<vmem>>, vector<32x2xf32>
    %cst_111 = arith.constant dense<0.000000e+00> : vector<8x2xf32>
    %307 = tpu.matmul %305, %306, %cst_111 {dimension_numbers = #tpu.dot_dimension_numbers<[1], [0], [0], [1], [0, 0, 1, 1], [], []>} : vector<8x32xf32>, vector<32x2xf32>, vector<8x2xf32> -> vector<8x2xf32>
    %c0_112 = arith.constant 0 : index
    %c0_113 = arith.constant 0 : index
    %308 = vector.load %arg18[%c0_112, %c0_113] : memref<1x2xf32, #tpu.memory_space<vmem>>, vector<1x2xf32>
    %309 = vector.broadcast %308 : vector<1x2xf32> to vector<8x2xf32>
    %310 = arith.addf %307, %309 : vector<8x2xf32>
    %311 = vector.extract_strided_slice %310 {offsets = [0, 0], sizes = [1, 2], strides = [1, 1]} : vector<8x2xf32> to vector<1x2xf32>
    %cst_114 = arith.constant dense<0xFF800000> : vector<1xf32>
    %312 = vector.multi_reduction <maximumf>, %311, %cst_114 [1] : vector<1x2xf32> to vector<1xf32>
    %313 = vector.shape_cast %312 : vector<1xf32> to vector<1x1xf32>
    %314 = vector.broadcast %313 : vector<1x1xf32> to vector<1x2xf32>
    %315 = arith.subf %311, %314 : vector<1x2xf32>
    %316 = math.exp %315 : vector<1x2xf32>
    %cst_115 = arith.constant dense<0.000000e+00> : vector<1xf32>
    %317 = vector.multi_reduction <add>, %316, %cst_115 [1] : vector<1x2xf32> to vector<1xf32>
    %318 = vector.shape_cast %317 : vector<1xf32> to vector<1x1xf32>
    %319 = vector.broadcast %318 : vector<1x1xf32> to vector<1x2xf32>
    %320 = arith.divf %316, %319 : vector<1x2xf32>
    %c0_116 = arith.constant 0 : index
    %c0_117 = arith.constant 0 : index
    %c0_118 = arith.constant 0 : index
    %321 = vector.load %arg19[%c0_116, %c0_117, %c0_118] : memref<1x1x2xf32, #tpu.memory_space<vmem>>, vector<1x1x2xf32>
    %322 = vector.shape_cast %321 : vector<1x1x2xf32> to vector<1x2xf32>
    %323 = vector.shape_cast %320 : vector<1x2xf32> to vector<1x1x2xf32>
    tpu.vector_store %arg19[%c0_116, %c0_117, %c0_118], %323 {strides = array<i32>} : memref<1x1x2xf32, #tpu.memory_space<vmem>>, vector<1x1x2xf32>,
    return
  }
  func.func @transform_0(%arg0: i32) -> (i32, i32, i32) {
    %c0_i32 = arith.constant 0 : i32
    %c0_i32_0 = arith.constant 0 : i32
    %c0_i32_1 = arith.constant 0 : i32
    return %arg0, %c0_i32, %c0_i32_0 : i32, i32, i32
  }
  func.func @transform_1(%arg0: i32) -> (i32, i32, i32) {
    %c0_i32 = arith.constant 0 : i32
    %c0_i32_0 = arith.constant 0 : i32
    %c0_i32_1 = arith.constant 0 : i32
    return %arg0, %c0_i32, %c0_i32_0 : i32, i32, i32
  }
  func.func @transform_2(%arg0: i32) -> (i32, i32, i32) {
    %c0_i32 = arith.constant 0 : i32
    %c0_i32_0 = arith.constant 0 : i32
    %c0_i32_1 = arith.constant 0 : i32
    return %arg0, %c0_i32, %c0_i32_0 : i32, i32, i32
  }
  func.func @transform_3(%arg0: i32) -> (i32, i32) {
    %c0_i32 = arith.constant 0 : i32
    %c0_i32_0 = arith.constant 0 : i32
    %c0_i32_1 = arith.constant 0 : i32
    return %c0_i32, %c0_i32_0 : i32, i32
  }
  func.func @transform_4(%arg0: i32) -> (i32, i32) {
    %c0_i32 = arith.constant 0 : i32
    %c0_i32_0 = arith.constant 0 : i32
    %c0_i32_1 = arith.constant 0 : i32
    return %c0_i32, %c0_i32_0 : i32, i32
  }
  func.func @transform_5(%arg0: i32) -> (i32, i32) {
    %c0_i32 = arith.constant 0 : i32
    %c0_i32_0 = arith.constant 0 : i32
    %c0_i32_1 = arith.constant 0 : i32
    return %c0_i32, %c0_i32_0 : i32, i32
  }
  func.func @transform_6(%arg0: i32) -> (i32, i32) {
    %c0_i32 = arith.constant 0 : i32
    %c0_i32_0 = arith.constant 0 : i32
    %c0_i32_1 = arith.constant 0 : i32
    return %c0_i32, %c0_i32_0 : i32, i32
  }
  func.func @transform_7(%arg0: i32) -> (i32, i32) {
    %c0_i32 = arith.constant 0 : i32
    %c0_i32_0 = arith.constant 0 : i32
    %c0_i32_1 = arith.constant 0 : i32
    return %c0_i32, %c0_i32_0 : i32, i32
  }
  func.func @transform_8(%arg0: i32) -> (i32, i32) {
    %c0_i32 = arith.constant 0 : i32
    %c0_i32_0 = arith.constant 0 : i32
    %c0_i32_1 = arith.constant 0 : i32
    return %c0_i32, %c0_i32_0 : i32, i32
  }
  func.func @transform_9(%arg0: i32) -> (i32, i32) {
    %c0_i32 = arith.constant 0 : i32
    %c0_i32_0 = arith.constant 0 : i32
    %c0_i32_1 = arith.constant 0 : i32
    return %c0_i32, %c0_i32_0 : i32, i32
  }
  func.func @transform_10(%arg0: i32) -> (i32, i32) {
    %c0_i32 = arith.constant 0 : i32
    %c0_i32_0 = arith.constant 0 : i32
    %c0_i32_1 = arith.constant 0 : i32
    return %c0_i32, %c0_i32_0 : i32, i32
  }
  func.func @transform_11(%arg0: i32) -> (i32, i32) {
    %c0_i32 = arith.constant 0 : i32
    %c0_i32_0 = arith.constant 0 : i32
    %c0_i32_1 = arith.constant 0 : i32
    return %c0_i32, %c0_i32_0 : i32, i32
  }
  func.func @transform_12(%arg0: i32) -> (i32, i32) {
    %c0_i32 = arith.constant 0 : i32
    %c0_i32_0 = arith.constant 0 : i32
    %c0_i32_1 = arith.constant 0 : i32
    return %c0_i32, %c0_i32_0 : i32, i32
  }
  func.func @transform_13(%arg0: i32) -> (i32, i32) {
    %c0_i32 = arith.constant 0 : i32
    %c0_i32_0 = arith.constant 0 : i32
    %c0_i32_1 = arith.constant 0 : i32
    return %c0_i32, %c0_i32_0 : i32, i32
  }
  func.func @transform_14(%arg0: i32) -> (i32, i32) {
    %c0_i32 = arith.constant 0 : i32
    %c0_i32_0 = arith.constant 0 : i32
    %c0_i32_1 = arith.constant 0 : i32
    return %c0_i32, %c0_i32_0 : i32, i32
  }
  func.func @transform_15(%arg0: i32) -> (i32, i32) {
    %c0_i32 = arith.constant 0 : i32
    %c0_i32_0 = arith.constant 0 : i32
    %c0_i32_1 = arith.constant 0 : i32
    return %c0_i32, %c0_i32_0 : i32, i32
  }
  func.func @transform_16(%arg0: i32) -> (i32, i32) {
    %c0_i32 = arith.constant 0 : i32
    %c0_i32_0 = arith.constant 0 : i32
    %c0_i32_1 = arith.constant 0 : i32
    return %c0_i32, %c0_i32_0 : i32, i32
  }
  func.func @transform_17(%arg0: i32) -> (i32, i32) {
    %c0_i32 = arith.constant 0 : i32
    %c0_i32_0 = arith.constant 0 : i32
    %c0_i32_1 = arith.constant 0 : i32
    return %c0_i32, %c0_i32_0 : i32, i32
  }
  func.func @transform_18(%arg0: i32) -> (i32, i32, i32) {
    %c0_i32 = arith.constant 0 : i32
    %c0_i32_0 = arith.constant 0 : i32
    %c0_i32_1 = arith.constant 0 : i32
    return %arg0, %c0_i32, %c0_i32_0 : i32, i32, i32
  }
}

</mosaic_0001>

<llo_original>
// kernel: _forward_impl.4
$region0: #{_forward_impl.4}
  #allocation0 [shape = 'u32[]', space=smem, size = 0x4, offset = 0x4, fixed_abs, tag = 'smem constant byte address 0x4 - core index']
  #allocation1 [shape = 'u32[72,128]{1,0:T(1,128)}', space=vmem, size = 0x9000, scoped, tag = 'internal scratch']
  %s0 = inlined_call_operand.vmem [shape: f32[4,8,32], index: 0, kind: input, shape index: {}]
  %s1 = inlined_call_operand.vmem [shape: f32[4,1,8], index: 1, kind: input, shape index: {}]
  %s2 = inlined_call_operand.vmem [shape: f32[6,32], index: 2, kind: input, shape index: {}]
  %s3 = inlined_call_operand.vmem [shape: f32[32,96], index: 3, kind: input, shape index: {}]
  %s4 = inlined_call_operand.vmem [shape: f32[1,96], index: 4, kind: input, shape index: {}]
  %s5 = inlined_call_operand.vmem [shape: f32[32,32], index: 5, kind: input, shape index: {}]
  %s6 = inlined_call_operand.vmem [shape: f32[1,32], index: 6, kind: input, shape index: {}]
  %s7 = inlined_call_operand.vmem [shape: f32[32,64], index: 7, kind: input, shape index: {}]
  %s8 = inlined_call_operand.vmem [shape: f32[1,64], index: 8, kind: input, shape index: {}]
  %s9 = inlined_call_operand.vmem [shape: f32[64,32], index: 9, kind: input, shape index: {}]
  %s10 = inlined_call_operand.vmem [shape: f32[1,32], index: 10, kind: input, shape index: {}]
  %s11 = inlined_call_operand.vmem [shape: f32[4,8,32], index: 11, kind: output, shape index: {}]
  %s12 = sld [smem:[#allocation0]]
  $region77: #{_forward_impl.4} parent=0
    _
  %s14 = ssub.s32 1, %s12
  %s15 = scalar_select 0, %s14, %s12
  loop: start=0, step=1, limit=6
  $region2: #{_forward_impl.4} parent=0 // loop_pre_header
    _
  $region3: #{_forward_impl.4} parent=0 // loop_header
    %s17 = sphi 0, %s21
    %p18 = scmp.ge.s32.totalorder %s17, 6
    %s27 = sphi 0, %s29
    %s30 = sphi 0, %s27
    %s31 = sphi 0, %s30
    %s47 = sphi 0, %s31
    %s53 = sphi 0, %s55
    %s56 = sphi 0, %s53
    %s57 = sphi 0, %s56
    %s73 = sphi 0, %s57
    %s77 = sphi 0, %s77
    %s79 = sphi 0, %s77
    %s80 = sphi 0, %s79
    %s94 = sphi 0, %s80
    %s98 = sphi 0, %s98
    %s100 = sphi 0, %s98
    %s101 = sphi 0, %s100
    %s115 = sphi 0, %s101
    %s119 = sphi 0, %s119
    %s121 = sphi 0, %s119
    %s122 = sphi 0, %s121
    %s136 = sphi 0, %s122
    %s140 = sphi 0, %s140
    %s142 = sphi 0, %s140
    %s143 = sphi 0, %s142
    %s157 = sphi 0, %s143
    %s161 = sphi 0, %s161
    %s163 = sphi 0, %s161
    %s164 = sphi 0, %s163
    %s178 = sphi 0, %s164
    %s182 = sphi 0, %s182
    %s184 = sphi 0, %s182
    %s185 = sphi 0, %s184
    %s199 = sphi 0, %s185
    %s203 = sphi 0, %s203
    %s205 = sphi 0, %s203
    %s206 = sphi 0, %s205
    %s220 = sphi 0, %s206
    %s224 = sphi 0, %s224
    %s226 = sphi 0, %s224
    %s227 = sphi 0, %s226
    %s241 = sphi 0, %s227
    %s245 = sphi 0, %s245
    %s247 = sphi 0, %s245
    %s248 = sphi 0, %s247
    %s262 = sphi 0, %s248
    %s268 = sphi 0, %s270
    %s271 = sphi 0, %s268
    %s272 = sphi 0, %s271
    %s288 = sphi 0, %s272
  $region4: #{_forward_impl.4} parent=0 // loop_header_branch
    %20 = sbr.rel (%p18) target = $region8
  $region5: #{_forward_impl.4} parent=0 // loop_body
    %s22 = ssub.s32 %s17, 1
    %s23 = ssub.s32 %s17, 2
    %s24 = sadd.s32 %s17, 1
    %s25 = ssub.s32 %s17, %s24
    %p26 = scmp.eq.s32.totalorder %s25, 0
    %s28 = sadd.s32 %s27, 1
    %s29 = scalar_select %p26, %s27, %s28
    %p32 = pneg %p26
    %p33 = scmp.eq.s32.totalorder %s17, 3
    %p34 = por %p32, %p33
    %p35 = scmp.ne.s32.totalorder %s27, %s30
    %p36 = scmp.eq.s32.totalorder %s17, 0
    %p37 = por %p35, %p36
    %p38 = scmp.ne.s32.totalorder %s27, %s30
    %p39 = scmp.eq.s32.totalorder %s22, 3
    %p40 = por %p38, %p39
    %p41 = scmp.ne.s32.totalorder %s30, %s31
    %p42 = scmp.eq.s32.totalorder %s22, 0
    %p43 = por %p41, %p42
    %p44 = scmp.ne.s32.totalorder %s30, %s31
    %p45 = scmp.eq.s32.totalorder %s23, 3
    %p46 = por %p44, %p45
    %p48 = scmp.ne.s32.totalorder %s31, %s47
    %p49 = scmp.eq.s32.totalorder %s23, 0
    %p50 = por %p48, %p49
    %s51 = ssub.s32 %s17, %s24
    %p52 = scmp.eq.s32.totalorder %s51, 0
    %s54 = sadd.s32 %s53, 1
    %s55 = scalar_select %p52, %s53, %s54
    %p58 = pneg %p52
    %p59 = scmp.eq.s32.totalorder %s17, 3
    %p60 = por %p58, %p59
    %p61 = scmp.ne.s32.totalorder %s53, %s56
    %p62 = scmp.eq.s32.totalorder %s17, 0
    %p63 = por %p61, %p62
    %p64 = scmp.ne.s32.totalorder %s53, %s56
    %p65 = scmp.eq.s32.totalorder %s22, 3
    %p66 = por %p64, %p65
    %p67 = scmp.ne.s32.totalorder %s56, %s57
    %p68 = scmp.eq.s32.totalorder %s22, 0
    %p69 = por %p67, %p68
    %p70 = scmp.ne.s32.totalorder %s56, %s57
    %p71 = scmp.eq.s32.totalorder %s23, 3
    %p72 = por %p70, %p71
    %p74 = scmp.ne.s32.totalorder %s57, %s73
    %p75 = scmp.eq.s32.totalorder %s23, 0
    %p76 = por %p74, %p75
    %s78 = sadd.s32 %s77, 1
    %p81 = scmp.eq.s32.totalorder %s17, 3
    %p82 = scmp.ne.s32.totalorder %s77, %s79
    %p83 = scmp.eq.s32.totalorder %s17, 0
    %p84 = por %p82, %p83
    %p85 = scmp.ne.s32.totalorder %s77, %s79
    %p86 = scmp.eq.s32.totalorder %s22, 3
    %p87 = por %p85, %p86
    %p88 = scmp.ne.s32.totalorder %s79, %s80
    %p89 = scmp.eq.s32.totalorder %s22, 0
    %p90 = por %p88, %p89
    %p91 = scmp.ne.s32.totalorder %s79, %s80
    %p92 = scmp.eq.s32.totalorder %s23, 3
    %p93 = por %p91, %p92
    %p95 = scmp.ne.s32.totalorder %s80, %s94
    %p96 = scmp.eq.s32.totalorder %s23, 0
    %p97 = por %p95, %p96
    %s99 = sadd.s32 %s98, 1
    %p102 = scmp.eq.s32.totalorder %s17, 3
    %p103 = scmp.ne.s32.totalorder %s98, %s100
    %p104 = scmp.eq.s32.totalorder %s17, 0
    %p105 = por %p103, %p104
    %p106 = scmp.ne.s32.totalorder %s98, %s100
    %p107 = scmp.eq.s32.totalorder %s22, 3
    %p108 = por %p106, %p107
    %p109 = scmp.ne.s32.totalorder %s100, %s101
    %p110 = scmp.eq.s32.totalorder %s22, 0
    %p111 = por %p109, %p110
    %p112 = scmp.ne.s32.totalorder %s100, %s101
    %p113 = scmp.eq.s32.totalorder %s23, 3
    %p114 = por %p112, %p113
    %p116 = scmp.ne.s32.totalorder %s101, %s115
    %p117 = scmp.eq.s32.totalorder %s23, 0
    %p118 = por %p116, %p117
    %s120 = sadd.s32 %s119, 1
    %p123 = scmp.eq.s32.totalorder %s17, 3
    %p124 = scmp.ne.s32.totalorder %s119, %s121
    %p125 = scmp.eq.s32.totalorder %s17, 0
    %p126 = por %p124, %p125
    %p127 = scmp.ne.s32.totalorder %s119, %s121
    %p128 = scmp.eq.s32.totalorder %s22, 3
    %p129 = por %p127, %p128
    %p130 = scmp.ne.s32.totalorder %s121, %s122
    %p131 = scmp.eq.s32.totalorder %s22, 0
    %p132 = por %p130, %p131
    %p133 = scmp.ne.s32.totalorder %s121, %s122
    %p134 = scmp.eq.s32.totalorder %s23, 3
    %p135 = por %p133, %p134
    %p137 = scmp.ne.s32.totalorder %s122, %s136
    %p138 = scmp.eq.s32.totalorder %s23, 0
    %p139 = por %p137, %p138
    %s141 = sadd.s32 %s140, 1
    %p144 = scmp.eq.s32.totalorder %s17, 3
    %p145 = scmp.ne.s32.totalorder %s140, %s142
    %p146 = scmp.eq.s32.totalorder %s17, 0
    %p147 = por %p145, %p146
    %p148 = scmp.ne.s32.totalorder %s140, %s142
    %p149 = scmp.eq.s32.totalorder %s22, 3
    %p150 = por %p148, %p149
    %p151 = scmp.ne.s32.totalorder %s142, %s143
    %p152 = scmp.eq.s32.totalorder %s22, 0
    %p153 = por %p151, %p152
    %p154 = scmp.ne.s32.totalorder %s142, %s143
    %p155 = scmp.eq.s32.totalorder %s23, 3
    %p156 = por %p154, %p155
    %p158 = scmp.ne.s32.totalorder %s143, %s157
    %p159 = scmp.eq.s32.totalorder %s23, 0
    %p160 = por %p158, %p159
    %s162 = sadd.s32 %s161, 1
    %p165 = scmp.eq.s32.totalorder %s17, 3
    %p166 = scmp.ne.s32.totalorder %s161, %s163
    %p167 = scmp.eq.s32.totalorder %s17, 0
    %p168 = por %p166, %p167
    %p169 = scmp.ne.s32.totalorder %s161, %s163
    %p170 = scmp.eq.s32.totalorder %s22, 3
    %p171 = por %p169, %p170
    %p172 = scmp.ne.s32.totalorder %s163, %s164
    %p173 = scmp.eq.s32.totalorder %s22, 0
    %p174 = por %p172, %p173
    %p175 = scmp.ne.s32.totalorder %s163, %s164
    %p176 = scmp.eq.s32.totalorder %s23, 3
    %p177 = por %p175, %p176
    %p179 = scmp.ne.s32.totalorder %s164, %s178
    %p180 = scmp.eq.s32.totalorder %s23, 0
    %p181 = por %p179, %p180
    %s183 = sadd.s32 %s182, 1
    %p186 = scmp.eq.s32.totalorder %s17, 3
    %p187 = scmp.ne.s32.totalorder %s182, %s184
    %p188 = scmp.eq.s32.totalorder %s17, 0
    %p189 = por %p187, %p188
    %p190 = scmp.ne.s32.totalorder %s182, %s184
    %p191 = scmp.eq.s32.totalorder %s22, 3
    %p192 = por %p190, %p191
    %p193 = scmp.ne.s32.totalorder %s184, %s185
    %p194 = scmp.eq.s32.totalorder %s22, 0
    %p195 = por %p193, %p194
    %p196 = scmp.ne.s32.totalorder %s184, %s185
    %p197 = scmp.eq.s32.totalorder %s23, 3
    %p198 = por %p196, %p197
    %p200 = scmp.ne.s32.totalorder %s185, %s199
    %p201 = scmp.eq.s32.totalorder %s23, 0
    %p202 = por %p200, %p201
    %s204 = sadd.s32 %s203, 1
    %p207 = scmp.eq.s32.totalorder %s17, 3
    %p208 = scmp.ne.s32.totalorder %s203, %s205
    %p209 = scmp.eq.s32.totalorder %s17, 0
    %p210 = por %p208, %p209
    %p211 = scmp.ne.s32.totalorder %s203, %s205
    %p212 = scmp.eq.s32.totalorder %s22, 3
    %p213 = por %p211, %p212
    %p214 = scmp.ne.s32.totalorder %s205, %s206
    %p215 = scmp.eq.s32.totalorder %s22, 0
    %p216 = por %p214, %p215
    %p217 = scmp.ne.s32.totalorder %s205, %s206
    %p218 = scmp.eq.s32.totalorder %s23, 3
    %p219 = por %p217, %p218
    %p221 = scmp.ne.s32.totalorder %s206, %s220
    %p222 = scmp.eq.s32.totalorder %s23, 0
    %p223 = por %p221, %p222
    %s225 = sadd.s32 %s224, 1
    %p228 = scmp.eq.s32.totalorder %s17, 3
    %p229 = scmp.ne.s32.totalorder %s224, %s226
    %p230 = scmp.eq.s32.totalorder %s17, 0
    %p231 = por %p229, %p230
    %p232 = scmp.ne.s32.totalorder %s224, %s226
    %p233 = scmp.eq.s32.totalorder %s22, 3
    %p234 = por %p232, %p233
    %p235 = scmp.ne.s32.totalorder %s226, %s227
    %p236 = scmp.eq.s32.totalorder %s22, 0
    %p237 = por %p235, %p236
    %p238 = scmp.ne.s32.totalorder %s226, %s227
    %p239 = scmp.eq.s32.totalorder %s23, 3
    %p240 = por %p238, %p239
    %p242 = scmp.ne.s32.totalorder %s227, %s241
    %p243 = scmp.eq.s32.totalorder %s23, 0
    %p244 = por %p242, %p243
    %s246 = sadd.s32 %s245, 1
    %p249 = scmp.eq.s32.totalorder %s17, 3
    %p250 = scmp.ne.s32.totalorder %s245, %s247
    %p251 = scmp.eq.s32.totalorder %s17, 0
    %p252 = por %p250, %p251
    %p253 = scmp.ne.s32.totalorder %s245, %s247
    %p254 = scmp.eq.s32.totalorder %s22, 3
    %p255 = por %p253, %p254
    %p256 = scmp.ne.s32.totalorder %s247, %s248
    %p257 = scmp.eq.s32.totalorder %s22, 0
    %p258 = por %p256, %p257
    %p259 = scmp.ne.s32.totalorder %s247, %s248
    %p260 = scmp.eq.s32.totalorder %s23, 3
    %p261 = por %p259, %p260
    %p263 = scmp.ne.s32.totalorder %s248, %s262
    %p264 = scmp.eq.s32.totalorder %s23, 0
    %p265 = por %p263, %p264
    %s266 = ssub.s32 %s17, %s24
    %p267 = scmp.eq.s32.totalorder %s266, 0
    %s269 = sadd.s32 %s268, 1
    %s270 = scalar_select %p267, %s268, %s269
    %p273 = pneg %p267
    %p274 = scmp.eq.s32.totalorder %s17, 3
    %p275 = por %p273, %p274
    %p276 = scmp.ne.s32.totalorder %s268, %s271
    %p277 = scmp.eq.s32.totalorder %s17, 0
    %p278 = por %p276, %p277
    %p279 = scmp.ne.s32.totalorder %s268, %s271
    %p280 = scmp.eq.s32.totalorder %s22, 3
    %p281 = por %p279, %p280
    %p282 = scmp.ne.s32.totalorder %s271, %s272
    %p283 = scmp.eq.s32.totalorder %s22, 0
    %p284 = por %p282, %p283
    %p285 = scmp.ne.s32.totalorder %s271, %s272
    %p286 = scmp.eq.s32.totalorder %s23, 3
    %p287 = por %p285, %p286
    %p289 = scmp.ne.s32.totalorder %s272, %s288
    %p290 = scmp.eq.s32.totalorder %s23, 0
    %p291 = por %p289, %p290
    %p292 = scmp.le.s32.totalorder 1, %s17
    %p293 = scmp.lt.s32.totalorder %s17, 5
    %p294 = pnand %p292, %p293
    %p295 = pneg %p294
    // Predicated region
    $region9: #{_forward_impl.4} parent=5 // pred_check
      _
    $region10: #{_forward_impl.4} parent=5 // pred_check_branch
      %297 = sbr.rel (%p294) target = $region12
    $region11: #{_forward_impl.4} parent=5 // pred_region
      %s298 = ssub.s32 %s17, 1
      // Predicated region
      $region13: #{_forward_impl.4} parent=11 // pred_check
        %p299 = pneg %p90
      $region14: #{_forward_impl.4} parent=11 // pred_check_branch
        %301 = sbr.rel (%p299) target = $region16
      $region15: #{_forward_impl.4} parent=11 // pred_region
        _
      $region16: #{_forward_impl.4} parent=11 // pred_fallthru
        _
      // Predicated region
      $region17: #{_forward_impl.4} parent=11 // pred_check
        %p302 = pneg %p111
      $region18: #{_forward_impl.4} parent=11 // pred_check_branch
        %304 = sbr.rel (%p302) target = $region20
      $region19: #{_forward_impl.4} parent=11 // pred_region
        _
      $region20: #{_forward_impl.4} parent=11 // pred_fallthru
        _
      // Predicated region
      $region21: #{_forward_impl.4} parent=11 // pred_check
        %p305 = pneg %p132
      $region22: #{_forward_impl.4} parent=11 // pred_check_branch
        %307 = sbr.rel (%p305) target = $region24
      $region23: #{_forward_impl.4} parent=11 // pred_region
        _
      $region24: #{_forward_impl.4} parent=11 // pred_fallthru
        _
      // Predicated region
      $region25: #{_forward_impl.4} parent=11 // pred_check
        %p308 = pneg %p153
      $region26: #{_forward_impl.4} parent=11 // pred_check_branch
        %310 = sbr.rel (%p308) target = $region28
      $region27: #{_forward_impl.4} parent=11 // pred_region
        _
      $region28: #{_forward_impl.4} parent=11 // pred_fallthru
        _
      // Predicated region
      $region29: #{_forward_impl.4} parent=11 // pred_check
        %p311 = pneg %p174
      $region30: #{_forward_impl.4} parent=11 // pred_check_branch
        %313 = sbr.rel (%p311) target = $region32
      $region31: #{_forward_impl.4} parent=11 // pred_region
        _
      $region32: #{_forward_impl.4} parent=11 // pred_fallthru
        _
      // Predicated region
      $region33: #{_forward_impl.4} parent=11 // pred_check
        %p314 = pneg %p195
      $region34: #{_forward_impl.4} parent=11 // pred_check_branch
        %316 = sbr.rel (%p314) target = $region36
      $region35: #{_forward_impl.4} parent=11 // pred_region
        _
      $region36: #{_forward_impl.4} parent=11 // pred_fallthru
        _
      // Predicated region
      $region37: #{_forward_impl.4} parent=11 // pred_check
        %p317 = pneg %p216
      $region38: #{_forward_impl.4} parent=11 // pred_check_branch
        %319 = sbr.rel (%p317) target = $region40
      $region39: #{_forward_impl.4} parent=11 // pred_region
        _
      $region40: #{_forward_impl.4} parent=11 // pred_fallthru
        _
      // Predicated region
      $region41: #{_forward_impl.4} parent=11 // pred_check
        %p320 = pneg %p237
      $region42: #{_forward_impl.4} parent=11 // pred_check_branch
        %322 = sbr.rel (%p320) target = $region44
      $region43: #{_forward_impl.4} parent=11 // pred_region
        _
      $region44: #{_forward_impl.4} parent=11 // pred_fallthru
        _
      // Predicated region
      $region45: #{_forward_impl.4} parent=11 // pred_check
        %p323 = pneg %p258
      $region46: #{_forward_impl.4} parent=11 // pred_check_branch
        %325 = sbr.rel (%p323) target = $region48
      $region47: #{_forward_impl.4} parent=11 // pred_region
        _
      $region48: #{_forward_impl.4} parent=11 // pred_fallthru
        _
    $region12: #{_forward_impl.4} parent=5 // pred_fallthru
      _
    %p326 = scmp.lt.s32.totalorder %s17, 4
    // Predicated region
    $region49: #{_forward_impl.4} parent=5 // pred_check
      %p327 = pneg %p326
    $region50: #{_forward_impl.4} parent=5 // pred_check_branch
      %329 = sbr.rel (%p327) target = $region52
    $region51: #{_forward_impl.4} parent=5 // pred_region
      // Predicated region
      $region53: #{_forward_impl.4} parent=51 // pred_check
        %p330 = pneg %p37
      $region54: #{_forward_impl.4} parent=51 // pred_check_branch
        %332 = sbr.rel (%p330) target = $region56
      $region55: #{_forward_impl.4} parent=51 // pred_region
        %p333 = scmp.lt.s32.totalorder %s17, 3
        %s334 = scalar_select %p333, %s17, 3
        %s335 = smul.addr %s334, 8
        %s336 = scalar_lea.vmem %s0, %s335
      $region56: #{_forward_impl.4} parent=51 // pred_fallthru
        _
      // Predicated region
      $region57: #{_forward_impl.4} parent=51 // pred_check
        %p337 = pneg %p63
      $region58: #{_forward_impl.4} parent=51 // pred_check_branch
        %339 = sbr.rel (%p337) target = $region60
      $region59: #{_forward_impl.4} parent=51 // pred_region
        %p340 = scmp.lt.s32.totalorder %s17, 3
        %s341 = scalar_select %p340, %s17, 3
        %s342 = scalar_lea.vmem %s1, %s341
      $region60: #{_forward_impl.4} parent=51 // pred_fallthru
        _
    $region52: #{_forward_impl.4} parent=5 // pred_fallthru
      _
    %p343 = scmp.le.s32.totalorder 1, %s17
    %p344 = scmp.lt.s32.totalorder %s17, 5
    %p345 = pnand %p343, %p344
    %p346 = pneg %p345
    // Predicated region
    $region61: #{_forward_impl.4} parent=5 // pred_check
      _
    $region62: #{_forward_impl.4} parent=5 // pred_check_branch
      %348 = sbr.rel (%p345) target = $region64
    $region63: #{_forward_impl.4} parent=5 // pred_region
      %s349 = ssub.s32 %s17, 1
      %p350 = scmp.lt.s32.totalorder %s22, 3
      %s351 = scalar_select %p350, %s22, 3
      %s352 = smul.addr %s351, 8
      %s353 = scalar_lea.vmem %s0, %s352
      %p354 = pneg %p43
      %p355 = pneg %p40
      %p356 = scmp.lt.s32.totalorder %s22, 3
      %s357 = scalar_select %p356, %s22, 3
      %s358 = scalar_lea.vmem %s1, %s357
      %p359 = pneg %p69
      %p360 = pneg %p66
      %p361 = pneg %p90
      %p362 = pneg %p87
      %p363 = pneg %p111
      %p364 = pneg %p108
      %p365 = pneg %p132
      %p366 = pneg %p129
      %p367 = pneg %p153
      %p368 = pneg %p150
      %p369 = pneg %p174
      %p370 = pneg %p171
      %p371 = pneg %p195
      %p372 = pneg %p192
      %p373 = pneg %p216
      %p374 = pneg %p213
      %p375 = pneg %p237
      %p376 = pneg %p234
      %p377 = pneg %p258
      %p378 = pneg %p255
      %p379 = pneg %p284
      %p380 = pneg %p281
      %p381 = scmp.lt.s32.totalorder %s22, 3
      %s382 = scalar_select %p381, %s22, 3
      %s383 = smul.addr %s382, 8
      %s384 = scalar_lea.vmem %s11, %s383
      %p385 = scmp.lt.s32.totalorder %s22, 3
      %s386 = scalar_select %p385, %s22, 3
      %s387 = smul.addr %s386, 8
      %s388 = scalar_lea.vmem %s0, %s387
      %p389 = scmp.lt.s32.totalorder %s22, 3
      %s390 = scalar_select %p389, %s22, 3
      %s391 = scalar_lea.vmem %s1, %s390
      %p392 = scmp.lt.s32.totalorder %s22, 3
      %s393 = scalar_select %p392, %s22, 3
      %s394 = smul.addr %s393, 8
      %s395 = scalar_lea.vmem %s11, %s394
      %v396 = vld [vmem:[%s388] sm:$0xff]
      %v397 = vld [vmem:[%s391] sm:$0x1]
      %v398 = vsub.f32 1.0, %v397
      %v399 = vmul.f32 %v398, -1e+09
      %v400 = vld [vmem:[%s2] sm:$0x3f]
      %vm401 = vcmask 261120
      %v402 = vsel %vm401, %v396, 0.0
      %403 = vadd.xlane.f32.xlu0 %v402
      %v404 = vpop.xlane.xlu0 %403
      %v405 = vrcp.pop 32.0
      %v406 = vmul.f32 32.0, %v405
      %v407 = vsub.f32 1.0, %v406
      %v408 = vmul.f32 %v405, %v407
      %v409 = vadd.f32 %v405, %v408
      %vm410 = vweird.f32 %v405
      %v411 = vsel %vm410, %v405, %v409
      %v412 = vmul.f32 %v404, %v411
      %v413 = vsub.f32 %v396, %v412
      %v414 = vmul.f32 %v413, %v413
      %v415 = vsel %vm401, %v414, 0.0
      %416 = vadd.xlane.f32.xlu0 %v415
      %v417 = vpop.xlane.xlu0 %416
      %v418 = vmul.f32 %v417, %v411
      %v419 = vadd.f32 %v418, 1e-06
      %v420 = vrsqrt.pop %v419
      %v421 = vmul.f32 %v420, %v419
      %v422 = vmul.f32 %v421, %v420
      %v423 = vmul.f32 0.5, %v422
      %v424 = vsub.f32 1.5, %v423
      %v425 = vmul.f32 %v420, %v424
      %vm426 = vweird.f32 %v419
      %vm427 = vweird.f32 %v420
      %vm428 = vmor %vm426, %vm427
      %v429 = vsel %vm428, %v420, %v425
      %v430 = vmul.f32 %v413, %v429
      %v431 = vperm.slane %v400, 0
      %v432 = vmul.f32 %v430, %v431
      %v433 = vperm.slane %v400, 1
      %v434 = vadd.f32 %v432, %v433
      %v435 = vld [vmem:[%s3] sm:$0xff]
      %v436 = vld [vmem:[%s3 + $0x8] sm:$0xff]
      %v437 = vld [vmem:[%s3 + $0x10] sm:$0xff]
      %v438 = vld [vmem:[%s3 + $0x18] sm:$0xff]
      %v439 = vld [vmem:[%s4] sm:$0x1]
      %v440 = vld [vmem:[%s5] sm:$0xff]
      %v441 = vld [vmem:[%s5 + $0x8] sm:$0xff]
      %v442 = vld [vmem:[%s5 + $0x10] sm:$0xff]
      %v443 = vld [vmem:[%s5 + $0x18] sm:$0xff]
      %v444 = vld [vmem:[%s6] sm:$0x1]
      %v446 = vperm.slane %v439, 0
      %v449 = vsel %vm401, %v434, 0
      %451 = vmatpush.msra.mxu0 0.0
      %452 = vmatpush.msra.mxu0 0.0
      %453 = vmatpush.msra.mxu0 0.0
      %454 = vmatpush.msra.mxu0 0.0
      %455 = vmatpush.msra.mxu0 0.0
      %456 = vmatpush.msra.mxu0 0.0
      %457 = vmatpush.msra.mxu0 0.0
      %458 = vmatpush.msra.mxu0 0.0
      %459 = vmatpush.msra.mxu0 0.0
      %460 = vmatpush.msra.mxu0 0.0
      %461 = vmatpush.msra.mxu0 0.0
      %462 = vmatpush.msra.mxu0 0.0
      %463 = vmatpush.msra.mxu0 %v438
      %464 = vmatpush.msra.mxu0 %v437
      %465 = vmatpush.msra.mxu0 %v436
      %466 = vmatpush.msra.mxu0 %v435
      %467 = vmatmul.f32.gmra.mxu0 %v449
      %v468 = vpop.f32.mrf.mxu0
      %v469 = vadd.f32 %v446, %v468
      %470 = vdwg.mxu0
      %v472 = vperm.slane %v444, 0
      %v474 = vadd.f32 %v472, 0.0
      %476 = vrot.lane.b32.xlu0 %v469, 96
      %v477 = vpop.permute.xlu0 %476
      %vm478 = vcmask 64512
      %v479 = vsel %vm478, %v469, 0
      %v481 = vsel %vm478, %v477, 0
      %483 = vmatpush.xpose.msra.mxu0 0.0
      %484 = vmatpush.xpose.msra.mxu0 0.0
      %485 = vmatpush.xpose.msra.mxu0 0.0
      %486 = vmatpush.xpose.msra.mxu0 0.0
      %487 = vmatpush.xpose.msra.mxu0 0.0
      %488 = vmatpush.xpose.msra.mxu0 0.0
      %489 = vmatpush.xpose.msra.mxu0 0.0
      %490 = vmatpush.xpose.msra.mxu0 0.0
      %491 = vmatpush.xpose.msra.mxu0 0.0
      %492 = vmatpush.xpose.msra.mxu0 0.0
      %493 = vmatpush.xpose.msra.mxu0 0.0
      %494 = vmatpush.xpose.msra.mxu0 0.0
      %495 = vmatpush.xpose.msra.mxu0 0.0
      %496 = vmatpush.xpose.msra.mxu0 0.0
      %497 = vmatpush.xpose.msra.mxu0 0.0
      %498 = vmatpush.xpose.msra.mxu0 %v481
      %499 = vmatmul.f32.gmra.mxu0 %v479
      %v500 = vpop.f32.mrf.mxu0
      %v501 = vadd.f32 0.0, %v500
      %502 = vdwg.mxu0
      %v503 = vmul.f32 %v501, 0.35355338
      %v505 = vperm.slane %v399, 0
      %v507 = vadd.f32 %v503, %v505
      %v508 = vsel %vm478, %v507, -inf
      %509 = vmax.xlane.f32.xlu0 %v508
      %v510 = vpop.xlane.xlu0 %509
      %v511 = vsub.f32 %v507, %v510
      %v512 = vmul.f32 %v511, 1.442695
      %v513 = vpow.pop %v512
      %v514 = vsel %vm478, %v513, 0.0
      %515 = vadd.xlane.f32.xlu0 %v514
      %v516 = vpop.xlane.xlu0 %515
      %v517 = vrcp.pop %v516
      %v518 = vmul.f32 %v513, %v517
      %519 = vrot.lane.b32.xlu0 %v469, 64
      %v520 = vpop.permute.xlu0 %519
      %v523 = vsel %vm478, %v518, 0
      %525 = vmatpush.msra.mxu0 0.0
      %526 = vmatpush.msra.mxu0 0.0
      %527 = vmatpush.msra.mxu0 0.0
      %528 = vmatpush.msra.mxu0 0.0
      %529 = vmatpush.msra.mxu0 0.0
      %530 = vmatpush.msra.mxu0 0.0
      %531 = vmatpush.msra.mxu0 0.0
      %532 = vmatpush.msra.mxu0 0.0
      %533 = vmatpush.msra.mxu0 0.0
      %534 = vmatpush.msra.mxu0 0.0
      %535 = vmatpush.msra.mxu0 0.0
      %536 = vmatpush.msra.mxu0 0.0
      %537 = vmatpush.msra.mxu0 0.0
      %538 = vmatpush.msra.mxu0 0.0
      %539 = vmatpush.msra.mxu0 0.0
      %540 = vmatpush.msra.mxu0 %v520
      %541 = vmatmul.f32.gmra.mxu0 %v523
      %v542 = vpop.f32.mrf.mxu0
      %v543 = vadd.f32 0.0, %v542
      %544 = vdwg.mxu0
      %v546 = vsel %vm478, %v543, 0
      %548 = vmatpush.msra.mxu0 0.0
      %549 = vmatpush.msra.mxu0 0.0
      %550 = vmatpush.msra.mxu0 0.0
      %551 = vmatpush.msra.mxu0 0.0
      %552 = vmatpush.msra.mxu0 0.0
      %553 = vmatpush.msra.mxu0 0.0
      %554 = vmatpush.msra.mxu0 0.0
      %555 = vmatpush.msra.mxu0 0.0
      %556 = vmatpush.msra.mxu0 0.0
      %557 = vmatpush.msra.mxu0 0.0
      %558 = vmatpush.msra.mxu0 0.0
      %559 = vmatpush.msra.mxu0 0.0
      %560 = vmatpush.msra.mxu0 0.0
      %561 = vmatpush.msra.mxu0 0.0
      %562 = vmatpush.msra.mxu0 0.0
      %563 = vmatpush.msra.mxu0 %v440
      %564 = vmatmul.f32.gmra.mxu0 %v546
      %v565 = vpop.f32.mrf.mxu0
      %v566 = vadd.f32 0.0, %v565
      %567 = vdwg.mxu0
      %v568 = vadd.f32 %v474, %v566
      %569 = vrot.lane.b32.xlu0 %v469, 120
      %v570 = vpop.permute.xlu0 %569
      %571 = vrot.lane.b32.xlu0 %v469, 88
      %v572 = vpop.permute.xlu0 %571
      %v573 = vsel %vm478, %v570, 0
      %v575 = vsel %vm478, %v572, 0
      %577 = vmatpush.xpose.msra.mxu0 0.0
      %578 = vmatpush.xpose.msra.mxu0 0.0
      %579 = vmatpush.xpose.msra.mxu0 0.0
      %580 = vmatpush.xpose.msra.mxu0 0.0
      %581 = vmatpush.xpose.msra.mxu0 0.0
      %582 = vmatpush.xpose.msra.mxu0 0.0
      %583 = vmatpush.xpose.msra.mxu0 0.0
      %584 = vmatpush.xpose.msra.mxu0 0.0
      %585 = vmatpush.xpose.msra.mxu0 0.0
      %586 = vmatpush.xpose.msra.mxu0 0.0
      %587 = vmatpush.xpose.msra.mxu0 0.0
      %588 = vmatpush.xpose.msra.mxu0 0.0
      %589 = vmatpush.xpose.msra.mxu0 0.0
      %590 = vmatpush.xpose.msra.mxu0 0.0
      %591 = vmatpush.xpose.msra.mxu0 0.0
      %592 = vmatpush.xpose.msra.mxu0 %v575
      %593 = vmatmul.f32.gmra.mxu0 %v573
      %v594 = vpop.f32.mrf.mxu0
      %v595 = vadd.f32 0.0, %v594
      %596 = vdwg.mxu0
      %v597 = vmul.f32 %v595, 0.35355338
      %v598 = vadd.f32 %v597, %v505
      %v599 = vsel %vm478, %v598, -inf
      %600 = vmax.xlane.f32.xlu0 %v599
      %v601 = vpop.xlane.xlu0 %600
      %v602 = vsub.f32 %v598, %v601
      %v603 = vmul.f32 %v602, 1.442695
      %v604 = vpow.pop %v603
      %v605 = vsel %vm478, %v604, 0.0
      %606 = vadd.xlane.f32.xlu0 %v605
      %v607 = vpop.xlane.xlu0 %606
      %v608 = vrcp.pop %v607
      %v609 = vmul.f32 %v604, %v608
      %610 = vrot.lane.b32.xlu0 %v469, 56
      %v611 = vpop.permute.xlu0 %610
      %v614 = vsel %vm478, %v609, 0
      %616 = vmatpush.msra.mxu0 0.0
      %617 = vmatpush.msra.mxu0 0.0
      %618 = vmatpush.msra.mxu0 0.0
      %619 = vmatpush.msra.mxu0 0.0
      %620 = vmatpush.msra.mxu0 0.0
      %621 = vmatpush.msra.mxu0 0.0
      %622 = vmatpush.msra.mxu0 0.0
      %623 = vmatpush.msra.mxu0 0.0
      %624 = vmatpush.msra.mxu0 0.0
      %625 = vmatpush.msra.mxu0 0.0
      %626 = vmatpush.msra.mxu0 0.0
      %627 = vmatpush.msra.mxu0 0.0
      %628 = vmatpush.msra.mxu0 0.0
      %629 = vmatpush.msra.mxu0 0.0
      %630 = vmatpush.msra.mxu0 0.0
      %631 = vmatpush.msra.mxu0 %v611
      %632 = vmatmul.f32.gmra.mxu0 %v614
      %v633 = vpop.f32.mrf.mxu0
      %v634 = vadd.f32 0.0, %v633
      %635 = vdwg.mxu0
      %v637 = vsel %vm478, %v634, 0
      %639 = vmatpush.msra.mxu0 0.0
      %640 = vmatpush.msra.mxu0 0.0
      %641 = vmatpush.msra.mxu0 0.0
      %642 = vmatpush.msra.mxu0 0.0
      %643 = vmatpush.msra.mxu0 0.0
      %644 = vmatpush.msra.mxu0 0.0
      %645 = vmatpush.msra.mxu0 0.0
      %646 = vmatpush.msra.mxu0 0.0
      %647 = vmatpush.msra.mxu0 0.0
      %648 = vmatpush.msra.mxu0 0.0
      %649 = vmatpush.msra.mxu0 0.0
      %650 = vmatpush.msra.mxu0 0.0
      %651 = vmatpush.msra.mxu0 0.0
      %652 = vmatpush.msra.mxu0 0.0
      %653 = vmatpush.msra.mxu0 0.0
      %654 = vmatpush.msra.mxu0 %v441
      %655 = vmatmul.f32.gmra.mxu0 %v637
      %v656 = vpop.f32.mrf.mxu0
      %v657 = vadd.f32 0.0, %v656
      %658 = vdwg.mxu0
      %v659 = vadd.f32 %v568, %v657
      %660 = vrot.lane.b32.xlu0 %v469, 112
      %v661 = vpop.permute.xlu0 %660
      %662 = vrot.lane.b32.xlu0 %v469, 80
      %v663 = vpop.permute.xlu0 %662
      %v664 = vsel %vm478, %v661, 0
      %v666 = vsel %vm478, %v663, 0
      %668 = vmatpush.xpose.msra.mxu0 0.0
      %669 = vmatpush.xpose.msra.mxu0 0.0
      %670 = vmatpush.xpose.msra.mxu0 0.0
      %671 = vmatpush.xpose.msra.mxu0 0.0
      %672 = vmatpush.xpose.msra.mxu0 0.0
      %673 = vmatpush.xpose.msra.mxu0 0.0
      %674 = vmatpush.xpose.msra.mxu0 0.0
      %675 = vmatpush.xpose.msra.mxu0 0.0
      %676 = vmatpush.xpose.msra.mxu0 0.0
      %677 = vmatpush.xpose.msra.mxu0 0.0
      %678 = vmatpush.xpose.msra.mxu0 0.0
      %679 = vmatpush.xpose.msra.mxu0 0.0
      %680 = vmatpush.xpose.msra.mxu0 0.0
      %681 = vmatpush.xpose.msra.mxu0 0.0
      %682 = vmatpush.xpose.msra.mxu0 0.0
      %683 = vmatpush.xpose.msra.mxu0 %v666
      %684 = vmatmul.f32.gmra.mxu0 %v664
      %v685 = vpop.f32.mrf.mxu0
      %v686 = vadd.f32 0.0, %v685
      %687 = vdwg.mxu0
      %v688 = vmul.f32 %v686, 0.35355338
      %v689 = vadd.f32 %v688, %v505
      %v690 = vsel %vm478, %v689, -inf
      %691 = vmax.xlane.f32.xlu0 %v690
      %v692 = vpop.xlane.xlu0 %691
      %v693 = vsub.f32 %v689, %v692
      %v694 = vmul.f32 %v693, 1.442695
      %v695 = vpow.pop %v694
      %v696 = vsel %vm478, %v695, 0.0
      %697 = vadd.xlane.f32.xlu0 %v696
      %v698 = vpop.xlane.xlu0 %697
      %v699 = vrcp.pop %v698
      %v700 = vmul.f32 %v695, %v699
      %701 = vrot.lane.b32.xlu0 %v469, 48
      %v702 = vpop.permute.xlu0 %701
      %v705 = vsel %vm478, %v700, 0
      %707 = vmatpush.msra.mxu0 0.0
      %708 = vmatpush.msra.mxu0 0.0
      %709 = vmatpush.msra.mxu0 0.0
      %710 = vmatpush.msra.mxu0 0.0
      %711 = vmatpush.msra.mxu0 0.0
      %712 = vmatpush.msra.mxu0 0.0
      %713 = vmatpush.msra.mxu0 0.0
      %714 = vmatpush.msra.mxu0 0.0
      %715 = vmatpush.msra.mxu0 0.0
      %716 = vmatpush.msra.mxu0 0.0
      %717 = vmatpush.msra.mxu0 0.0
      %718 = vmatpush.msra.mxu0 0.0
      %719 = vmatpush.msra.mxu0 0.0
      %720 = vmatpush.msra.mxu0 0.0
      %721 = vmatpush.msra.mxu0 0.0
      %722 = vmatpush.msra.mxu0 %v702
      %723 = vmatmul.f32.gmra.mxu0 %v705
      %v724 = vpop.f32.mrf.mxu0
      %v725 = vadd.f32 0.0, %v724
      %726 = vdwg.mxu0
      %v728 = vsel %vm478, %v725, 0
      %730 = vmatpush.msra.mxu0 0.0
      %731 = vmatpush.msra.mxu0 0.0
      %732 = vmatpush.msra.mxu0 0.0
      %733 = vmatpush.msra.mxu0 0.0
      %734 = vmatpush.msra.mxu0 0.0
      %735 = vmatpush.msra.mxu0 0.0
      %736 = vmatpush.msra.mxu0 0.0
      %737 = vmatpush.msra.mxu0 0.0
      %738 = vmatpush.msra.mxu0 0.0
      %739 = vmatpush.msra.mxu0 0.0
      %740 = vmatpush.msra.mxu0 0.0
      %741 = vmatpush.msra.mxu0 0.0
      %742 = vmatpush.msra.mxu0 0.0
      %743 = vmatpush.msra.mxu0 0.0
      %744 = vmatpush.msra.mxu0 0.0
      %745 = vmatpush.msra.mxu0 %v442
      %746 = vmatmul.f32.gmra.mxu0 %v728
      %v747 = vpop.f32.mrf.mxu0
      %v748 = vadd.f32 0.0, %v747
      %749 = vdwg.mxu0
      %v750 = vadd.f32 %v659, %v748
      %751 = vrot.lane.b32.xlu0 %v469, 104
      %v752 = vpop.permute.xlu0 %751
      %753 = vrot.lane.b32.xlu0 %v469, 72
      %v754 = vpop.permute.xlu0 %753
      %v755 = vsel %vm478, %v752, 0
      %v757 = vsel %vm478, %v754, 0
      %759 = vmatpush.xpose.msra.mxu0 0.0
      %760 = vmatpush.xpose.msra.mxu0 0.0
      %761 = vmatpush.xpose.msra.mxu0 0.0
      %762 = vmatpush.xpose.msra.mxu0 0.0
      %763 = vmatpush.xpose.msra.mxu0 0.0
      %764 = vmatpush.xpose.msra.mxu0 0.0
      %765 = vmatpush.xpose.msra.mxu0 0.0
      %766 = vmatpush.xpose.msra.mxu0 0.0
      %767 = vmatpush.xpose.msra.mxu0 0.0
      %768 = vmatpush.xpose.msra.mxu0 0.0
      %769 = vmatpush.xpose.msra.mxu0 0.0
      %770 = vmatpush.xpose.msra.mxu0 0.0
      %771 = vmatpush.xpose.msra.mxu0 0.0
      %772 = vmatpush.xpose.msra.mxu0 0.0
      %773 = vmatpush.xpose.msra.mxu0 0.0
      %774 = vmatpush.xpose.msra.mxu0 %v757
      %775 = vmatmul.f32.gmra.mxu0 %v755
      %v776 = vpop.f32.mrf.mxu0
      %v777 = vadd.f32 0.0, %v776
      %778 = vdwg.mxu0
      %v779 = vmul.f32 %v777, 0.35355338
      %v780 = vadd.f32 %v779, %v505
      %v781 = vsel %vm478, %v780, -inf
      %782 = vmax.xlane.f32.xlu0 %v781
      %v783 = vpop.xlane.xlu0 %782
      %v784 = vsub.f32 %v780, %v783
      %v785 = vmul.f32 %v784, 1.442695
      %v786 = vpow.pop %v785
      %v787 = vsel %vm478, %v786, 0.0
      %788 = vadd.xlane.f32.xlu0 %v787
      %v789 = vpop.xlane.xlu0 %788
      %v790 = vrcp.pop %v789
      %v791 = vmul.f32 %v786, %v790
      %792 = vrot.lane.b32.xlu0 %v469, 40
      %v793 = vpop.permute.xlu0 %792
      %v796 = vsel %vm478, %v791, 0
      %798 = vmatpush.msra.mxu0 0.0
      %799 = vmatpush.msra.mxu0 0.0
      %800 = vmatpush.msra.mxu0 0.0
      %801 = vmatpush.msra.mxu0 0.0
      %802 = vmatpush.msra.mxu0 0.0
      %803 = vmatpush.msra.mxu0 0.0
      %804 = vmatpush.msra.mxu0 0.0
      %805 = vmatpush.msra.mxu0 0.0
      %806 = vmatpush.msra.mxu0 0.0
      %807 = vmatpush.msra.mxu0 0.0
      %808 = vmatpush.msra.mxu0 0.0
      %809 = vmatpush.msra.mxu0 0.0
      %810 = vmatpush.msra.mxu0 0.0
      %811 = vmatpush.msra.mxu0 0.0
      %812 = vmatpush.msra.mxu0 0.0
      %813 = vmatpush.msra.mxu0 %v793
      %814 = vmatmul.f32.gmra.mxu0 %v796
      %v815 = vpop.f32.mrf.mxu0
      %v816 = vadd.f32 0.0, %v815
      %817 = vdwg.mxu0
      %v819 = vsel %vm478, %v816, 0
      %821 = vmatpush.msra.mxu0 0.0
      %822 = vmatpush.msra.mxu0 0.0
      %823 = vmatpush.msra.mxu0 0.0
      %824 = vmatpush.msra.mxu0 0.0
      %825 = vmatpush.msra.mxu0 0.0
      %826 = vmatpush.msra.mxu0 0.0
      %827 = vmatpush.msra.mxu0 0.0
      %828 = vmatpush.msra.mxu0 0.0
      %829 = vmatpush.msra.mxu0 0.0
      %830 = vmatpush.msra.mxu0 0.0
      %831 = vmatpush.msra.mxu0 0.0
      %832 = vmatpush.msra.mxu0 0.0
      %833 = vmatpush.msra.mxu0 0.0
      %834 = vmatpush.msra.mxu0 0.0
      %835 = vmatpush.msra.mxu0 0.0
      %836 = vmatpush.msra.mxu0 %v443
      %837 = vmatmul.f32.gmra.mxu0 %v819
      %v838 = vpop.f32.mrf.mxu0
      %v839 = vadd.f32 0.0, %v838
      %840 = vdwg.mxu0
      %v841 = vadd.f32 %v750, %v839
      %v842 = vadd.f32 %v434, %v841
      %v843 = vsel %vm401, %v842, 0.0
      %844 = vadd.xlane.f32.xlu0 %v843
      %v845 = vpop.xlane.xlu0 %844
      %v846 = vmul.f32 %v845, %v411
      %v847 = vsub.f32 %v842, %v846
      %v848 = vmul.f32 %v847, %v847
      %v849 = vsel %vm401, %v848, 0.0
      %850 = vadd.xlane.f32.xlu0 %v849
      %v851 = vpop.xlane.xlu0 %850
      %v852 = vmul.f32 %v851, %v411
      %v853 = vadd.f32 %v852, 1e-06
      %v854 = vrsqrt.pop %v853
      %v855 = vmul.f32 %v854, %v853
      %v856 = vmul.f32 %v855, %v854
      %v857 = vmul.f32 0.5, %v856
      %v858 = vsub.f32 1.5, %v857
      %v859 = vmul.f32 %v854, %v858
      %vm860 = vweird.f32 %v853
      %vm861 = vweird.f32 %v854
      %vm862 = vmor %vm860, %vm861
      %v863 = vsel %vm862, %v854, %v859
      %v864 = vmul.f32 %v847, %v863
      %v865 = vperm.slane %v400, 2
      %v866 = vmul.f32 %v864, %v865
      %v867 = vperm.slane %v400, 3
      %v868 = vadd.f32 %v866, %v867
      %v869 = vld [vmem:[%s7] sm:$0xff]
      %v870 = vld [vmem:[%s7 + $0x8] sm:$0xff]
      %v871 = vld [vmem:[%s7 + $0x10] sm:$0xff]
      %v872 = vld [vmem:[%s7 + $0x18] sm:$0xff]
      %v873 = vld [vmem:[%s8] sm:$0x1]
      %v874 = vld [vmem:[%s9] sm:$0xff]
      %v875 = vld [vmem:[%s9 + $0x8] sm:$0xff]
      %v876 = vld [vmem:[%s9 + $0x10] sm:$0xff]
      %v877 = vld [vmem:[%s9 + $0x18] sm:$0xff]
      %v878 = vld [vmem:[%s9 + $0x20] sm:$0xff]
      %v879 = vld [vmem:[%s9 + $0x28] sm:$0xff]
      %v880 = vld [vmem:[%s9 + $0x30] sm:$0xff]
      %v881 = vld [vmem:[%s9 + $0x38] sm:$0xff]
      %v882 = vld [vmem:[%s10] sm:$0x1]
      %v884 = vperm.slane %v873, 0
      %v887 = vsel %vm401, %v868, 0
      %889 = vmatpush.msra.mxu0 0.0
      %890 = vmatpush.msra.mxu0 0.0
      %891 = vmatpush.msra.mxu0 0.0
      %892 = vmatpush.msra.mxu0 0.0
      %893 = vmatpush.msra.mxu0 0.0
      %894 = vmatpush.msra.mxu0 0.0
      %895 = vmatpush.msra.mxu0 0.0
      %896 = vmatpush.msra.mxu0 0.0
      %897 = vmatpush.msra.mxu0 0.0
      %898 = vmatpush.msra.mxu0 0.0
      %899 = vmatpush.msra.mxu0 0.0
      %900 = vmatpush.msra.mxu0 0.0
      %901 = vmatpush.msra.mxu0 %v872
      %902 = vmatpush.msra.mxu0 %v871
      %903 = vmatpush.msra.mxu0 %v870
      %904 = vmatpush.msra.mxu0 %v869
      %905 = vmatmul.f32.gmra.mxu0 %v887
      %v906 = vpop.f32.mrf.mxu0
      %v907 = vadd.f32 %v884, %v906
      %908 = vdwg.mxu0
      %v909 = vmul.f32 %v907, %v907
      %v910 = vmul.f32 %v907, %v909
      %v911 = vmul.f32 %v910, 0.044715
      %v912 = vadd.f32 %v907, %v911
      %v913 = vmul.f32 %v912, 0.7978846
      %v914 = vtanh.pop %v913
      %v915 = vadd.f32 %v914, 1.0
      %v916 = vmul.f32 %v915, 0.5
      %v917 = vmul.f32 %v907, %v916
      %v919 = vperm.slane %v882, 0
      %vm921 = vcmask 523264
      %v923 = vsel %vm921, %v917, 0
      %925 = vmatpush.msra.mxu0 0.0
      %926 = vmatpush.msra.mxu0 0.0
      %927 = vmatpush.msra.mxu0 0.0
      %928 = vmatpush.msra.mxu0 0.0
      %929 = vmatpush.msra.mxu0 0.0
      %930 = vmatpush.msra.mxu0 0.0
      %931 = vmatpush.msra.mxu0 0.0
      %932 = vmatpush.msra.mxu0 0.0
      %933 = vmatpush.msra.mxu0 %v881
      %934 = vmatpush.msra.mxu0 %v880
      %935 = vmatpush.msra.mxu0 %v879
      %936 = vmatpush.msra.mxu0 %v878
      %937 = vmatpush.msra.mxu0 %v877
      %938 = vmatpush.msra.mxu0 %v876
      %939 = vmatpush.msra.mxu0 %v875
      %940 = vmatpush.msra.mxu0 %v874
      %941 = vmatmul.f32.gmra.mxu0 %v923
      %v942 = vpop.f32.mrf.mxu0
      %v943 = vadd.f32 %v919, %v942
      %944 = vdwg.mxu0
      %v945 = vadd.f32 %v868, %v943
      %v946 = vsel %vm401, %v945, 0.0
      %947 = vadd.xlane.f32.xlu0 %v946
      %v948 = vpop.xlane.xlu0 %947
      %v949 = vmul.f32 %v948, %v411
      %v950 = vsub.f32 %v945, %v949
      %v951 = vmul.f32 %v950, %v950
      %v952 = vsel %vm401, %v951, 0.0
      %953 = vadd.xlane.f32.xlu0 %v952
      %v954 = vpop.xlane.xlu0 %953
      %v955 = vmul.f32 %v954, %v411
      %v956 = vadd.f32 %v955, 1e-06
      %v957 = vrsqrt.pop %v956
      %v958 = vmul.f32 %v957, %v956
      %v959 = vmul.f32 %v958, %v957
      %v960 = vmul.f32 0.5, %v959
      %v961 = vsub.f32 1.5, %v960
      %v962 = vmul.f32 %v957, %v961
      %vm963 = vweird.f32 %v956
      %vm964 = vweird.f32 %v957
      %vm965 = vmor %vm963, %vm964
      %v966 = vsel %vm965, %v957, %v962
      %v967 = vmul.f32 %v950, %v966
      %v968 = vperm.slane %v400, 4
      %v969 = vmul.f32 %v967, %v968
      %v970 = vperm.slane %v400, 5
      %v971 = vadd.f32 %v969, %v970
      %972 = vst.msk [vmem:[%s395] sm:$0xff] %vm401, %v971
      %p973 = scmp.lt.s32.totalorder %s22, 3
      %s974 = scalar_select %p973, %s22, 3
      %s975 = smul.addr %s974, 8
      %s976 = scalar_lea.vmem %s11, %s975
      // Predicated region
      $region65: #{_forward_impl.4} parent=63 // pred_check
        %p977 = pneg %p281
      $region66: #{_forward_impl.4} parent=63 // pred_check_branch
        %979 = sbr.rel (%p977) target = $region68
      $region67: #{_forward_impl.4} parent=63 // pred_region
        _
      $region68: #{_forward_impl.4} parent=63 // pred_fallthru
        _
    $region64: #{_forward_impl.4} parent=5 // pred_fallthru
      _
    %p980 = scmp.le.s32.totalorder 2, %s17
    // Predicated region
    $region69: #{_forward_impl.4} parent=5 // pred_check
      %p981 = pneg %p980
    $region70: #{_forward_impl.4} parent=5 // pred_check_branch
      %983 = sbr.rel (%p981) target = $region72
    $region71: #{_forward_impl.4} parent=5 // pred_region
      %s984 = ssub.s32 %s17, 2
      // Predicated region
      $region73: #{_forward_impl.4} parent=71 // pred_check
        %p985 = pneg %p287
      $region74: #{_forward_impl.4} parent=71 // pred_check_branch
        %987 = sbr.rel (%p985) target = $region76
      $region75: #{_forward_impl.4} parent=71 // pred_region
        %p988 = scmp.lt.s32.totalorder %s23, 3
        %s989 = scalar_select %p988, %s23, 3
        %s990 = smul.addr %s989, 8
        %s991 = scalar_lea.vmem %s11, %s990
      $region76: #{_forward_impl.4} parent=71 // pred_fallthru
        _
    $region72: #{_forward_impl.4} parent=5 // pred_fallthru
      _
  $region6: #{_forward_impl.4} parent=0 // loop_footer
    %s21 = sadd.s32 1, %s17
  $region7: #{_forward_impl.4} parent=0 // loop_footer_branch
    %16 = sbr.rel target = $region3
  $region8: #{_forward_impl.4} parent=0 // loop_exit
    _

// kernel: _forward_impl.3
$region0: #{_forward_impl.3}
  #allocation0 [shape = 'u32[]', space=smem, size = 0x4, offset = 0x4, fixed_abs, tag = 'smem constant byte address 0x4 - core index']
  #allocation1 [shape = 'u32[72,128]{1,0:T(1,128)}', space=vmem, size = 0x9000, scoped, tag = 'internal scratch']
  %s0 = inlined_call_operand.vmem [shape: f32[2,5,256], index: 0, kind: input, shape index: {}]
  %s1 = inlined_call_operand.vmem [shape: f32[2,5,32], index: 1, kind: input, shape index: {}]
  %s2 = inlined_call_operand.vmem [shape: f32[256,32], index: 2, kind: input, shape index: {}]
  %s3 = inlined_call_operand.vmem [shape: f32[32,96], index: 3, kind: input, shape index: {}]
  %s4 = inlined_call_operand.vmem [shape: f32[1,96], index: 4, kind: input, shape index: {}]
  %s5 = inlined_call_operand.vmem [shape: f32[32,32], index: 5, kind: input, shape index: {}]
  %s6 = inlined_call_operand.vmem [shape: f32[1,32], index: 6, kind: input, shape index: {}]
  %s7 = inlined_call_operand.vmem [shape: f32[6,32], index: 7, kind: input, shape index: {}]
  %s8 = inlined_call_operand.vmem [shape: f32[32,64], index: 8, kind: input, shape index: {}]
  %s9 = inlined_call_operand.vmem [shape: f32[1,64], index: 9, kind: input, shape index: {}]
  %s10 = inlined_call_operand.vmem [shape: f32[64,32], index: 10, kind: input, shape index: {}]
  %s11 = inlined_call_operand.vmem [shape: f32[1,32], index: 11, kind: input, shape index: {}]
  %s12 = inlined_call_operand.vmem [shape: f32[2,5,32], index: 12, kind: output, shape index: {}]
  %s13 = sld [smem:[#allocation0]]
  $region81: #{_forward_impl.3} parent=0
    _
  %s15 = ssub.s32 1, %s13
  %s16 = scalar_select 0, %s15, %s13
  loop: start=0, step=1, limit=4
  $region2: #{_forward_impl.3} parent=0 // loop_pre_header
    _
  $region3: #{_forward_impl.3} parent=0 // loop_header
    %s18 = sphi 0, %s22
    %p19 = scmp.ge.s32.totalorder %s18, 4
    %s28 = sphi 0, %s30
    %s31 = sphi 0, %s28
    %s32 = sphi 0, %s31
    %s48 = sphi 0, %s32
    %s54 = sphi 0, %s56
    %s57 = sphi 0, %s54
    %s58 = sphi 0, %s57
    %s74 = sphi 0, %s58
    %s78 = sphi 0, %s78
    %s80 = sphi 0, %s78
    %s81 = sphi 0, %s80
    %s95 = sphi 0, %s81
    %s99 = sphi 0, %s99
    %s101 = sphi 0, %s99
    %s102 = sphi 0, %s101
    %s116 = sphi 0, %s102
    %s120 = sphi 0, %s120
    %s122 = sphi 0, %s120
    %s123 = sphi 0, %s122
    %s137 = sphi 0, %s123
    %s141 = sphi 0, %s141
    %s143 = sphi 0, %s141
    %s144 = sphi 0, %s143
    %s158 = sphi 0, %s144
    %s162 = sphi 0, %s162
    %s164 = sphi 0, %s162
    %s165 = sphi 0, %s164
    %s179 = sphi 0, %s165
    %s183 = sphi 0, %s183
    %s185 = sphi 0, %s183
    %s186 = sphi 0, %s185
    %s200 = sphi 0, %s186
    %s204 = sphi 0, %s204
    %s206 = sphi 0, %s204
    %s207 = sphi 0, %s206
    %s221 = sphi 0, %s207
    %s225 = sphi 0, %s225
    %s227 = sphi 0, %s225
    %s228 = sphi 0, %s227
    %s242 = sphi 0, %s228
    %s246 = sphi 0, %s246
    %s248 = sphi 0, %s246
    %s249 = sphi 0, %s248
    %s263 = sphi 0, %s249
    %s267 = sphi 0, %s267
    %s269 = sphi 0, %s267
    %s270 = sphi 0, %s269
    %s284 = sphi 0, %s270
    %s290 = sphi 0, %s292
    %s293 = sphi 0, %s290
    %s294 = sphi 0, %s293
    %s310 = sphi 0, %s294
  $region4: #{_forward_impl.3} parent=0 // loop_header_branch
    %21 = sbr.rel (%p19) target = $region8
  $region5: #{_forward_impl.3} parent=0 // loop_body
    %s23 = ssub.s32 %s18, 1
    %s24 = ssub.s32 %s18, 2
    %s25 = sadd.s32 %s18, 1
    %s26 = ssub.s32 %s18, %s25
    %p27 = scmp.eq.s32.totalorder %s26, 0
    %s29 = sadd.s32 %s28, 1
    %s30 = scalar_select %p27, %s28, %s29
    %p33 = pneg %p27
    %p34 = scmp.eq.s32.totalorder %s18, 1
    %p35 = por %p33, %p34
    %p36 = scmp.ne.s32.totalorder %s28, %s31
    %p37 = scmp.eq.s32.totalorder %s18, 0
    %p38 = por %p36, %p37
    %p39 = scmp.ne.s32.totalorder %s28, %s31
    %p40 = scmp.eq.s32.totalorder %s23, 1
    %p41 = por %p39, %p40
    %p42 = scmp.ne.s32.totalorder %s31, %s32
    %p43 = scmp.eq.s32.totalorder %s23, 0
    %p44 = por %p42, %p43
    %p45 = scmp.ne.s32.totalorder %s31, %s32
    %p46 = scmp.eq.s32.totalorder %s24, 1
    %p47 = por %p45, %p46
    %p49 = scmp.ne.s32.totalorder %s32, %s48
    %p50 = scmp.eq.s32.totalorder %s24, 0
    %p51 = por %p49, %p50
    %s52 = ssub.s32 %s18, %s25
    %p53 = scmp.eq.s32.totalorder %s52, 0
    %s55 = sadd.s32 %s54, 1
    %s56 = scalar_select %p53, %s54, %s55
    %p59 = pneg %p53
    %p60 = scmp.eq.s32.totalorder %s18, 1
    %p61 = por %p59, %p60
    %p62 = scmp.ne.s32.totalorder %s54, %s57
    %p63 = scmp.eq.s32.totalorder %s18, 0
    %p64 = por %p62, %p63
    %p65 = scmp.ne.s32.totalorder %s54, %s57
    %p66 = scmp.eq.s32.totalorder %s23, 1
    %p67 = por %p65, %p66
    %p68 = scmp.ne.s32.totalorder %s57, %s58
    %p69 = scmp.eq.s32.totalorder %s23, 0
    %p70 = por %p68, %p69
    %p71 = scmp.ne.s32.totalorder %s57, %s58
    %p72 = scmp.eq.s32.totalorder %s24, 1
    %p73 = por %p71, %p72
    %p75 = scmp.ne.s32.totalorder %s58, %s74
    %p76 = scmp.eq.s32.totalorder %s24, 0
    %p77 = por %p75, %p76
    %s79 = sadd.s32 %s78, 1
    %p82 = scmp.eq.s32.totalorder %s18, 1
    %p83 = scmp.ne.s32.totalorder %s78, %s80
    %p84 = scmp.eq.s32.totalorder %s18, 0
    %p85 = por %p83, %p84
    %p86 = scmp.ne.s32.totalorder %s78, %s80
    %p87 = scmp.eq.s32.totalorder %s23, 1
    %p88 = por %p86, %p87
    %p89 = scmp.ne.s32.totalorder %s80, %s81
    %p90 = scmp.eq.s32.totalorder %s23, 0
    %p91 = por %p89, %p90
    %p92 = scmp.ne.s32.totalorder %s80, %s81
    %p93 = scmp.eq.s32.totalorder %s24, 1
    %p94 = por %p92, %p93
    %p96 = scmp.ne.s32.totalorder %s81, %s95
    %p97 = scmp.eq.s32.totalorder %s24, 0
    %p98 = por %p96, %p97
    %s100 = sadd.s32 %s99, 1
    %p103 = scmp.eq.s32.totalorder %s18, 1
    %p104 = scmp.ne.s32.totalorder %s99, %s101
    %p105 = scmp.eq.s32.totalorder %s18, 0
    %p106 = por %p104, %p105
    %p107 = scmp.ne.s32.totalorder %s99, %s101
    %p108 = scmp.eq.s32.totalorder %s23, 1
    %p109 = por %p107, %p108
    %p110 = scmp.ne.s32.totalorder %s101, %s102
    %p111 = scmp.eq.s32.totalorder %s23, 0
    %p112 = por %p110, %p111
    %p113 = scmp.ne.s32.totalorder %s101, %s102
    %p114 = scmp.eq.s32.totalorder %s24, 1
    %p115 = por %p113, %p114
    %p117 = scmp.ne.s32.totalorder %s102, %s116
    %p118 = scmp.eq.s32.totalorder %s24, 0
    %p119 = por %p117, %p118
    %s121 = sadd.s32 %s120, 1
    %p124 = scmp.eq.s32.totalorder %s18, 1
    %p125 = scmp.ne.s32.totalorder %s120, %s122
    %p126 = scmp.eq.s32.totalorder %s18, 0
    %p127 = por %p125, %p126
    %p128 = scmp.ne.s32.totalorder %s120, %s122
    %p129 = scmp.eq.s32.totalorder %s23, 1
    %p130 = por %p128, %p129
    %p131 = scmp.ne.s32.totalorder %s122, %s123
    %p132 = scmp.eq.s32.totalorder %s23, 0
    %p133 = por %p131, %p132
    %p134 = scmp.ne.s32.totalorder %s122, %s123
    %p135 = scmp.eq.s32.totalorder %s24, 1
    %p136 = por %p134, %p135
    %p138 = scmp.ne.s32.totalorder %s123, %s137
    %p139 = scmp.eq.s32.totalorder %s24, 0
    %p140 = por %p138, %p139
    %s142 = sadd.s32 %s141, 1
    %p145 = scmp.eq.s32.totalorder %s18, 1
    %p146 = scmp.ne.s32.totalorder %s141, %s143
    %p147 = scmp.eq.s32.totalorder %s18, 0
    %p148 = por %p146, %p147
    %p149 = scmp.ne.s32.totalorder %s141, %s143
    %p150 = scmp.eq.s32.totalorder %s23, 1
    %p151 = por %p149, %p150
    %p152 = scmp.ne.s32.totalorder %s143, %s144
    %p153 = scmp.eq.s32.totalorder %s23, 0
    %p154 = por %p152, %p153
    %p155 = scmp.ne.s32.totalorder %s143, %s144
    %p156 = scmp.eq.s32.totalorder %s24, 1
    %p157 = por %p155, %p156
    %p159 = scmp.ne.s32.totalorder %s144, %s158
    %p160 = scmp.eq.s32.totalorder %s24, 0
    %p161 = por %p159, %p160
    %s163 = sadd.s32 %s162, 1
    %p166 = scmp.eq.s32.totalorder %s18, 1
    %p167 = scmp.ne.s32.totalorder %s162, %s164
    %p168 = scmp.eq.s32.totalorder %s18, 0
    %p169 = por %p167, %p168
    %p170 = scmp.ne.s32.totalorder %s162, %s164
    %p171 = scmp.eq.s32.totalorder %s23, 1
    %p172 = por %p170, %p171
    %p173 = scmp.ne.s32.totalorder %s164, %s165
    %p174 = scmp.eq.s32.totalorder %s23, 0
    %p175 = por %p173, %p174
    %p176 = scmp.ne.s32.totalorder %s164, %s165
    %p177 = scmp.eq.s32.totalorder %s24, 1
    %p178 = por %p176, %p177
    %p180 = scmp.ne.s32.totalorder %s165, %s179
    %p181 = scmp.eq.s32.totalorder %s24, 0
    %p182 = por %p180, %p181
    %s184 = sadd.s32 %s183, 1
    %p187 = scmp.eq.s32.totalorder %s18, 1
    %p188 = scmp.ne.s32.totalorder %s183, %s185
    %p189 = scmp.eq.s32.totalorder %s18, 0
    %p190 = por %p188, %p189
    %p191 = scmp.ne.s32.totalorder %s183, %s185
    %p192 = scmp.eq.s32.totalorder %s23, 1
    %p193 = por %p191, %p192
    %p194 = scmp.ne.s32.totalorder %s185, %s186
    %p195 = scmp.eq.s32.totalorder %s23, 0
    %p196 = por %p194, %p195
    %p197 = scmp.ne.s32.totalorder %s185, %s186
    %p198 = scmp.eq.s32.totalorder %s24, 1
    %p199 = por %p197, %p198
    %p201 = scmp.ne.s32.totalorder %s186, %s200
    %p202 = scmp.eq.s32.totalorder %s24, 0
    %p203 = por %p201, %p202
    %s205 = sadd.s32 %s204, 1
    %p208 = scmp.eq.s32.totalorder %s18, 1
    %p209 = scmp.ne.s32.totalorder %s204, %s206
    %p210 = scmp.eq.s32.totalorder %s18, 0
    %p211 = por %p209, %p210
    %p212 = scmp.ne.s32.totalorder %s204, %s206
    %p213 = scmp.eq.s32.totalorder %s23, 1
    %p214 = por %p212, %p213
    %p215 = scmp.ne.s32.totalorder %s206, %s207
    %p216 = scmp.eq.s32.totalorder %s23, 0
    %p217 = por %p215, %p216
    %p218 = scmp.ne.s32.totalorder %s206, %s207
    %p219 = scmp.eq.s32.totalorder %s24, 1
    %p220 = por %p218, %p219
    %p222 = scmp.ne.s32.totalorder %s207, %s221
    %p223 = scmp.eq.s32.totalorder %s24, 0
    %p224 = por %p222, %p223
    %s226 = sadd.s32 %s225, 1
    %p229 = scmp.eq.s32.totalorder %s18, 1
    %p230 = scmp.ne.s32.totalorder %s225, %s227
    %p231 = scmp.eq.s32.totalorder %s18, 0
    %p232 = por %p230, %p231
    %p233 = scmp.ne.s32.totalorder %s225, %s227
    %p234 = scmp.eq.s32.totalorder %s23, 1
    %p235 = por %p233, %p234
    %p236 = scmp.ne.s32.totalorder %s227, %s228
    %p237 = scmp.eq.s32.totalorder %s23, 0
    %p238 = por %p236, %p237
    %p239 = scmp.ne.s32.totalorder %s227, %s228
    %p240 = scmp.eq.s32.totalorder %s24, 1
    %p241 = por %p239, %p240
    %p243 = scmp.ne.s32.totalorder %s228, %s242
    %p244 = scmp.eq.s32.totalorder %s24, 0
    %p245 = por %p243, %p244
    %s247 = sadd.s32 %s246, 1
    %p250 = scmp.eq.s32.totalorder %s18, 1
    %p251 = scmp.ne.s32.totalorder %s246, %s248
    %p252 = scmp.eq.s32.totalorder %s18, 0
    %p253 = por %p251, %p252
    %p254 = scmp.ne.s32.totalorder %s246, %s248
    %p255 = scmp.eq.s32.totalorder %s23, 1
    %p256 = por %p254, %p255
    %p257 = scmp.ne.s32.totalorder %s248, %s249
    %p258 = scmp.eq.s32.totalorder %s23, 0
    %p259 = por %p257, %p258
    %p260 = scmp.ne.s32.totalorder %s248, %s249
    %p261 = scmp.eq.s32.totalorder %s24, 1
    %p262 = por %p260, %p261
    %p264 = scmp.ne.s32.totalorder %s249, %s263
    %p265 = scmp.eq.s32.totalorder %s24, 0
    %p266 = por %p264, %p265
    %s268 = sadd.s32 %s267, 1
    %p271 = scmp.eq.s32.totalorder %s18, 1
    %p272 = scmp.ne.s32.totalorder %s267, %s269
    %p273 = scmp.eq.s32.totalorder %s18, 0
    %p274 = por %p272, %p273
    %p275 = scmp.ne.s32.totalorder %s267, %s269
    %p276 = scmp.eq.s32.totalorder %s23, 1
    %p277 = por %p275, %p276
    %p278 = scmp.ne.s32.totalorder %s269, %s270
    %p279 = scmp.eq.s32.totalorder %s23, 0
    %p280 = por %p278, %p279
    %p281 = scmp.ne.s32.totalorder %s269, %s270
    %p282 = scmp.eq.s32.totalorder %s24, 1
    %p283 = por %p281, %p282
    %p285 = scmp.ne.s32.totalorder %s270, %s284
    %p286 = scmp.eq.s32.totalorder %s24, 0
    %p287 = por %p285, %p286
    %s288 = ssub.s32 %s18, %s25
    %p289 = scmp.eq.s32.totalorder %s288, 0
    %s291 = sadd.s32 %s290, 1
    %s292 = scalar_select %p289, %s290, %s291
    %p295 = pneg %p289
    %p296 = scmp.eq.s32.totalorder %s18, 1
    %p297 = por %p295, %p296
    %p298 = scmp.ne.s32.totalorder %s290, %s293
    %p299 = scmp.eq.s32.totalorder %s18, 0
    %p300 = por %p298, %p299
    %p301 = scmp.ne.s32.totalorder %s290, %s293
    %p302 = scmp.eq.s32.totalorder %s23, 1
    %p303 = por %p301, %p302
    %p304 = scmp.ne.s32.totalorder %s293, %s294
    %p305 = scmp.eq.s32.totalorder %s23, 0
    %p306 = por %p304, %p305
    %p307 = scmp.ne.s32.totalorder %s293, %s294
    %p308 = scmp.eq.s32.totalorder %s24, 1
    %p309 = por %p307, %p308
    %p311 = scmp.ne.s32.totalorder %s294, %s310
    %p312 = scmp.eq.s32.totalorder %s24, 0
    %p313 = por %p311, %p312
    %p314 = scmp.le.s32.totalorder 1, %s18
    %p315 = scmp.lt.s32.totalorder %s18, 3
    %p316 = pnand %p314, %p315
    %p317 = pneg %p316
    // Predicated region
    $region9: #{_forward_impl.3} parent=5 // pred_check
      _
    $region10: #{_forward_impl.3} parent=5 // pred_check_branch
      %319 = sbr.rel (%p316) target = $region12
    $region11: #{_forward_impl.3} parent=5 // pred_region
      %s320 = ssub.s32 %s18, 1
      // Predicated region
      $region13: #{_forward_impl.3} parent=11 // pred_check
        %p321 = pneg %p91
      $region14: #{_forward_impl.3} parent=11 // pred_check_branch
        %323 = sbr.rel (%p321) target = $region16
      $region15: #{_forward_impl.3} parent=11 // pred_region
        _
      $region16: #{_forward_impl.3} parent=11 // pred_fallthru
        _
      // Predicated region
      $region17: #{_forward_impl.3} parent=11 // pred_check
        %p324 = pneg %p112
      $region18: #{_forward_impl.3} parent=11 // pred_check_branch
        %326 = sbr.rel (%p324) target = $region20
      $region19: #{_forward_impl.3} parent=11 // pred_region
        _
      $region20: #{_forward_impl.3} parent=11 // pred_fallthru
        _
      // Predicated region
      $region21: #{_forward_impl.3} parent=11 // pred_check
        %p327 = pneg %p133
      $region22: #{_forward_impl.3} parent=11 // pred_check_branch
        %329 = sbr.rel (%p327) target = $region24
      $region23: #{_forward_impl.3} parent=11 // pred_region
        _
      $region24: #{_forward_impl.3} parent=11 // pred_fallthru
        _
      // Predicated region
      $region25: #{_forward_impl.3} parent=11 // pred_check
        %p330 = pneg %p154
      $region26: #{_forward_impl.3} parent=11 // pred_check_branch
        %332 = sbr.rel (%p330) target = $region28
      $region27: #{_forward_impl.3} parent=11 // pred_region
        _
      $region28: #{_forward_impl.3} parent=11 // pred_fallthru
        _
      // Predicated region
      $region29: #{_forward_impl.3} parent=11 // pred_check
        %p333 = pneg %p175
      $region30: #{_forward_impl.3} parent=11 // pred_check_branch
        %335 = sbr.rel (%p333) target = $region32
      $region31: #{_forward_impl.3} parent=11 // pred_region
        _
      $region32: #{_forward_impl.3} parent=11 // pred_fallthru
        _
      // Predicated region
      $region33: #{_forward_impl.3} parent=11 // pred_check
        %p336 = pneg %p196
      $region34: #{_forward_impl.3} parent=11 // pred_check_branch
        %338 = sbr.rel (%p336) target = $region36
      $region35: #{_forward_impl.3} parent=11 // pred_region
        _
      $region36: #{_forward_impl.3} parent=11 // pred_fallthru
        _
      // Predicated region
      $region37: #{_forward_impl.3} parent=11 // pred_check
        %p339 = pneg %p217
      $region38: #{_forward_impl.3} parent=11 // pred_check_branch
        %341 = sbr.rel (%p339) target = $region40
      $region39: #{_forward_impl.3} parent=11 // pred_region
        _
      $region40: #{_forward_impl.3} parent=11 // pred_fallthru
        _
      // Predicated region
      $region41: #{_forward_impl.3} parent=11 // pred_check
        %p342 = pneg %p238
      $region42: #{_forward_impl.3} parent=11 // pred_check_branch
        %344 = sbr.rel (%p342) target = $region44
      $region43: #{_forward_impl.3} parent=11 // pred_region
        _
      $region44: #{_forward_impl.3} parent=11 // pred_fallthru
        _
      // Predicated region
      $region45: #{_forward_impl.3} parent=11 // pred_check
        %p345 = pneg %p259
      $region46: #{_forward_impl.3} parent=11 // pred_check_branch
        %347 = sbr.rel (%p345) target = $region48
      $region47: #{_forward_impl.3} parent=11 // pred_region
        _
      $region48: #{_forward_impl.3} parent=11 // pred_fallthru
        _
      // Predicated region
      $region49: #{_forward_impl.3} parent=11 // pred_check
        %p348 = pneg %p280
      $region50: #{_forward_impl.3} parent=11 // pred_check_branch
        %350 = sbr.rel (%p348) target = $region52
      $region51: #{_forward_impl.3} parent=11 // pred_region
        _
      $region52: #{_forward_impl.3} parent=11 // pred_fallthru
        _
    $region12: #{_forward_impl.3} parent=5 // pred_fallthru
      _
    %p351 = scmp.lt.s32.totalorder %s18, 2
    // Predicated region
    $region53: #{_forward_impl.3} parent=5 // pred_check
      %p352 = pneg %p351
    $region54: #{_forward_impl.3} parent=5 // pred_check_branch
      %354 = sbr.rel (%p352) target = $region56
    $region55: #{_forward_impl.3} parent=5 // pred_region
      // Predicated region
      $region57: #{_forward_impl.3} parent=55 // pred_check
        %p355 = pneg %p38
      $region58: #{_forward_impl.3} parent=55 // pred_check_branch
        %357 = sbr.rel (%p355) target = $region60
      $region59: #{_forward_impl.3} parent=55 // pred_region
        %p358 = scmp.lt.s32.totalorder %s18, 1
        %s359 = scalar_select %p358, %s18, 1
        %s360 = smul.addr %s359, 2
        %s361 = smul.addr %s360, 8
        %s362 = scalar_lea.vmem %s0, %s361
      $region60: #{_forward_impl.3} parent=55 // pred_fallthru
        _
      // Predicated region
      $region61: #{_forward_impl.3} parent=55 // pred_check
        %p363 = pneg %p64
      $region62: #{_forward_impl.3} parent=55 // pred_check_branch
        %365 = sbr.rel (%p363) target = $region64
      $region63: #{_forward_impl.3} parent=55 // pred_region
        %p366 = scmp.lt.s32.totalorder %s18, 1
        %s367 = scalar_select %p366, %s18, 1
        %s368 = smul.addr %s367, 8
        %s369 = scalar_lea.vmem %s1, %s368
      $region64: #{_forward_impl.3} parent=55 // pred_fallthru
        _
    $region56: #{_forward_impl.3} parent=5 // pred_fallthru
      _
    %p370 = scmp.le.s32.totalorder 1, %s18
    %p371 = scmp.lt.s32.totalorder %s18, 3
    %p372 = pnand %p370, %p371
    %p373 = pneg %p372
    // Predicated region
    $region65: #{_forward_impl.3} parent=5 // pred_check
      _
    $region66: #{_forward_impl.3} parent=5 // pred_check_branch
      %375 = sbr.rel (%p372) target = $region68
    $region67: #{_forward_impl.3} parent=5 // pred_region
      %s376 = ssub.s32 %s18, 1
      %p377 = scmp.lt.s32.totalorder %s23, 1
      %s378 = scalar_select %p377, %s23, 1
      %s379 = smul.addr %s378, 2
      %s380 = smul.addr %s379, 8
      %s381 = scalar_lea.vmem %s0, %s380
      %p382 = pneg %p44
      %p383 = pneg %p41
      %p384 = scmp.lt.s32.totalorder %s23, 1
      %s385 = scalar_select %p384, %s23, 1
      %s386 = smul.addr %s385, 8
      %s387 = scalar_lea.vmem %s1, %s386
      %p388 = pneg %p70
      %p389 = pneg %p67
      %p390 = pneg %p91
      %p391 = pneg %p88
      %p392 = pneg %p112
      %p393 = pneg %p109
      %p394 = pneg %p133
      %p395 = pneg %p130
      %p396 = pneg %p154
      %p397 = pneg %p151
      %p398 = pneg %p175
      %p399 = pneg %p172
      %p400 = pneg %p196
      %p401 = pneg %p193
      %p402 = pneg %p217
      %p403 = pneg %p214
      %p404 = pneg %p238
      %p405 = pneg %p235
      %p406 = pneg %p259
      %p407 = pneg %p256
      %p408 = pneg %p280
      %p409 = pneg %p277
      %p410 = pneg %p306
      %p411 = pneg %p303
      %p412 = scmp.lt.s32.totalorder %s23, 1
      %s413 = scalar_select %p412, %s23, 1
      %s414 = smul.addr %s413, 8
      %s415 = scalar_lea.vmem %s12, %s414
      %p416 = scmp.lt.s32.totalorder %s23, 1
      %s417 = scalar_select %p416, %s23, 1
      %s418 = smul.addr %s417, 2
      %s419 = smul.addr %s418, 8
      %s420 = scalar_lea.vmem %s0, %s419
      %p421 = scmp.lt.s32.totalorder %s23, 1
      %s422 = scalar_select %p421, %s23, 1
      %s423 = smul.addr %s422, 8
      %s424 = scalar_lea.vmem %s1, %s423
      %p425 = scmp.lt.s32.totalorder %s23, 1
      %s426 = scalar_select %p425, %s23, 1
      %s427 = smul.addr %s426, 8
      %s428 = scalar_lea.vmem %s12, %s427
      %v429 = vld [vmem:[%s420] sm:$0x1f]
      %v430 = vld [vmem:[%s420 + $0x8] sm:$0x1f]
      %v431 = vld [vmem:[%s2] sm:$0xff]
      %v432 = vld [vmem:[%s2 + $0x8] sm:$0xff]
      %v433 = vld [vmem:[%s2 + $0x10] sm:$0xff]
      %v434 = vld [vmem:[%s2 + $0x18] sm:$0xff]
      %v435 = vld [vmem:[%s2 + $0x20] sm:$0xff]
      %v436 = vld [vmem:[%s2 + $0x28] sm:$0xff]
      %v437 = vld [vmem:[%s2 + $0x30] sm:$0xff]
      %v438 = vld [vmem:[%s2 + $0x38] sm:$0xff]
      %v439 = vld [vmem:[%s2 + $0x40] sm:$0xff]
      %v440 = vld [vmem:[%s2 + $0x48] sm:$0xff]
      %v441 = vld [vmem:[%s2 + $0x50] sm:$0xff]
      %v442 = vld [vmem:[%s2 + $0x58] sm:$0xff]
      %v443 = vld [vmem:[%s2 + $0x60] sm:$0xff]
      %v444 = vld [vmem:[%s2 + $0x68] sm:$0xff]
      %v445 = vld [vmem:[%s2 + $0x70] sm:$0xff]
      %v446 = vld [vmem:[%s2 + $0x78] sm:$0xff]
      %v447 = vld [vmem:[%s2 + $0x80] sm:$0xff]
      %v448 = vld [vmem:[%s2 + $0x88] sm:$0xff]
      %v449 = vld [vmem:[%s2 + $0x90] sm:$0xff]
      %v450 = vld [vmem:[%s2 + $0x98] sm:$0xff]
      %v451 = vld [vmem:[%s2 + $0xa0] sm:$0xff]
      %v452 = vld [vmem:[%s2 + $0xa8] sm:$0xff]
      %v453 = vld [vmem:[%s2 + $0xb0] sm:$0xff]
      %v454 = vld [vmem:[%s2 + $0xb8] sm:$0xff]
      %v455 = vld [vmem:[%s2 + $0xc0] sm:$0xff]
      %v456 = vld [vmem:[%s2 + $0xc8] sm:$0xff]
      %v457 = vld [vmem:[%s2 + $0xd0] sm:$0xff]
      %v458 = vld [vmem:[%s2 + $0xd8] sm:$0xff]
      %v459 = vld [vmem:[%s2 + $0xe0] sm:$0xff]
      %v460 = vld [vmem:[%s2 + $0xe8] sm:$0xff]
      %v461 = vld [vmem:[%s2 + $0xf0] sm:$0xff]
      %v462 = vld [vmem:[%s2 + $0xf8] sm:$0xff]
      %v463 = vld [vmem:[%s424] sm:$0x1f]
      %464 = vmatpush.msra.mxu0 %v446
      %465 = vmatpush.msra.mxu0 %v445
      %466 = vmatpush.msra.mxu0 %v444
      %467 = vmatpush.msra.mxu0 %v443
      %468 = vmatpush.msra.mxu0 %v442
      %469 = vmatpush.msra.mxu0 %v441
      %470 = vmatpush.msra.mxu0 %v440
      %471 = vmatpush.msra.mxu0 %v439
      %472 = vmatpush.msra.mxu0 %v438
      %473 = vmatpush.msra.mxu0 %v437
      %474 = vmatpush.msra.mxu0 %v436
      %475 = vmatpush.msra.mxu0 %v435
      %476 = vmatpush.msra.mxu0 %v434
      %477 = vmatpush.msra.mxu0 %v433
      %478 = vmatpush.msra.mxu0 %v432
      %479 = vmatpush.msra.mxu0 %v431
      %480 = vmatmul.f32.gmra.mxu0 %v429
      %v481 = vpop.f32.mrf.mxu0
      %v482 = vadd.f32 %v463, %v481
      %483 = vdwg.mxu0
      %484 = vmatpush.msra.mxu0 %v462
      %485 = vmatpush.msra.mxu0 %v461
      %486 = vmatpush.msra.mxu0 %v460
      %487 = vmatpush.msra.mxu0 %v459
      %488 = vmatpush.msra.mxu0 %v458
      %489 = vmatpush.msra.mxu0 %v457
      %490 = vmatpush.msra.mxu0 %v456
      %491 = vmatpush.msra.mxu0 %v455
      %492 = vmatpush.msra.mxu0 %v454
      %493 = vmatpush.msra.mxu0 %v453
      %494 = vmatpush.msra.mxu0 %v452
      %495 = vmatpush.msra.mxu0 %v451
      %496 = vmatpush.msra.mxu0 %v450
      %497 = vmatpush.msra.mxu0 %v449
      %498 = vmatpush.msra.mxu0 %v448
      %499 = vmatpush.msra.mxu0 %v447
      %500 = vmatmul.f32.gmra.mxu0 %v430
      %v501 = vpop.f32.mrf.mxu0
      %v502 = vadd.f32 %v482, %v501
      %503 = vdwg.mxu0
      %v504 = vld [vmem:[%s7] sm:$0x3f]
      %vm505 = vcmask 258048
      %v506 = vsel %vm505, %v502, 0.0
      %507 = vadd.xlane.f32.xlu0 %v506
      %v508 = vpop.xlane.xlu0 %507
      %v509 = vrcp.pop 32.0
      %v510 = vmul.f32 32.0, %v509
      %v511 = vsub.f32 1.0, %v510
      %v512 = vmul.f32 %v509, %v511
      %v513 = vadd.f32 %v509, %v512
      %vm514 = vweird.f32 %v509
      %v515 = vsel %vm514, %v509, %v513
      %v516 = vmul.f32 %v508, %v515
      %v517 = vsub.f32 %v502, %v516
      %v518 = vmul.f32 %v517, %v517
      %v519 = vsel %vm505, %v518, 0.0
      %520 = vadd.xlane.f32.xlu0 %v519
      %v521 = vpop.xlane.xlu0 %520
      %v522 = vmul.f32 %v521, %v515
      %v523 = vadd.f32 %v522, 1e-06
      %v524 = vrsqrt.pop %v523
      %v525 = vmul.f32 %v524, %v523
      %v526 = vmul.f32 %v525, %v524
      %v527 = vmul.f32 0.5, %v526
      %v528 = vsub.f32 1.5, %v527
      %v529 = vmul.f32 %v524, %v528
      %vm530 = vweird.f32 %v523
      %vm531 = vweird.f32 %v524
      %vm532 = vmor %vm530, %vm531
      %v533 = vsel %vm532, %v524, %v529
      %v534 = vmul.f32 %v517, %v533
      %v535 = vperm.slane %v504, 0
      %v536 = vmul.f32 %v534, %v535
      %v537 = vperm.slane %v504, 1
      %v538 = vadd.f32 %v536, %v537
      %v539 = vld [vmem:[%s3] sm:$0xff]
      %v540 = vld [vmem:[%s3 + $0x8] sm:$0xff]
      %v541 = vld [vmem:[%s3 + $0x10] sm:$0xff]
      %v542 = vld [vmem:[%s3 + $0x18] sm:$0xff]
      %v543 = vld [vmem:[%s4] sm:$0x1]
      %v544 = vld [vmem:[%s5] sm:$0xff]
      %v545 = vld [vmem:[%s5 + $0x8] sm:$0xff]
      %v546 = vld [vmem:[%s5 + $0x10] sm:$0xff]
      %v547 = vld [vmem:[%s5 + $0x18] sm:$0xff]
      %v548 = vld [vmem:[%s6] sm:$0x1]
      %v550 = vperm.slane %v543, 0
      %vm552 = vcmask 261120
      %v554 = vsel %vm552, %v538, 0
      %556 = vmatpush.msra.mxu0 0.0
      %557 = vmatpush.msra.mxu0 0.0
      %558 = vmatpush.msra.mxu0 0.0
      %559 = vmatpush.msra.mxu0 0.0
      %560 = vmatpush.msra.mxu0 0.0
      %561 = vmatpush.msra.mxu0 0.0
      %562 = vmatpush.msra.mxu0 0.0
      %563 = vmatpush.msra.mxu0 0.0
      %564 = vmatpush.msra.mxu0 0.0
      %565 = vmatpush.msra.mxu0 0.0
      %566 = vmatpush.msra.mxu0 0.0
      %567 = vmatpush.msra.mxu0 0.0
      %568 = vmatpush.msra.mxu0 %v542
      %569 = vmatpush.msra.mxu0 %v541
      %570 = vmatpush.msra.mxu0 %v540
      %571 = vmatpush.msra.mxu0 %v539
      %572 = vmatmul.f32.gmra.mxu0 %v554
      %v573 = vpop.f32.mrf.mxu0
      %v574 = vadd.f32 %v550, %v573
      %575 = vdwg.mxu0
      %v577 = vperm.slane %v548, 0
      %v579 = vadd.f32 %v577, 0.0
      %581 = vrot.lane.b32.xlu0 %v574, 96
      %v582 = vpop.permute.xlu0 %581
      %vm583 = vcmask 64512
      %v584 = vsel %vm583, %v574, 0
      %v586 = vsel %vm583, %v582, 0
      %588 = vmatpush.xpose.msra.mxu0 0.0
      %589 = vmatpush.xpose.msra.mxu0 0.0
      %590 = vmatpush.xpose.msra.mxu0 0.0
      %591 = vmatpush.xpose.msra.mxu0 0.0
      %592 = vmatpush.xpose.msra.mxu0 0.0
      %593 = vmatpush.xpose.msra.mxu0 0.0
      %594 = vmatpush.xpose.msra.mxu0 0.0
      %595 = vmatpush.xpose.msra.mxu0 0.0
      %596 = vmatpush.xpose.msra.mxu0 0.0
      %597 = vmatpush.xpose.msra.mxu0 0.0
      %598 = vmatpush.xpose.msra.mxu0 0.0
      %599 = vmatpush.xpose.msra.mxu0 0.0
      %600 = vmatpush.xpose.msra.mxu0 0.0
      %601 = vmatpush.xpose.msra.mxu0 0.0
      %602 = vmatpush.xpose.msra.mxu0 0.0
      %603 = vmatpush.xpose.msra.mxu0 %v586
      %604 = vmatmul.f32.gmra.mxu0 %v584
      %v605 = vpop.f32.mrf.mxu0
      %v606 = vadd.f32 0.0, %v605
      %607 = vdwg.mxu0
      %v608 = vmul.f32 %v606, 0.35355338
      %vm609 = vcmask 36864
      %v610 = vsel %vm609, %v608, -inf
      %611 = vmax.xlane.f32.xlu0 %v610
      %v612 = vpop.xlane.xlu0 %611
      %v613 = vsub.f32 %v608, %v612
      %v614 = vmul.f32 %v613, 1.442695
      %v615 = vpow.pop %v614
      %v616 = vsel %vm609, %v615, 0.0
      %617 = vadd.xlane.f32.xlu0 %v616
      %v618 = vpop.xlane.xlu0 %617
      %v619 = vrcp.pop %v618
      %v620 = vmul.f32 %v615, %v619
      %621 = vrot.lane.b32.xlu0 %v574, 64
      %v622 = vpop.permute.xlu0 %621
      %vm623 = vcmask 39936
      %v625 = vsel %vm623, %v620, 0
      %vm627 = vcmask 1044480
      %v628 = vsel %vm627, %v622, 0
      %630 = vmatpush.msra.mxu0 0.0
      %631 = vmatpush.msra.mxu0 0.0
      %632 = vmatpush.msra.mxu0 0.0
      %633 = vmatpush.msra.mxu0 0.0
      %634 = vmatpush.msra.mxu0 0.0
      %635 = vmatpush.msra.mxu0 0.0
      %636 = vmatpush.msra.mxu0 0.0
      %637 = vmatpush.msra.mxu0 0.0
      %638 = vmatpush.msra.mxu0 0.0
      %639 = vmatpush.msra.mxu0 0.0
      %640 = vmatpush.msra.mxu0 0.0
      %641 = vmatpush.msra.mxu0 0.0
      %642 = vmatpush.msra.mxu0 0.0
      %643 = vmatpush.msra.mxu0 0.0
      %644 = vmatpush.msra.mxu0 0.0
      %645 = vmatpush.msra.mxu0 %v628
      %646 = vmatmul.f32.gmra.mxu0 %v625
      %v647 = vpop.f32.mrf.mxu0
      %v648 = vadd.f32 0.0, %v647
      %649 = vdwg.mxu0
      %v651 = vsel %vm583, %v648, 0
      %653 = vmatpush.msra.mxu0 0.0
      %654 = vmatpush.msra.mxu0 0.0
      %655 = vmatpush.msra.mxu0 0.0
      %656 = vmatpush.msra.mxu0 0.0
      %657 = vmatpush.msra.mxu0 0.0
      %658 = vmatpush.msra.mxu0 0.0
      %659 = vmatpush.msra.mxu0 0.0
      %660 = vmatpush.msra.mxu0 0.0
      %661 = vmatpush.msra.mxu0 0.0
      %662 = vmatpush.msra.mxu0 0.0
      %663 = vmatpush.msra.mxu0 0.0
      %664 = vmatpush.msra.mxu0 0.0
      %665 = vmatpush.msra.mxu0 0.0
      %666 = vmatpush.msra.mxu0 0.0
      %667 = vmatpush.msra.mxu0 0.0
      %668 = vmatpush.msra.mxu0 %v544
      %669 = vmatmul.f32.gmra.mxu0 %v651
      %v670 = vpop.f32.mrf.mxu0
      %v671 = vadd.f32 0.0, %v670
      %672 = vdwg.mxu0
      %v673 = vadd.f32 %v579, %v671
      %674 = vrot.lane.b32.xlu0 %v574, 120
      %v675 = vpop.permute.xlu0 %674
      %676 = vrot.lane.b32.xlu0 %v574, 88
      %v677 = vpop.permute.xlu0 %676
      %v678 = vsel %vm583, %v675, 0
      %v680 = vsel %vm583, %v677, 0
      %682 = vmatpush.xpose.msra.mxu0 0.0
      %683 = vmatpush.xpose.msra.mxu0 0.0
      %684 = vmatpush.xpose.msra.mxu0 0.0
      %685 = vmatpush.xpose.msra.mxu0 0.0
      %686 = vmatpush.xpose.msra.mxu0 0.0
      %687 = vmatpush.xpose.msra.mxu0 0.0
      %688 = vmatpush.xpose.msra.mxu0 0.0
      %689 = vmatpush.xpose.msra.mxu0 0.0
      %690 = vmatpush.xpose.msra.mxu0 0.0
      %691 = vmatpush.xpose.msra.mxu0 0.0
      %692 = vmatpush.xpose.msra.mxu0 0.0
      %693 = vmatpush.xpose.msra.mxu0 0.0
      %694 = vmatpush.xpose.msra.mxu0 0.0
      %695 = vmatpush.xpose.msra.mxu0 0.0
      %696 = vmatpush.xpose.msra.mxu0 0.0
      %697 = vmatpush.xpose.msra.mxu0 %v680
      %698 = vmatmul.f32.gmra.mxu0 %v678
      %v699 = vpop.f32.mrf.mxu0
      %v700 = vadd.f32 0.0, %v699
      %701 = vdwg.mxu0
      %v702 = vmul.f32 %v700, 0.35355338
      %v703 = vsel %vm609, %v702, -inf
      %704 = vmax.xlane.f32.xlu0 %v703
      %v705 = vpop.xlane.xlu0 %704
      %v706 = vsub.f32 %v702, %v705
      %v707 = vmul.f32 %v706, 1.442695
      %v708 = vpow.pop %v707
      %v709 = vsel %vm609, %v708, 0.0
      %710 = vadd.xlane.f32.xlu0 %v709
      %v711 = vpop.xlane.xlu0 %710
      %v712 = vrcp.pop %v711
      %v713 = vmul.f32 %v708, %v712
      %714 = vrot.lane.b32.xlu0 %v574, 56
      %v715 = vpop.permute.xlu0 %714
      %v717 = vsel %vm623, %v713, 0
      %v719 = vsel %vm627, %v715, 0
      %721 = vmatpush.msra.mxu0 0.0
      %722 = vmatpush.msra.mxu0 0.0
      %723 = vmatpush.msra.mxu0 0.0
      %724 = vmatpush.msra.mxu0 0.0
      %725 = vmatpush.msra.mxu0 0.0
      %726 = vmatpush.msra.mxu0 0.0
      %727 = vmatpush.msra.mxu0 0.0
      %728 = vmatpush.msra.mxu0 0.0
      %729 = vmatpush.msra.mxu0 0.0
      %730 = vmatpush.msra.mxu0 0.0
      %731 = vmatpush.msra.mxu0 0.0
      %732 = vmatpush.msra.mxu0 0.0
      %733 = vmatpush.msra.mxu0 0.0
      %734 = vmatpush.msra.mxu0 0.0
      %735 = vmatpush.msra.mxu0 0.0
      %736 = vmatpush.msra.mxu0 %v719
      %737 = vmatmul.f32.gmra.mxu0 %v717
      %v738 = vpop.f32.mrf.mxu0
      %v739 = vadd.f32 0.0, %v738
      %740 = vdwg.mxu0
      %v742 = vsel %vm583, %v739, 0
      %744 = vmatpush.msra.mxu0 0.0
      %745 = vmatpush.msra.mxu0 0.0
      %746 = vmatpush.msra.mxu0 0.0
      %747 = vmatpush.msra.mxu0 0.0
      %748 = vmatpush.msra.mxu0 0.0
      %749 = vmatpush.msra.mxu0 0.0
      %750 = vmatpush.msra.mxu0 0.0
      %751 = vmatpush.msra.mxu0 0.0
      %752 = vmatpush.msra.mxu0 0.0
      %753 = vmatpush.msra.mxu0 0.0
      %754 = vmatpush.msra.mxu0 0.0
      %755 = vmatpush.msra.mxu0 0.0
      %756 = vmatpush.msra.mxu0 0.0
      %757 = vmatpush.msra.mxu0 0.0
      %758 = vmatpush.msra.mxu0 0.0
      %759 = vmatpush.msra.mxu0 %v545
      %760 = vmatmul.f32.gmra.mxu0 %v742
      %v761 = vpop.f32.mrf.mxu0
      %v762 = vadd.f32 0.0, %v761
      %763 = vdwg.mxu0
      %v764 = vadd.f32 %v673, %v762
      %765 = vrot.lane.b32.xlu0 %v574, 112
      %v766 = vpop.permute.xlu0 %765
      %767 = vrot.lane.b32.xlu0 %v574, 80
      %v768 = vpop.permute.xlu0 %767
      %v769 = vsel %vm583, %v766, 0
      %v771 = vsel %vm583, %v768, 0
      %773 = vmatpush.xpose.msra.mxu0 0.0
      %774 = vmatpush.xpose.msra.mxu0 0.0
      %775 = vmatpush.xpose.msra.mxu0 0.0
      %776 = vmatpush.xpose.msra.mxu0 0.0
      %777 = vmatpush.xpose.msra.mxu0 0.0
      %778 = vmatpush.xpose.msra.mxu0 0.0
      %779 = vmatpush.xpose.msra.mxu0 0.0
      %780 = vmatpush.xpose.msra.mxu0 0.0
      %781 = vmatpush.xpose.msra.mxu0 0.0
      %782 = vmatpush.xpose.msra.mxu0 0.0
      %783 = vmatpush.xpose.msra.mxu0 0.0
      %784 = vmatpush.xpose.msra.mxu0 0.0
      %785 = vmatpush.xpose.msra.mxu0 0.0
      %786 = vmatpush.xpose.msra.mxu0 0.0
      %787 = vmatpush.xpose.msra.mxu0 0.0
      %788 = vmatpush.xpose.msra.mxu0 %v771
      %789 = vmatmul.f32.gmra.mxu0 %v769
      %v790 = vpop.f32.mrf.mxu0
      %v791 = vadd.f32 0.0, %v790
      %792 = vdwg.mxu0
      %v793 = vmul.f32 %v791, 0.35355338
      %v794 = vsel %vm609, %v793, -inf
      %795 = vmax.xlane.f32.xlu0 %v794
      %v796 = vpop.xlane.xlu0 %795
      %v797 = vsub.f32 %v793, %v796
      %v798 = vmul.f32 %v797, 1.442695
      %v799 = vpow.pop %v798
      %v800 = vsel %vm609, %v799, 0.0
      %801 = vadd.xlane.f32.xlu0 %v800
      %v802 = vpop.xlane.xlu0 %801
      %v803 = vrcp.pop %v802
      %v804 = vmul.f32 %v799, %v803
      %805 = vrot.lane.b32.xlu0 %v574, 48
      %v806 = vpop.permute.xlu0 %805
      %v808 = vsel %vm623, %v804, 0
      %v810 = vsel %vm627, %v806, 0
      %812 = vmatpush.msra.mxu0 0.0
      %813 = vmatpush.msra.mxu0 0.0
      %814 = vmatpush.msra.mxu0 0.0
      %815 = vmatpush.msra.mxu0 0.0
      %816 = vmatpush.msra.mxu0 0.0
      %817 = vmatpush.msra.mxu0 0.0
      %818 = vmatpush.msra.mxu0 0.0
      %819 = vmatpush.msra.mxu0 0.0
      %820 = vmatpush.msra.mxu0 0.0
      %821 = vmatpush.msra.mxu0 0.0
      %822 = vmatpush.msra.mxu0 0.0
      %823 = vmatpush.msra.mxu0 0.0
      %824 = vmatpush.msra.mxu0 0.0
      %825 = vmatpush.msra.mxu0 0.0
      %826 = vmatpush.msra.mxu0 0.0
      %827 = vmatpush.msra.mxu0 %v810
      %828 = vmatmul.f32.gmra.mxu0 %v808
      %v829 = vpop.f32.mrf.mxu0
      %v830 = vadd.f32 0.0, %v829
      %831 = vdwg.mxu0
      %v833 = vsel %vm583, %v830, 0
      %835 = vmatpush.msra.mxu0 0.0
      %836 = vmatpush.msra.mxu0 0.0
      %837 = vmatpush.msra.mxu0 0.0
      %838 = vmatpush.msra.mxu0 0.0
      %839 = vmatpush.msra.mxu0 0.0
      %840 = vmatpush.msra.mxu0 0.0
      %841 = vmatpush.msra.mxu0 0.0
      %842 = vmatpush.msra.mxu0 0.0
      %843 = vmatpush.msra.mxu0 0.0
      %844 = vmatpush.msra.mxu0 0.0
      %845 = vmatpush.msra.mxu0 0.0
      %846 = vmatpush.msra.mxu0 0.0
      %847 = vmatpush.msra.mxu0 0.0
      %848 = vmatpush.msra.mxu0 0.0
      %849 = vmatpush.msra.mxu0 0.0
      %850 = vmatpush.msra.mxu0 %v546
      %851 = vmatmul.f32.gmra.mxu0 %v833
      %v852 = vpop.f32.mrf.mxu0
      %v853 = vadd.f32 0.0, %v852
      %854 = vdwg.mxu0
      %v855 = vadd.f32 %v764, %v853
      %856 = vrot.lane.b32.xlu0 %v574, 104
      %v857 = vpop.permute.xlu0 %856
      %858 = vrot.lane.b32.xlu0 %v574, 72
      %v859 = vpop.permute.xlu0 %858
      %v860 = vsel %vm583, %v857, 0
      %v862 = vsel %vm583, %v859, 0
      %864 = vmatpush.xpose.msra.mxu0 0.0
      %865 = vmatpush.xpose.msra.mxu0 0.0
      %866 = vmatpush.xpose.msra.mxu0 0.0
      %867 = vmatpush.xpose.msra.mxu0 0.0
      %868 = vmatpush.xpose.msra.mxu0 0.0
      %869 = vmatpush.xpose.msra.mxu0 0.0
      %870 = vmatpush.xpose.msra.mxu0 0.0
      %871 = vmatpush.xpose.msra.mxu0 0.0
      %872 = vmatpush.xpose.msra.mxu0 0.0
      %873 = vmatpush.xpose.msra.mxu0 0.0
      %874 = vmatpush.xpose.msra.mxu0 0.0
      %875 = vmatpush.xpose.msra.mxu0 0.0
      %876 = vmatpush.xpose.msra.mxu0 0.0
      %877 = vmatpush.xpose.msra.mxu0 0.0
      %878 = vmatpush.xpose.msra.mxu0 0.0
      %879 = vmatpush.xpose.msra.mxu0 %v862
      %880 = vmatmul.f32.gmra.mxu0 %v860
      %v881 = vpop.f32.mrf.mxu0
      %v882 = vadd.f32 0.0, %v881
      %883 = vdwg.mxu0
      %v884 = vmul.f32 %v882, 0.35355338
      %v885 = vsel %vm609, %v884, -inf
      %886 = vmax.xlane.f32.xlu0 %v885
      %v887 = vpop.xlane.xlu0 %886
      %v888 = vsub.f32 %v884, %v887
      %v889 = vmul.f32 %v888, 1.442695
      %v890 = vpow.pop %v889
      %v891 = vsel %vm609, %v890, 0.0
      %892 = vadd.xlane.f32.xlu0 %v891
      %v893 = vpop.xlane.xlu0 %892
      %v894 = vrcp.pop %v893
      %v895 = vmul.f32 %v890, %v894
      %896 = vrot.lane.b32.xlu0 %v574, 40
      %v897 = vpop.permute.xlu0 %896
      %v899 = vsel %vm623, %v895, 0
      %v901 = vsel %vm627, %v897, 0
      %903 = vmatpush.msra.mxu0 0.0
      %904 = vmatpush.msra.mxu0 0.0
      %905 = vmatpush.msra.mxu0 0.0
      %906 = vmatpush.msra.mxu0 0.0
      %907 = vmatpush.msra.mxu0 0.0
      %908 = vmatpush.msra.mxu0 0.0
      %909 = vmatpush.msra.mxu0 0.0
      %910 = vmatpush.msra.mxu0 0.0
      %911 = vmatpush.msra.mxu0 0.0
      %912 = vmatpush.msra.mxu0 0.0
      %913 = vmatpush.msra.mxu0 0.0
      %914 = vmatpush.msra.mxu0 0.0
      %915 = vmatpush.msra.mxu0 0.0
      %916 = vmatpush.msra.mxu0 0.0
      %917 = vmatpush.msra.mxu0 0.0
      %918 = vmatpush.msra.mxu0 %v901
      %919 = vmatmul.f32.gmra.mxu0 %v899
      %v920 = vpop.f32.mrf.mxu0
      %v921 = vadd.f32 0.0, %v920
      %922 = vdwg.mxu0
      %v924 = vsel %vm583, %v921, 0
      %926 = vmatpush.msra.mxu0 0.0
      %927 = vmatpush.msra.mxu0 0.0
      %928 = vmatpush.msra.mxu0 0.0
      %929 = vmatpush.msra.mxu0 0.0
      %930 = vmatpush.msra.mxu0 0.0
      %931 = vmatpush.msra.mxu0 0.0
      %932 = vmatpush.msra.mxu0 0.0
      %933 = vmatpush.msra.mxu0 0.0
      %934 = vmatpush.msra.mxu0 0.0
      %935 = vmatpush.msra.mxu0 0.0
      %936 = vmatpush.msra.mxu0 0.0
      %937 = vmatpush.msra.mxu0 0.0
      %938 = vmatpush.msra.mxu0 0.0
      %939 = vmatpush.msra.mxu0 0.0
      %940 = vmatpush.msra.mxu0 0.0
      %941 = vmatpush.msra.mxu0 %v547
      %942 = vmatmul.f32.gmra.mxu0 %v924
      %v943 = vpop.f32.mrf.mxu0
      %v944 = vadd.f32 0.0, %v943
      %945 = vdwg.mxu0
      %v946 = vadd.f32 %v855, %v944
      %v947 = vadd.f32 %v502, %v946
      %v948 = vsel %vm505, %v947, 0.0
      %949 = vadd.xlane.f32.xlu0 %v948
      %v950 = vpop.xlane.xlu0 %949
      %v951 = vmul.f32 %v950, %v515
      %v952 = vsub.f32 %v947, %v951
      %v953 = vmul.f32 %v952, %v952
      %v954 = vsel %vm505, %v953, 0.0
      %955 = vadd.xlane.f32.xlu0 %v954
      %v956 = vpop.xlane.xlu0 %955
      %v957 = vmul.f32 %v956, %v515
      %v958 = vadd.f32 %v957, 1e-06
      %v959 = vrsqrt.pop %v958
      %v960 = vmul.f32 %v959, %v958
      %v961 = vmul.f32 %v960, %v959
      %v962 = vmul.f32 0.5, %v961
      %v963 = vsub.f32 1.5, %v962
      %v964 = vmul.f32 %v959, %v963
      %vm965 = vweird.f32 %v958
      %vm966 = vweird.f32 %v959
      %vm967 = vmor %vm965, %vm966
      %v968 = vsel %vm967, %v959, %v964
      %v969 = vmul.f32 %v952, %v968
      %v970 = vperm.slane %v504, 2
      %v971 = vmul.f32 %v969, %v970
      %v972 = vperm.slane %v504, 3
      %v973 = vadd.f32 %v971, %v972
      %v974 = vld [vmem:[%s8] sm:$0xff]
      %v975 = vld [vmem:[%s8 + $0x8] sm:$0xff]
      %v976 = vld [vmem:[%s8 + $0x10] sm:$0xff]
      %v977 = vld [vmem:[%s8 + $0x18] sm:$0xff]
      %v978 = vld [vmem:[%s9] sm:$0x1]
      %v979 = vld [vmem:[%s10] sm:$0xff]
      %v980 = vld [vmem:[%s10 + $0x8] sm:$0xff]
      %v981 = vld [vmem:[%s10 + $0x10] sm:$0xff]
      %v982 = vld [vmem:[%s10 + $0x18] sm:$0xff]
      %v983 = vld [vmem:[%s10 + $0x20] sm:$0xff]
      %v984 = vld [vmem:[%s10 + $0x28] sm:$0xff]
      %v985 = vld [vmem:[%s10 + $0x30] sm:$0xff]
      %v986 = vld [vmem:[%s10 + $0x38] sm:$0xff]
      %v987 = vld [vmem:[%s11] sm:$0x1]
      %v989 = vperm.slane %v978, 0
      %v992 = vsel %vm552, %v973, 0
      %994 = vmatpush.msra.mxu0 0.0
      %995 = vmatpush.msra.mxu0 0.0
      %996 = vmatpush.msra.mxu0 0.0
      %997 = vmatpush.msra.mxu0 0.0
      %998 = vmatpush.msra.mxu0 0.0
      %999 = vmatpush.msra.mxu0 0.0
      %1000 = vmatpush.msra.mxu0 0.0
      %1001 = vmatpush.msra.mxu0 0.0
      %1002 = vmatpush.msra.mxu0 0.0
      %1003 = vmatpush.msra.mxu0 0.0
      %1004 = vmatpush.msra.mxu0 0.0
      %1005 = vmatpush.msra.mxu0 0.0
      %1006 = vmatpush.msra.mxu0 %v977
      %1007 = vmatpush.msra.mxu0 %v976
      %1008 = vmatpush.msra.mxu0 %v975
      %1009 = vmatpush.msra.mxu0 %v974
      %1010 = vmatmul.f32.gmra.mxu0 %v992
      %v1011 = vpop.f32.mrf.mxu0
      %v1012 = vadd.f32 %v989, %v1011
      %1013 = vdwg.mxu0
      %v1014 = vmul.f32 %v1012, %v1012
      %v1015 = vmul.f32 %v1012, %v1014
      %v1016 = vmul.f32 %v1015, 0.044715
      %v1017 = vadd.f32 %v1012, %v1016
      %v1018 = vmul.f32 %v1017, 0.7978846
      %v1019 = vtanh.pop %v1018
      %v1020 = vadd.f32 %v1019, 1.0
      %v1021 = vmul.f32 %v1020, 0.5
      %v1022 = vmul.f32 %v1012, %v1021
      %v1024 = vperm.slane %v987, 0
      %vm1026 = vcmask 523264
      %v1028 = vsel %vm1026, %v1022, 0
      %1030 = vmatpush.msra.mxu0 0.0
      %1031 = vmatpush.msra.mxu0 0.0
      %1032 = vmatpush.msra.mxu0 0.0
      %1033 = vmatpush.msra.mxu0 0.0
      %1034 = vmatpush.msra.mxu0 0.0
      %1035 = vmatpush.msra.mxu0 0.0
      %1036 = vmatpush.msra.mxu0 0.0
      %1037 = vmatpush.msra.mxu0 0.0
      %1038 = vmatpush.msra.mxu0 %v986
      %1039 = vmatpush.msra.mxu0 %v985
      %1040 = vmatpush.msra.mxu0 %v984
      %1041 = vmatpush.msra.mxu0 %v983
      %1042 = vmatpush.msra.mxu0 %v982
      %1043 = vmatpush.msra.mxu0 %v981
      %1044 = vmatpush.msra.mxu0 %v980
      %1045 = vmatpush.msra.mxu0 %v979
      %1046 = vmatmul.f32.gmra.mxu0 %v1028
      %v1047 = vpop.f32.mrf.mxu0
      %v1048 = vadd.f32 %v1024, %v1047
      %1049 = vdwg.mxu0
      %v1050 = vadd.f32 %v947, %v1048
      %v1051 = vsel %vm505, %v1050, 0.0
      %1052 = vadd.xlane.f32.xlu0 %v1051
      %v1053 = vpop.xlane.xlu0 %1052
      %v1054 = vmul.f32 %v1053, %v515
      %v1055 = vsub.f32 %v1050, %v1054
      %v1056 = vmul.f32 %v1055, %v1055
      %v1057 = vsel %vm505, %v1056, 0.0
      %1058 = vadd.xlane.f32.xlu0 %v1057
      %v1059 = vpop.xlane.xlu0 %1058
      %v1060 = vmul.f32 %v1059, %v515
      %v1061 = vadd.f32 %v1060, 1e-06
      %v1062 = vrsqrt.pop %v1061
      %v1063 = vmul.f32 %v1062, %v1061
      %v1064 = vmul.f32 %v1063, %v1062
      %v1065 = vmul.f32 0.5, %v1064
      %v1066 = vsub.f32 1.5, %v1065
      %v1067 = vmul.f32 %v1062, %v1066
      %vm1068 = vweird.f32 %v1061
      %vm1069 = vweird.f32 %v1062
      %vm1070 = vmor %vm1068, %vm1069
      %v1071 = vsel %vm1070, %v1062, %v1067
      %v1072 = vmul.f32 %v1055, %v1071
      %v1073 = vperm.slane %v504, 4
      %v1074 = vmul.f32 %v1072, %v1073
      %v1075 = vperm.slane %v504, 5
      %v1076 = vadd.f32 %v1074, %v1075
      %1077 = vst.msk [vmem:[%s428] sm:$0x1f] %vm505, %v1076
      %p1078 = scmp.lt.s32.totalorder %s23, 1
      %s1079 = scalar_select %p1078, %s23, 1
      %s1080 = smul.addr %s1079, 8
      %s1081 = scalar_lea.vmem %s12, %s1080
      // Predicated region
      $region69: #{_forward_impl.3} parent=67 // pred_check
        %p1082 = pneg %p303
      $region70: #{_forward_impl.3} parent=67 // pred_check_branch
        %1084 = sbr.rel (%p1082) target = $region72
      $region71: #{_forward_impl.3} parent=67 // pred_region
        _
      $region72: #{_forward_impl.3} parent=67 // pred_fallthru
        _
    $region68: #{_forward_impl.3} parent=5 // pred_fallthru
      _
    %p1085 = scmp.le.s32.totalorder 2, %s18
    // Predicated region
    $region73: #{_forward_impl.3} parent=5 // pred_check
      %p1086 = pneg %p1085
    $region74: #{_forward_impl.3} parent=5 // pred_check_branch
      %1088 = sbr.rel (%p1086) target = $region76
    $region75: #{_forward_impl.3} parent=5 // pred_region
      %s1089 = ssub.s32 %s18, 2
      // Predicated region
      $region77: #{_forward_impl.3} parent=75 // pred_check
        %p1090 = pneg %p309
      $region78: #{_forward_impl.3} parent=75 // pred_check_branch
        %1092 = sbr.rel (%p1090) target = $region80
      $region79: #{_forward_impl.3} parent=75 // pred_region
        %p1093 = scmp.lt.s32.totalorder %s24, 1
        %s1094 = scalar_select %p1093, %s24, 1
        %s1095 = smul.addr %s1094, 8
        %s1096 = scalar_lea.vmem %s12, %s1095
      $region80: #{_forward_impl.3} parent=75 // pred_fallthru
        _
    $region76: #{_forward_impl.3} parent=5 // pred_fallthru
      _
  $region6: #{_forward_impl.3} parent=0 // loop_footer
    %s22 = sadd.s32 1, %s18
  $region7: #{_forward_impl.3} parent=0 // loop_footer_branch
    %17 = sbr.rel target = $region3
  $region8: #{_forward_impl.3} parent=0 // loop_exit
    _

// kernel: _forward_impl.5
$region0: #{_forward_impl.5}
  #allocation0 [shape = 'u32[]', space=smem, size = 0x4, offset = 0x4, fixed_abs, tag = 'smem constant byte address 0x4 - core index']
  #allocation1 [shape = 'u32[72,128]{1,0:T(1,128)}', space=vmem, size = 0x9000, scoped, tag = 'internal scratch']
  %s0 = inlined_call_operand.vmem [shape: f32[4,8,32], index: 0, kind: input, shape index: {}]
  %s1 = inlined_call_operand.vmem [shape: f32[4,1,8], index: 1, kind: input, shape index: {}]
  %s2 = inlined_call_operand.vmem [shape: f32[4,5,32], index: 2, kind: input, shape index: {}]
  %s3 = inlined_call_operand.vmem [shape: f32[6,32], index: 3, kind: input, shape index: {}]
  %s4 = inlined_call_operand.vmem [shape: f32[32,96], index: 4, kind: input, shape index: {}]
  %s5 = inlined_call_operand.vmem [shape: f32[1,96], index: 5, kind: input, shape index: {}]
  %s6 = inlined_call_operand.vmem [shape: f32[32,32], index: 6, kind: input, shape index: {}]
  %s7 = inlined_call_operand.vmem [shape: f32[1,32], index: 7, kind: input, shape index: {}]
  %s8 = inlined_call_operand.vmem [shape: f32[32,96], index: 8, kind: input, shape index: {}]
  %s9 = inlined_call_operand.vmem [shape: f32[1,96], index: 9, kind: input, shape index: {}]
  %s10 = inlined_call_operand.vmem [shape: f32[32,32], index: 10, kind: input, shape index: {}]
  %s11 = inlined_call_operand.vmem [shape: f32[1,32], index: 11, kind: input, shape index: {}]
  %s12 = inlined_call_operand.vmem [shape: f32[32,64], index: 12, kind: input, shape index: {}]
  %s13 = inlined_call_operand.vmem [shape: f32[1,64], index: 13, kind: input, shape index: {}]
  %s14 = inlined_call_operand.vmem [shape: f32[64,32], index: 14, kind: input, shape index: {}]
  %s15 = inlined_call_operand.vmem [shape: f32[1,32], index: 15, kind: input, shape index: {}]
  %s16 = inlined_call_operand.vmem [shape: f32[32,2], index: 16, kind: input, shape index: {}]
  %s17 = inlined_call_operand.vmem [shape: f32[1,2], index: 17, kind: input, shape index: {}]
  %s18 = inlined_call_operand.vmem [shape: f32[4,1,2], index: 18, kind: output, shape index: {}]
  %s19 = sld [smem:[#allocation0]]
  $region105: #{_forward_impl.5} parent=0
    _
  %s21 = ssub.s32 1, %s19
  %s22 = scalar_select 0, %s21, %s19
  loop: start=0, step=1, limit=6
  $region2: #{_forward_impl.5} parent=0 // loop_pre_header
    _
  $region3: #{_forward_impl.5} parent=0 // loop_header
    %s24 = sphi 0, %s28
    %p25 = scmp.ge.s32.totalorder %s24, 6
    %s34 = sphi 0, %s36
    %s37 = sphi 0, %s34
    %s38 = sphi 0, %s37
    %s54 = sphi 0, %s38
    %s60 = sphi 0, %s62
    %s63 = sphi 0, %s60
    %s64 = sphi 0, %s63
    %s80 = sphi 0, %s64
    %s86 = sphi 0, %s88
    %s89 = sphi 0, %s86
    %s90 = sphi 0, %s89
    %s106 = sphi 0, %s90
    %s110 = sphi 0, %s110
    %s112 = sphi 0, %s110
    %s113 = sphi 0, %s112
    %s127 = sphi 0, %s113
    %s131 = sphi 0, %s131
    %s133 = sphi 0, %s131
    %s134 = sphi 0, %s133
    %s148 = sphi 0, %s134
    %s152 = sphi 0, %s152
    %s154 = sphi 0, %s152
    %s155 = sphi 0, %s154
    %s169 = sphi 0, %s155
    %s173 = sphi 0, %s173
    %s175 = sphi 0, %s173
    %s176 = sphi 0, %s175
    %s190 = sphi 0, %s176
    %s194 = sphi 0, %s194
    %s196 = sphi 0, %s194
    %s197 = sphi 0, %s196
    %s211 = sphi 0, %s197
    %s215 = sphi 0, %s215
    %s217 = sphi 0, %s215
    %s218 = sphi 0, %s217
    %s232 = sphi 0, %s218
    %s236 = sphi 0, %s236
    %s238 = sphi 0, %s236
    %s239 = sphi 0, %s238
    %s253 = sphi 0, %s239
    %s257 = sphi 0, %s257
    %s259 = sphi 0, %s257
    %s260 = sphi 0, %s259
    %s274 = sphi 0, %s260
    %s278 = sphi 0, %s278
    %s280 = sphi 0, %s278
    %s281 = sphi 0, %s280
    %s295 = sphi 0, %s281
    %s299 = sphi 0, %s299
    %s301 = sphi 0, %s299
    %s302 = sphi 0, %s301
    %s316 = sphi 0, %s302
    %s320 = sphi 0, %s320
    %s322 = sphi 0, %s320
    %s323 = sphi 0, %s322
    %s337 = sphi 0, %s323
    %s341 = sphi 0, %s341
    %s343 = sphi 0, %s341
    %s344 = sphi 0, %s343
    %s358 = sphi 0, %s344
    %s362 = sphi 0, %s362
    %s364 = sphi 0, %s362
    %s365 = sphi 0, %s364
    %s379 = sphi 0, %s365
    %s383 = sphi 0, %s383
    %s385 = sphi 0, %s383
    %s386 = sphi 0, %s385
    %s400 = sphi 0, %s386
    %s404 = sphi 0, %s404
    %s406 = sphi 0, %s404
    %s407 = sphi 0, %s406
    %s421 = sphi 0, %s407
    %s427 = sphi 0, %s429
    %s430 = sphi 0, %s427
    %s431 = sphi 0, %s430
    %s447 = sphi 0, %s431
  $region4: #{_forward_impl.5} parent=0 // loop_header_branch
    %27 = sbr.rel (%p25) target = $region8
  $region5: #{_forward_impl.5} parent=0 // loop_body
    %s29 = ssub.s32 %s24, 1
    %s30 = ssub.s32 %s24, 2
    %s31 = sadd.s32 %s24, 1
    %s32 = ssub.s32 %s24, %s31
    %p33 = scmp.eq.s32.totalorder %s32, 0
    %s35 = sadd.s32 %s34, 1
    %s36 = scalar_select %p33, %s34, %s35
    %p39 = pneg %p33
    %p40 = scmp.eq.s32.totalorder %s24, 3
    %p41 = por %p39, %p40
    %p42 = scmp.ne.s32.totalorder %s34, %s37
    %p43 = scmp.eq.s32.totalorder %s24, 0
    %p44 = por %p42, %p43
    %p45 = scmp.ne.s32.totalorder %s34, %s37
    %p46 = scmp.eq.s32.totalorder %s29, 3
    %p47 = por %p45, %p46
    %p48 = scmp.ne.s32.totalorder %s37, %s38
    %p49 = scmp.eq.s32.totalorder %s29, 0
    %p50 = por %p48, %p49
    %p51 = scmp.ne.s32.totalorder %s37, %s38
    %p52 = scmp.eq.s32.totalorder %s30, 3
    %p53 = por %p51, %p52
    %p55 = scmp.ne.s32.totalorder %s38, %s54
    %p56 = scmp.eq.s32.totalorder %s30, 0
    %p57 = por %p55, %p56
    %s58 = ssub.s32 %s24, %s31
    %p59 = scmp.eq.s32.totalorder %s58, 0
    %s61 = sadd.s32 %s60, 1
    %s62 = scalar_select %p59, %s60, %s61
    %p65 = pneg %p59
    %p66 = scmp.eq.s32.totalorder %s24, 3
    %p67 = por %p65, %p66
    %p68 = scmp.ne.s32.totalorder %s60, %s63
    %p69 = scmp.eq.s32.totalorder %s24, 0
    %p70 = por %p68, %p69
    %p71 = scmp.ne.s32.totalorder %s60, %s63
    %p72 = scmp.eq.s32.totalorder %s29, 3
    %p73 = por %p71, %p72
    %p74 = scmp.ne.s32.totalorder %s63, %s64
    %p75 = scmp.eq.s32.totalorder %s29, 0
    %p76 = por %p74, %p75
    %p77 = scmp.ne.s32.totalorder %s63, %s64
    %p78 = scmp.eq.s32.totalorder %s30, 3
    %p79 = por %p77, %p78
    %p81 = scmp.ne.s32.totalorder %s64, %s80
    %p82 = scmp.eq.s32.totalorder %s30, 0
    %p83 = por %p81, %p82
    %s84 = ssub.s32 %s24, %s31
    %p85 = scmp.eq.s32.totalorder %s84, 0
    %s87 = sadd.s32 %s86, 1
    %s88 = scalar_select %p85, %s86, %s87
    %p91 = pneg %p85
    %p92 = scmp.eq.s32.totalorder %s24, 3
    %p93 = por %p91, %p92
    %p94 = scmp.ne.s32.totalorder %s86, %s89
    %p95 = scmp.eq.s32.totalorder %s24, 0
    %p96 = por %p94, %p95
    %p97 = scmp.ne.s32.totalorder %s86, %s89
    %p98 = scmp.eq.s32.totalorder %s29, 3
    %p99 = por %p97, %p98
    %p100 = scmp.ne.s32.totalorder %s89, %s90
    %p101 = scmp.eq.s32.totalorder %s29, 0
    %p102 = por %p100, %p101
    %p103 = scmp.ne.s32.totalorder %s89, %s90
    %p104 = scmp.eq.s32.totalorder %s30, 3
    %p105 = por %p103, %p104
    %p107 = scmp.ne.s32.totalorder %s90, %s106
    %p108 = scmp.eq.s32.totalorder %s30, 0
    %p109 = por %p107, %p108
    %s111 = sadd.s32 %s110, 1
    %p114 = scmp.eq.s32.totalorder %s24, 3
    %p115 = scmp.ne.s32.totalorder %s110, %s112
    %p116 = scmp.eq.s32.totalorder %s24, 0
    %p117 = por %p115, %p116
    %p118 = scmp.ne.s32.totalorder %s110, %s112
    %p119 = scmp.eq.s32.totalorder %s29, 3
    %p120 = por %p118, %p119
    %p121 = scmp.ne.s32.totalorder %s112, %s113
    %p122 = scmp.eq.s32.totalorder %s29, 0
    %p123 = por %p121, %p122
    %p124 = scmp.ne.s32.totalorder %s112, %s113
    %p125 = scmp.eq.s32.totalorder %s30, 3
    %p126 = por %p124, %p125
    %p128 = scmp.ne.s32.totalorder %s113, %s127
    %p129 = scmp.eq.s32.totalorder %s30, 0
    %p130 = por %p128, %p129
    %s132 = sadd.s32 %s131, 1
    %p135 = scmp.eq.s32.totalorder %s24, 3
    %p136 = scmp.ne.s32.totalorder %s131, %s133
    %p137 = scmp.eq.s32.totalorder %s24, 0
    %p138 = por %p136, %p137
    %p139 = scmp.ne.s32.totalorder %s131, %s133
    %p140 = scmp.eq.s32.totalorder %s29, 3
    %p141 = por %p139, %p140
    %p142 = scmp.ne.s32.totalorder %s133, %s134
    %p143 = scmp.eq.s32.totalorder %s29, 0
    %p144 = por %p142, %p143
    %p145 = scmp.ne.s32.totalorder %s133, %s134
    %p146 = scmp.eq.s32.totalorder %s30, 3
    %p147 = por %p145, %p146
    %p149 = scmp.ne.s32.totalorder %s134, %s148
    %p150 = scmp.eq.s32.totalorder %s30, 0
    %p151 = por %p149, %p150
    %s153 = sadd.s32 %s152, 1
    %p156 = scmp.eq.s32.totalorder %s24, 3
    %p157 = scmp.ne.s32.totalorder %s152, %s154
    %p158 = scmp.eq.s32.totalorder %s24, 0
    %p159 = por %p157, %p158
    %p160 = scmp.ne.s32.totalorder %s152, %s154
    %p161 = scmp.eq.s32.totalorder %s29, 3
    %p162 = por %p160, %p161
    %p163 = scmp.ne.s32.totalorder %s154, %s155
    %p164 = scmp.eq.s32.totalorder %s29, 0
    %p165 = por %p163, %p164
    %p166 = scmp.ne.s32.totalorder %s154, %s155
    %p167 = scmp.eq.s32.totalorder %s30, 3
    %p168 = por %p166, %p167
    %p170 = scmp.ne.s32.totalorder %s155, %s169
    %p171 = scmp.eq.s32.totalorder %s30, 0
    %p172 = por %p170, %p171
    %s174 = sadd.s32 %s173, 1
    %p177 = scmp.eq.s32.totalorder %s24, 3
    %p178 = scmp.ne.s32.totalorder %s173, %s175
    %p179 = scmp.eq.s32.totalorder %s24, 0
    %p180 = por %p178, %p179
    %p181 = scmp.ne.s32.totalorder %s173, %s175
    %p182 = scmp.eq.s32.totalorder %s29, 3
    %p183 = por %p181, %p182
    %p184 = scmp.ne.s32.totalorder %s175, %s176
    %p185 = scmp.eq.s32.totalorder %s29, 0
    %p186 = por %p184, %p185
    %p187 = scmp.ne.s32.totalorder %s175, %s176
    %p188 = scmp.eq.s32.totalorder %s30, 3
    %p189 = por %p187, %p188
    %p191 = scmp.ne.s32.totalorder %s176, %s190
    %p192 = scmp.eq.s32.totalorder %s30, 0
    %p193 = por %p191, %p192
    %s195 = sadd.s32 %s194, 1
    %p198 = scmp.eq.s32.totalorder %s24, 3
    %p199 = scmp.ne.s32.totalorder %s194, %s196
    %p200 = scmp.eq.s32.totalorder %s24, 0
    %p201 = por %p199, %p200
    %p202 = scmp.ne.s32.totalorder %s194, %s196
    %p203 = scmp.eq.s32.totalorder %s29, 3
    %p204 = por %p202, %p203
    %p205 = scmp.ne.s32.totalorder %s196, %s197
    %p206 = scmp.eq.s32.totalorder %s29, 0
    %p207 = por %p205, %p206
    %p208 = scmp.ne.s32.totalorder %s196, %s197
    %p209 = scmp.eq.s32.totalorder %s30, 3
    %p210 = por %p208, %p209
    %p212 = scmp.ne.s32.totalorder %s197, %s211
    %p213 = scmp.eq.s32.totalorder %s30, 0
    %p214 = por %p212, %p213
    %s216 = sadd.s32 %s215, 1
    %p219 = scmp.eq.s32.totalorder %s24, 3
    %p220 = scmp.ne.s32.totalorder %s215, %s217
    %p221 = scmp.eq.s32.totalorder %s24, 0
    %p222 = por %p220, %p221
    %p223 = scmp.ne.s32.totalorder %s215, %s217
    %p224 = scmp.eq.s32.totalorder %s29, 3
    %p225 = por %p223, %p224
    %p226 = scmp.ne.s32.totalorder %s217, %s218
    %p227 = scmp.eq.s32.totalorder %s29, 0
    %p228 = por %p226, %p227
    %p229 = scmp.ne.s32.totalorder %s217, %s218
    %p230 = scmp.eq.s32.totalorder %s30, 3
    %p231 = por %p229, %p230
    %p233 = scmp.ne.s32.totalorder %s218, %s232
    %p234 = scmp.eq.s32.totalorder %s30, 0
    %p235 = por %p233, %p234
    %s237 = sadd.s32 %s236, 1
    %p240 = scmp.eq.s32.totalorder %s24, 3
    %p241 = scmp.ne.s32.totalorder %s236, %s238
    %p242 = scmp.eq.s32.totalorder %s24, 0
    %p243 = por %p241, %p242
    %p244 = scmp.ne.s32.totalorder %s236, %s238
    %p245 = scmp.eq.s32.totalorder %s29, 3
    %p246 = por %p244, %p245
    %p247 = scmp.ne.s32.totalorder %s238, %s239
    %p248 = scmp.eq.s32.totalorder %s29, 0
    %p249 = por %p247, %p248
    %p250 = scmp.ne.s32.totalorder %s238, %s239
    %p251 = scmp.eq.s32.totalorder %s30, 3
    %p252 = por %p250, %p251
    %p254 = scmp.ne.s32.totalorder %s239, %s253
    %p255 = scmp.eq.s32.totalorder %s30, 0
    %p256 = por %p254, %p255
    %s258 = sadd.s32 %s257, 1
    %p261 = scmp.eq.s32.totalorder %s24, 3
    %p262 = scmp.ne.s32.totalorder %s257, %s259
    %p263 = scmp.eq.s32.totalorder %s24, 0
    %p264 = por %p262, %p263
    %p265 = scmp.ne.s32.totalorder %s257, %s259
    %p266 = scmp.eq.s32.totalorder %s29, 3
    %p267 = por %p265, %p266
    %p268 = scmp.ne.s32.totalorder %s259, %s260
    %p269 = scmp.eq.s32.totalorder %s29, 0
    %p270 = por %p268, %p269
    %p271 = scmp.ne.s32.totalorder %s259, %s260
    %p272 = scmp.eq.s32.totalorder %s30, 3
    %p273 = por %p271, %p272
    %p275 = scmp.ne.s32.totalorder %s260, %s274
    %p276 = scmp.eq.s32.totalorder %s30, 0
    %p277 = por %p275, %p276
    %s279 = sadd.s32 %s278, 1
    %p282 = scmp.eq.s32.totalorder %s24, 3
    %p283 = scmp.ne.s32.totalorder %s278, %s280
    %p284 = scmp.eq.s32.totalorder %s24, 0
    %p285 = por %p283, %p284
    %p286 = scmp.ne.s32.totalorder %s278, %s280
    %p287 = scmp.eq.s32.totalorder %s29, 3
    %p288 = por %p286, %p287
    %p289 = scmp.ne.s32.totalorder %s280, %s281
    %p290 = scmp.eq.s32.totalorder %s29, 0
    %p291 = por %p289, %p290
    %p292 = scmp.ne.s32.totalorder %s280, %s281
    %p293 = scmp.eq.s32.totalorder %s30, 3
    %p294 = por %p292, %p293
    %p296 = scmp.ne.s32.totalorder %s281, %s295
    %p297 = scmp.eq.s32.totalorder %s30, 0
    %p298 = por %p296, %p297
    %s300 = sadd.s32 %s299, 1
    %p303 = scmp.eq.s32.totalorder %s24, 3
    %p304 = scmp.ne.s32.totalorder %s299, %s301
    %p305 = scmp.eq.s32.totalorder %s24, 0
    %p306 = por %p304, %p305
    %p307 = scmp.ne.s32.totalorder %s299, %s301
    %p308 = scmp.eq.s32.totalorder %s29, 3
    %p309 = por %p307, %p308
    %p310 = scmp.ne.s32.totalorder %s301, %s302
    %p311 = scmp.eq.s32.totalorder %s29, 0
    %p312 = por %p310, %p311
    %p313 = scmp.ne.s32.totalorder %s301, %s302
    %p314 = scmp.eq.s32.totalorder %s30, 3
    %p315 = por %p313, %p314
    %p317 = scmp.ne.s32.totalorder %s302, %s316
    %p318 = scmp.eq.s32.totalorder %s30, 0
    %p319 = por %p317, %p318
    %s321 = sadd.s32 %s320, 1
    %p324 = scmp.eq.s32.totalorder %s24, 3
    %p325 = scmp.ne.s32.totalorder %s320, %s322
    %p326 = scmp.eq.s32.totalorder %s24, 0
    %p327 = por %p325, %p326
    %p328 = scmp.ne.s32.totalorder %s320, %s322
    %p329 = scmp.eq.s32.totalorder %s29, 3
    %p330 = por %p328, %p329
    %p331 = scmp.ne.s32.totalorder %s322, %s323
    %p332 = scmp.eq.s32.totalorder %s29, 0
    %p333 = por %p331, %p332
    %p334 = scmp.ne.s32.totalorder %s322, %s323
    %p335 = scmp.eq.s32.totalorder %s30, 3
    %p336 = por %p334, %p335
    %p338 = scmp.ne.s32.totalorder %s323, %s337
    %p339 = scmp.eq.s32.totalorder %s30, 0
    %p340 = por %p338, %p339
    %s342 = sadd.s32 %s341, 1
    %p345 = scmp.eq.s32.totalorder %s24, 3
    %p346 = scmp.ne.s32.totalorder %s341, %s343
    %p347 = scmp.eq.s32.totalorder %s24, 0
    %p348 = por %p346, %p347
    %p349 = scmp.ne.s32.totalorder %s341, %s343
    %p350 = scmp.eq.s32.totalorder %s29, 3
    %p351 = por %p349, %p350
    %p352 = scmp.ne.s32.totalorder %s343, %s344
    %p353 = scmp.eq.s32.totalorder %s29, 0
    %p354 = por %p352, %p353
    %p355 = scmp.ne.s32.totalorder %s343, %s344
    %p356 = scmp.eq.s32.totalorder %s30, 3
    %p357 = por %p355, %p356
    %p359 = scmp.ne.s32.totalorder %s344, %s358
    %p360 = scmp.eq.s32.totalorder %s30, 0
    %p361 = por %p359, %p360
    %s363 = sadd.s32 %s362, 1
    %p366 = scmp.eq.s32.totalorder %s24, 3
    %p367 = scmp.ne.s32.totalorder %s362, %s364
    %p368 = scmp.eq.s32.totalorder %s24, 0
    %p369 = por %p367, %p368
    %p370 = scmp.ne.s32.totalorder %s362, %s364
    %p371 = scmp.eq.s32.totalorder %s29, 3
    %p372 = por %p370, %p371
    %p373 = scmp.ne.s32.totalorder %s364, %s365
    %p374 = scmp.eq.s32.totalorder %s29, 0
    %p375 = por %p373, %p374
    %p376 = scmp.ne.s32.totalorder %s364, %s365
    %p377 = scmp.eq.s32.totalorder %s30, 3
    %p378 = por %p376, %p377
    %p380 = scmp.ne.s32.totalorder %s365, %s379
    %p381 = scmp.eq.s32.totalorder %s30, 0
    %p382 = por %p380, %p381
    %s384 = sadd.s32 %s383, 1
    %p387 = scmp.eq.s32.totalorder %s24, 3
    %p388 = scmp.ne.s32.totalorder %s383, %s385
    %p389 = scmp.eq.s32.totalorder %s24, 0
    %p390 = por %p388, %p389
    %p391 = scmp.ne.s32.totalorder %s383, %s385
    %p392 = scmp.eq.s32.totalorder %s29, 3
    %p393 = por %p391, %p392
    %p394 = scmp.ne.s32.totalorder %s385, %s386
    %p395 = scmp.eq.s32.totalorder %s29, 0
    %p396 = por %p394, %p395
    %p397 = scmp.ne.s32.totalorder %s385, %s386
    %p398 = scmp.eq.s32.totalorder %s30, 3
    %p399 = por %p397, %p398
    %p401 = scmp.ne.s32.totalorder %s386, %s400
    %p402 = scmp.eq.s32.totalorder %s30, 0
    %p403 = por %p401, %p402
    %s405 = sadd.s32 %s404, 1
    %p408 = scmp.eq.s32.totalorder %s24, 3
    %p409 = scmp.ne.s32.totalorder %s404, %s406
    %p410 = scmp.eq.s32.totalorder %s24, 0
    %p411 = por %p409, %p410
    %p412 = scmp.ne.s32.totalorder %s404, %s406
    %p413 = scmp.eq.s32.totalorder %s29, 3
    %p414 = por %p412, %p413
    %p415 = scmp.ne.s32.totalorder %s406, %s407
    %p416 = scmp.eq.s32.totalorder %s29, 0
    %p417 = por %p415, %p416
    %p418 = scmp.ne.s32.totalorder %s406, %s407
    %p419 = scmp.eq.s32.totalorder %s30, 3
    %p420 = por %p418, %p419
    %p422 = scmp.ne.s32.totalorder %s407, %s421
    %p423 = scmp.eq.s32.totalorder %s30, 0
    %p424 = por %p422, %p423
    %s425 = ssub.s32 %s24, %s31
    %p426 = scmp.eq.s32.totalorder %s425, 0
    %s428 = sadd.s32 %s427, 1
    %s429 = scalar_select %p426, %s427, %s428
    %p432 = pneg %p426
    %p433 = scmp.eq.s32.totalorder %s24, 3
    %p434 = por %p432, %p433
    %p435 = scmp.ne.s32.totalorder %s427, %s430
    %p436 = scmp.eq.s32.totalorder %s24, 0
    %p437 = por %p435, %p436
    %p438 = scmp.ne.s32.totalorder %s427, %s430
    %p439 = scmp.eq.s32.totalorder %s29, 3
    %p440 = por %p438, %p439
    %p441 = scmp.ne.s32.totalorder %s430, %s431
    %p442 = scmp.eq.s32.totalorder %s29, 0
    %p443 = por %p441, %p442
    %p444 = scmp.ne.s32.totalorder %s430, %s431
    %p445 = scmp.eq.s32.totalorder %s30, 3
    %p446 = por %p444, %p445
    %p448 = scmp.ne.s32.totalorder %s431, %s447
    %p449 = scmp.eq.s32.totalorder %s30, 0
    %p450 = por %p448, %p449
    %p451 = scmp.le.s32.totalorder 1, %s24
    %p452 = scmp.lt.s32.totalorder %s24, 5
    %p453 = pnand %p451, %p452
    %p454 = pneg %p453
    // Predicated region
    $region9: #{_forward_impl.5} parent=5 // pred_check
      _
    $region10: #{_forward_impl.5} parent=5 // pred_check_branch
      %456 = sbr.rel (%p453) target = $region12
    $region11: #{_forward_impl.5} parent=5 // pred_region
      %s457 = ssub.s32 %s24, 1
      // Predicated region
      $region13: #{_forward_impl.5} parent=11 // pred_check
        %p458 = pneg %p123
      $region14: #{_forward_impl.5} parent=11 // pred_check_branch
        %460 = sbr.rel (%p458) target = $region16
      $region15: #{_forward_impl.5} parent=11 // pred_region
        _
      $region16: #{_forward_impl.5} parent=11 // pred_fallthru
        _
      // Predicated region
      $region17: #{_forward_impl.5} parent=11 // pred_check
        %p461 = pneg %p144
      $region18: #{_forward_impl.5} parent=11 // pred_check_branch
        %463 = sbr.rel (%p461) target = $region20
      $region19: #{_forward_impl.5} parent=11 // pred_region
        _
      $region20: #{_forward_impl.5} parent=11 // pred_fallthru
        _
      // Predicated region
      $region21: #{_forward_impl.5} parent=11 // pred_check
        %p464 = pneg %p165
      $region22: #{_forward_impl.5} parent=11 // pred_check_branch
        %466 = sbr.rel (%p464) target = $region24
      $region23: #{_forward_impl.5} parent=11 // pred_region
        _
      $region24: #{_forward_impl.5} parent=11 // pred_fallthru
        _
      // Predicated region
      $region25: #{_forward_impl.5} parent=11 // pred_check
        %p467 = pneg %p186
      $region26: #{_forward_impl.5} parent=11 // pred_check_branch
        %469 = sbr.rel (%p467) target = $region28
      $region27: #{_forward_impl.5} parent=11 // pred_region
        _
      $region28: #{_forward_impl.5} parent=11 // pred_fallthru
        _
      // Predicated region
      $region29: #{_forward_impl.5} parent=11 // pred_check
        %p470 = pneg %p207
      $region30: #{_forward_impl.5} parent=11 // pred_check_branch
        %472 = sbr.rel (%p470) target = $region32
      $region31: #{_forward_impl.5} parent=11 // pred_region
        _
      $region32: #{_forward_impl.5} parent=11 // pred_fallthru
        _
      // Predicated region
      $region33: #{_forward_impl.5} parent=11 // pred_check
        %p473 = pneg %p228
      $region34: #{_forward_impl.5} parent=11 // pred_check_branch
        %475 = sbr.rel (%p473) target = $region36
      $region35: #{_forward_impl.5} parent=11 // pred_region
        _
      $region36: #{_forward_impl.5} parent=11 // pred_fallthru
        _
      // Predicated region
      $region37: #{_forward_impl.5} parent=11 // pred_check
        %p476 = pneg %p249
      $region38: #{_forward_impl.5} parent=11 // pred_check_branch
        %478 = sbr.rel (%p476) target = $region40
      $region39: #{_forward_impl.5} parent=11 // pred_region
        _
      $region40: #{_forward_impl.5} parent=11 // pred_fallthru
        _
      // Predicated region
      $region41: #{_forward_impl.5} parent=11 // pred_check
        %p479 = pneg %p270
      $region42: #{_forward_impl.5} parent=11 // pred_check_branch
        %481 = sbr.rel (%p479) target = $region44
      $region43: #{_forward_impl.5} parent=11 // pred_region
        _
      $region44: #{_forward_impl.5} parent=11 // pred_fallthru
        _
      // Predicated region
      $region45: #{_forward_impl.5} parent=11 // pred_check
        %p482 = pneg %p291
      $region46: #{_forward_impl.5} parent=11 // pred_check_branch
        %484 = sbr.rel (%p482) target = $region48
      $region47: #{_forward_impl.5} parent=11 // pred_region
        _
      $region48: #{_forward_impl.5} parent=11 // pred_fallthru
        _
      // Predicated region
      $region49: #{_forward_impl.5} parent=11 // pred_check
        %p485 = pneg %p312
      $region50: #{_forward_impl.5} parent=11 // pred_check_branch
        %487 = sbr.rel (%p485) target = $region52
      $region51: #{_forward_impl.5} parent=11 // pred_region
        _
      $region52: #{_forward_impl.5} parent=11 // pred_fallthru
        _
      // Predicated region
      $region53: #{_forward_impl.5} parent=11 // pred_check
        %p488 = pneg %p333
      $region54: #{_forward_impl.5} parent=11 // pred_check_branch
        %490 = sbr.rel (%p488) target = $region56
      $region55: #{_forward_impl.5} parent=11 // pred_region
        _
      $region56: #{_forward_impl.5} parent=11 // pred_fallthru
        _
      // Predicated region
      $region57: #{_forward_impl.5} parent=11 // pred_check
        %p491 = pneg %p354
      $region58: #{_forward_impl.5} parent=11 // pred_check_branch
        %493 = sbr.rel (%p491) target = $region60
      $region59: #{_forward_impl.5} parent=11 // pred_region
        _
      $region60: #{_forward_impl.5} parent=11 // pred_fallthru
        _
      // Predicated region
      $region61: #{_forward_impl.5} parent=11 // pred_check
        %p494 = pneg %p375
      $region62: #{_forward_impl.5} parent=11 // pred_check_branch
        %496 = sbr.rel (%p494) target = $region64
      $region63: #{_forward_impl.5} parent=11 // pred_region
        _
      $region64: #{_forward_impl.5} parent=11 // pred_fallthru
        _
      // Predicated region
      $region65: #{_forward_impl.5} parent=11 // pred_check
        %p497 = pneg %p396
      $region66: #{_forward_impl.5} parent=11 // pred_check_branch
        %499 = sbr.rel (%p497) target = $region68
      $region67: #{_forward_impl.5} parent=11 // pred_region
        _
      $region68: #{_forward_impl.5} parent=11 // pred_fallthru
        _
      // Predicated region
      $region69: #{_forward_impl.5} parent=11 // pred_check
        %p500 = pneg %p417
      $region70: #{_forward_impl.5} parent=11 // pred_check_branch
        %502 = sbr.rel (%p500) target = $region72
      $region71: #{_forward_impl.5} parent=11 // pred_region
        _
      $region72: #{_forward_impl.5} parent=11 // pred_fallthru
        _
    $region12: #{_forward_impl.5} parent=5 // pred_fallthru
      _
    %p503 = scmp.lt.s32.totalorder %s24, 4
    // Predicated region
    $region73: #{_forward_impl.5} parent=5 // pred_check
      %p504 = pneg %p503
    $region74: #{_forward_impl.5} parent=5 // pred_check_branch
      %506 = sbr.rel (%p504) target = $region76
    $region75: #{_forward_impl.5} parent=5 // pred_region
      // Predicated region
      $region77: #{_forward_impl.5} parent=75 // pred_check
        %p507 = pneg %p44
      $region78: #{_forward_impl.5} parent=75 // pred_check_branch
        %509 = sbr.rel (%p507) target = $region80
      $region79: #{_forward_impl.5} parent=75 // pred_region
        %p510 = scmp.lt.s32.totalorder %s24, 3
        %s511 = scalar_select %p510, %s24, 3
        %s512 = smul.addr %s511, 8
        %s513 = scalar_lea.vmem %s0, %s512
      $region80: #{_forward_impl.5} parent=75 // pred_fallthru
        _
      // Predicated region
      $region81: #{_forward_impl.5} parent=75 // pred_check
        %p514 = pneg %p70
      $region82: #{_forward_impl.5} parent=75 // pred_check_branch
        %516 = sbr.rel (%p514) target = $region84
      $region83: #{_forward_impl.5} parent=75 // pred_region
        %p517 = scmp.lt.s32.totalorder %s24, 3
        %s518 = scalar_select %p517, %s24, 3
        %s519 = scalar_lea.vmem %s1, %s518
      $region84: #{_forward_impl.5} parent=75 // pred_fallthru
        _
      // Predicated region
      $region85: #{_forward_impl.5} parent=75 // pred_check
        %p520 = pneg %p96
      $region86: #{_forward_impl.5} parent=75 // pred_check_branch
        %522 = sbr.rel (%p520) target = $region88
      $region87: #{_forward_impl.5} parent=75 // pred_region
        %p523 = scmp.lt.s32.totalorder %s24, 3
        %s524 = scalar_select %p523, %s24, 3
        %s525 = smul.addr %s524, 8
        %s526 = scalar_lea.vmem %s2, %s525
      $region88: #{_forward_impl.5} parent=75 // pred_fallthru
        _
    $region76: #{_forward_impl.5} parent=5 // pred_fallthru
      _
    %p527 = scmp.le.s32.totalorder 1, %s24
    %p528 = scmp.lt.s32.totalorder %s24, 5
    %p529 = pnand %p527, %p528
    %p530 = pneg %p529
    // Predicated region
    $region89: #{_forward_impl.5} parent=5 // pred_check
      _
    $region90: #{_forward_impl.5} parent=5 // pred_check_branch
      %532 = sbr.rel (%p529) target = $region92
    $region91: #{_forward_impl.5} parent=5 // pred_region
      %s533 = ssub.s32 %s24, 1
      %p534 = scmp.lt.s32.totalorder %s29, 3
      %s535 = scalar_select %p534, %s29, 3
      %s536 = smul.addr %s535, 8
      %s537 = scalar_lea.vmem %s0, %s536
      %p538 = pneg %p50
      %p539 = pneg %p47
      %p540 = scmp.lt.s32.totalorder %s29, 3
      %s541 = scalar_select %p540, %s29, 3
      %s542 = scalar_lea.vmem %s1, %s541
      %p543 = pneg %p76
      %p544 = pneg %p73
      %p545 = scmp.lt.s32.totalorder %s29, 3
      %s546 = scalar_select %p545, %s29, 3
      %s547 = smul.addr %s546, 8
      %s548 = scalar_lea.vmem %s2, %s547
      %p549 = pneg %p102
      %p550 = pneg %p99
      %p551 = pneg %p123
      %p552 = pneg %p120
      %p553 = pneg %p144
      %p554 = pneg %p141
      %p555 = pneg %p165
      %p556 = pneg %p162
      %p557 = pneg %p186
      %p558 = pneg %p183
      %p559 = pneg %p207
      %p560 = pneg %p204
      %p561 = pneg %p228
      %p562 = pneg %p225
      %p563 = pneg %p249
      %p564 = pneg %p246
      %p565 = pneg %p270
      %p566 = pneg %p267
      %p567 = pneg %p291
      %p568 = pneg %p288
      %p569 = pneg %p312
      %p570 = pneg %p309
      %p571 = pneg %p333
      %p572 = pneg %p330
      %p573 = pneg %p354
      %p574 = pneg %p351
      %p575 = pneg %p375
      %p576 = pneg %p372
      %p577 = pneg %p396
      %p578 = pneg %p393
      %p579 = pneg %p417
      %p580 = pneg %p414
      %p581 = pneg %p443
      %p582 = pneg %p440
      %p583 = scmp.lt.s32.totalorder %s29, 3
      %s584 = scalar_select %p583, %s29, 3
      %s585 = scalar_lea.vmem %s18, %s584
      %p586 = scmp.lt.s32.totalorder %s29, 3
      %s587 = scalar_select %p586, %s29, 3
      %s588 = smul.addr %s587, 8
      %s589 = scalar_lea.vmem %s0, %s588
      %p590 = scmp.lt.s32.totalorder %s29, 3
      %s591 = scalar_select %p590, %s29, 3
      %s592 = scalar_lea.vmem %s1, %s591
      %p593 = scmp.lt.s32.totalorder %s29, 3
      %s594 = scalar_select %p593, %s29, 3
      %s595 = smul.addr %s594, 8
      %s596 = scalar_lea.vmem %s2, %s595
      %p597 = scmp.lt.s32.totalorder %s29, 3
      %s598 = scalar_select %p597, %s29, 3
      %s599 = scalar_lea.vmem %s18, %s598
      %v600 = vld [vmem:[%s589] sm:$0xff]
      %v601 = vld [vmem:[%s596] sm:$0x1f]
      %v602 = vld [vmem:[%s592] sm:$0x1]
      %v603 = vsub.f32 1.0, %v602
      %v604 = vmul.f32 %v603, -1e+09
      %v605 = vld [vmem:[%s3] sm:$0x3f]
      %v606 = vld [vmem:[%s4] sm:$0xff]
      %v607 = vld [vmem:[%s4 + $0x8] sm:$0xff]
      %v608 = vld [vmem:[%s4 + $0x10] sm:$0xff]
      %v609 = vld [vmem:[%s4 + $0x18] sm:$0xff]
      %v610 = vld [vmem:[%s5] sm:$0x1]
      %v611 = vld [vmem:[%s6] sm:$0xff]
      %v612 = vld [vmem:[%s6 + $0x8] sm:$0xff]
      %v613 = vld [vmem:[%s6 + $0x10] sm:$0xff]
      %v614 = vld [vmem:[%s6 + $0x18] sm:$0xff]
      %v615 = vld [vmem:[%s7] sm:$0x1]
      %v617 = vperm.slane %v610, 0
      %vm619 = vcmask 261120
      %v621 = vsel %vm619, %v600, 0
      %623 = vmatpush.msra.mxu0 0.0
      %624 = vmatpush.msra.mxu0 0.0
      %625 = vmatpush.msra.mxu0 0.0
      %626 = vmatpush.msra.mxu0 0.0
      %627 = vmatpush.msra.mxu0 0.0
      %628 = vmatpush.msra.mxu0 0.0
      %629 = vmatpush.msra.mxu0 0.0
      %630 = vmatpush.msra.mxu0 0.0
      %631 = vmatpush.msra.mxu0 0.0
      %632 = vmatpush.msra.mxu0 0.0
      %633 = vmatpush.msra.mxu0 0.0
      %634 = vmatpush.msra.mxu0 0.0
      %635 = vmatpush.msra.mxu0 %v609
      %636 = vmatpush.msra.mxu0 %v608
      %637 = vmatpush.msra.mxu0 %v607
      %638 = vmatpush.msra.mxu0 %v606
      %639 = vmatmul.f32.gmra.mxu0 %v621
      %v640 = vpop.f32.mrf.mxu0
      %v641 = vadd.f32 %v617, %v640
      %642 = vdwg.mxu0
      %v644 = vperm.slane %v615, 0
      %v646 = vadd.f32 %v644, 0.0
      %648 = vrot.lane.b32.xlu0 %v641, 96
      %v649 = vpop.permute.xlu0 %648
      %vm650 = vcmask 64512
      %v651 = vsel %vm650, %v641, 0
      %v653 = vsel %vm650, %v649, 0
      %655 = vmatpush.xpose.msra.mxu0 0.0
      %656 = vmatpush.xpose.msra.mxu0 0.0
      %657 = vmatpush.xpose.msra.mxu0 0.0
      %658 = vmatpush.xpose.msra.mxu0 0.0
      %659 = vmatpush.xpose.msra.mxu0 0.0
      %660 = vmatpush.xpose.msra.mxu0 0.0
      %661 = vmatpush.xpose.msra.mxu0 0.0
      %662 = vmatpush.xpose.msra.mxu0 0.0
      %663 = vmatpush.xpose.msra.mxu0 0.0
      %664 = vmatpush.xpose.msra.mxu0 0.0
      %665 = vmatpush.xpose.msra.mxu0 0.0
      %666 = vmatpush.xpose.msra.mxu0 0.0
      %667 = vmatpush.xpose.msra.mxu0 0.0
      %668 = vmatpush.xpose.msra.mxu0 0.0
      %669 = vmatpush.xpose.msra.mxu0 0.0
      %670 = vmatpush.xpose.msra.mxu0 %v653
      %671 = vmatmul.f32.gmra.mxu0 %v651
      %v672 = vpop.f32.mrf.mxu0
      %v673 = vadd.f32 0.0, %v672
      %674 = vdwg.mxu0
      %v675 = vmul.f32 %v673, 0.35355338
      %v677 = vperm.slane %v604, 0
      %v679 = vadd.f32 %v675, %v677
      %v680 = vsel %vm650, %v679, -inf
      %681 = vmax.xlane.f32.xlu0 %v680
      %v682 = vpop.xlane.xlu0 %681
      %v683 = vsub.f32 %v679, %v682
      %v684 = vmul.f32 %v683, 1.442695
      %v685 = vpow.pop %v684
      %v686 = vsel %vm650, %v685, 0.0
      %687 = vadd.xlane.f32.xlu0 %v686
      %v688 = vpop.xlane.xlu0 %687
      %v689 = vrcp.pop %v688
      %v690 = vmul.f32 %v685, %v689
      %691 = vrot.lane.b32.xlu0 %v641, 64
      %v692 = vpop.permute.xlu0 %691
      %v695 = vsel %vm650, %v690, 0
      %697 = vmatpush.msra.mxu0 0.0
      %698 = vmatpush.msra.mxu0 0.0
      %699 = vmatpush.msra.mxu0 0.0
      %700 = vmatpush.msra.mxu0 0.0
      %701 = vmatpush.msra.mxu0 0.0
      %702 = vmatpush.msra.mxu0 0.0
      %703 = vmatpush.msra.mxu0 0.0
      %704 = vmatpush.msra.mxu0 0.0
      %705 = vmatpush.msra.mxu0 0.0
      %706 = vmatpush.msra.mxu0 0.0
      %707 = vmatpush.msra.mxu0 0.0
      %708 = vmatpush.msra.mxu0 0.0
      %709 = vmatpush.msra.mxu0 0.0
      %710 = vmatpush.msra.mxu0 0.0
      %711 = vmatpush.msra.mxu0 0.0
      %712 = vmatpush.msra.mxu0 %v692
      %713 = vmatmul.f32.gmra.mxu0 %v695
      %v714 = vpop.f32.mrf.mxu0
      %v715 = vadd.f32 0.0, %v714
      %716 = vdwg.mxu0
      %v718 = vsel %vm650, %v715, 0
      %720 = vmatpush.msra.mxu0 0.0
      %721 = vmatpush.msra.mxu0 0.0
      %722 = vmatpush.msra.mxu0 0.0
      %723 = vmatpush.msra.mxu0 0.0
      %724 = vmatpush.msra.mxu0 0.0
      %725 = vmatpush.msra.mxu0 0.0
      %726 = vmatpush.msra.mxu0 0.0
      %727 = vmatpush.msra.mxu0 0.0
      %728 = vmatpush.msra.mxu0 0.0
      %729 = vmatpush.msra.mxu0 0.0
      %730 = vmatpush.msra.mxu0 0.0
      %731 = vmatpush.msra.mxu0 0.0
      %732 = vmatpush.msra.mxu0 0.0
      %733 = vmatpush.msra.mxu0 0.0
      %734 = vmatpush.msra.mxu0 0.0
      %735 = vmatpush.msra.mxu0 %v611
      %736 = vmatmul.f32.gmra.mxu0 %v718
      %v737 = vpop.f32.mrf.mxu0
      %v738 = vadd.f32 0.0, %v737
      %739 = vdwg.mxu0
      %v740 = vadd.f32 %v646, %v738
      %741 = vrot.lane.b32.xlu0 %v641, 120
      %v742 = vpop.permute.xlu0 %741
      %743 = vrot.lane.b32.xlu0 %v641, 88
      %v744 = vpop.permute.xlu0 %743
      %v745 = vsel %vm650, %v742, 0
      %v747 = vsel %vm650, %v744, 0
      %749 = vmatpush.xpose.msra.mxu0 0.0
      %750 = vmatpush.xpose.msra.mxu0 0.0
      %751 = vmatpush.xpose.msra.mxu0 0.0
      %752 = vmatpush.xpose.msra.mxu0 0.0
      %753 = vmatpush.xpose.msra.mxu0 0.0
      %754 = vmatpush.xpose.msra.mxu0 0.0
      %755 = vmatpush.xpose.msra.mxu0 0.0
      %756 = vmatpush.xpose.msra.mxu0 0.0
      %757 = vmatpush.xpose.msra.mxu0 0.0
      %758 = vmatpush.xpose.msra.mxu0 0.0
      %759 = vmatpush.xpose.msra.mxu0 0.0
      %760 = vmatpush.xpose.msra.mxu0 0.0
      %761 = vmatpush.xpose.msra.mxu0 0.0
      %762 = vmatpush.xpose.msra.mxu0 0.0
      %763 = vmatpush.xpose.msra.mxu0 0.0
      %764 = vmatpush.xpose.msra.mxu0 %v747
      %765 = vmatmul.f32.gmra.mxu0 %v745
      %v766 = vpop.f32.mrf.mxu0
      %v767 = vadd.f32 0.0, %v766
      %768 = vdwg.mxu0
      %v769 = vmul.f32 %v767, 0.35355338
      %v770 = vadd.f32 %v769, %v677
      %v771 = vsel %vm650, %v770, -inf
      %772 = vmax.xlane.f32.xlu0 %v771
      %v773 = vpop.xlane.xlu0 %772
      %v774 = vsub.f32 %v770, %v773
      %v775 = vmul.f32 %v774, 1.442695
      %v776 = vpow.pop %v775
      %v777 = vsel %vm650, %v776, 0.0
      %778 = vadd.xlane.f32.xlu0 %v777
      %v779 = vpop.xlane.xlu0 %778
      %v780 = vrcp.pop %v779
      %v781 = vmul.f32 %v776, %v780
      %782 = vrot.lane.b32.xlu0 %v641, 56
      %v783 = vpop.permute.xlu0 %782
      %v786 = vsel %vm650, %v781, 0
      %788 = vmatpush.msra.mxu0 0.0
      %789 = vmatpush.msra.mxu0 0.0
      %790 = vmatpush.msra.mxu0 0.0
      %791 = vmatpush.msra.mxu0 0.0
      %792 = vmatpush.msra.mxu0 0.0
      %793 = vmatpush.msra.mxu0 0.0
      %794 = vmatpush.msra.mxu0 0.0
      %795 = vmatpush.msra.mxu0 0.0
      %796 = vmatpush.msra.mxu0 0.0
      %797 = vmatpush.msra.mxu0 0.0
      %798 = vmatpush.msra.mxu0 0.0
      %799 = vmatpush.msra.mxu0 0.0
      %800 = vmatpush.msra.mxu0 0.0
      %801 = vmatpush.msra.mxu0 0.0
      %802 = vmatpush.msra.mxu0 0.0
      %803 = vmatpush.msra.mxu0 %v783
      %804 = vmatmul.f32.gmra.mxu0 %v786
      %v805 = vpop.f32.mrf.mxu0
      %v806 = vadd.f32 0.0, %v805
      %807 = vdwg.mxu0
      %v809 = vsel %vm650, %v806, 0
      %811 = vmatpush.msra.mxu0 0.0
      %812 = vmatpush.msra.mxu0 0.0
      %813 = vmatpush.msra.mxu0 0.0
      %814 = vmatpush.msra.mxu0 0.0
      %815 = vmatpush.msra.mxu0 0.0
      %816 = vmatpush.msra.mxu0 0.0
      %817 = vmatpush.msra.mxu0 0.0
      %818 = vmatpush.msra.mxu0 0.0
      %819 = vmatpush.msra.mxu0 0.0
      %820 = vmatpush.msra.mxu0 0.0
      %821 = vmatpush.msra.mxu0 0.0
      %822 = vmatpush.msra.mxu0 0.0
      %823 = vmatpush.msra.mxu0 0.0
      %824 = vmatpush.msra.mxu0 0.0
      %825 = vmatpush.msra.mxu0 0.0
      %826 = vmatpush.msra.mxu0 %v612
      %827 = vmatmul.f32.gmra.mxu0 %v809
      %v828 = vpop.f32.mrf.mxu0
      %v829 = vadd.f32 0.0, %v828
      %830 = vdwg.mxu0
      %v831 = vadd.f32 %v740, %v829
      %832 = vrot.lane.b32.xlu0 %v641, 112
      %v833 = vpop.permute.xlu0 %832
      %834 = vrot.lane.b32.xlu0 %v641, 80
      %v835 = vpop.permute.xlu0 %834
      %v836 = vsel %vm650, %v833, 0
      %v838 = vsel %vm650, %v835, 0
      %840 = vmatpush.xpose.msra.mxu0 0.0
      %841 = vmatpush.xpose.msra.mxu0 0.0
      %842 = vmatpush.xpose.msra.mxu0 0.0
      %843 = vmatpush.xpose.msra.mxu0 0.0
      %844 = vmatpush.xpose.msra.mxu0 0.0
      %845 = vmatpush.xpose.msra.mxu0 0.0
      %846 = vmatpush.xpose.msra.mxu0 0.0
      %847 = vmatpush.xpose.msra.mxu0 0.0
      %848 = vmatpush.xpose.msra.mxu0 0.0
      %849 = vmatpush.xpose.msra.mxu0 0.0
      %850 = vmatpush.xpose.msra.mxu0 0.0
      %851 = vmatpush.xpose.msra.mxu0 0.0
      %852 = vmatpush.xpose.msra.mxu0 0.0
      %853 = vmatpush.xpose.msra.mxu0 0.0
      %854 = vmatpush.xpose.msra.mxu0 0.0
      %855 = vmatpush.xpose.msra.mxu0 %v838
      %856 = vmatmul.f32.gmra.mxu0 %v836
      %v857 = vpop.f32.mrf.mxu0
      %v858 = vadd.f32 0.0, %v857
      %859 = vdwg.mxu0
      %v860 = vmul.f32 %v858, 0.35355338
      %v861 = vadd.f32 %v860, %v677
      %v862 = vsel %vm650, %v861, -inf
      %863 = vmax.xlane.f32.xlu0 %v862
      %v864 = vpop.xlane.xlu0 %863
      %v865 = vsub.f32 %v861, %v864
      %v866 = vmul.f32 %v865, 1.442695
      %v867 = vpow.pop %v866
      %v868 = vsel %vm650, %v867, 0.0
      %869 = vadd.xlane.f32.xlu0 %v868
      %v870 = vpop.xlane.xlu0 %869
      %v871 = vrcp.pop %v870
      %v872 = vmul.f32 %v867, %v871
      %873 = vrot.lane.b32.xlu0 %v641, 48
      %v874 = vpop.permute.xlu0 %873
      %v877 = vsel %vm650, %v872, 0
      %879 = vmatpush.msra.mxu0 0.0
      %880 = vmatpush.msra.mxu0 0.0
      %881 = vmatpush.msra.mxu0 0.0
      %882 = vmatpush.msra.mxu0 0.0
      %883 = vmatpush.msra.mxu0 0.0
      %884 = vmatpush.msra.mxu0 0.0
      %885 = vmatpush.msra.mxu0 0.0
      %886 = vmatpush.msra.mxu0 0.0
      %887 = vmatpush.msra.mxu0 0.0
      %888 = vmatpush.msra.mxu0 0.0
      %889 = vmatpush.msra.mxu0 0.0
      %890 = vmatpush.msra.mxu0 0.0
      %891 = vmatpush.msra.mxu0 0.0
      %892 = vmatpush.msra.mxu0 0.0
      %893 = vmatpush.msra.mxu0 0.0
      %894 = vmatpush.msra.mxu0 %v874
      %895 = vmatmul.f32.gmra.mxu0 %v877
      %v896 = vpop.f32.mrf.mxu0
      %v897 = vadd.f32 0.0, %v896
      %898 = vdwg.mxu0
      %v900 = vsel %vm650, %v897, 0
      %902 = vmatpush.msra.mxu0 0.0
      %903 = vmatpush.msra.mxu0 0.0
      %904 = vmatpush.msra.mxu0 0.0
      %905 = vmatpush.msra.mxu0 0.0
      %906 = vmatpush.msra.mxu0 0.0
      %907 = vmatpush.msra.mxu0 0.0
      %908 = vmatpush.msra.mxu0 0.0
      %909 = vmatpush.msra.mxu0 0.0
      %910 = vmatpush.msra.mxu0 0.0
      %911 = vmatpush.msra.mxu0 0.0
      %912 = vmatpush.msra.mxu0 0.0
      %913 = vmatpush.msra.mxu0 0.0
      %914 = vmatpush.msra.mxu0 0.0
      %915 = vmatpush.msra.mxu0 0.0
      %916 = vmatpush.msra.mxu0 0.0
      %917 = vmatpush.msra.mxu0 %v613
      %918 = vmatmul.f32.gmra.mxu0 %v900
      %v919 = vpop.f32.mrf.mxu0
      %v920 = vadd.f32 0.0, %v919
      %921 = vdwg.mxu0
      %v922 = vadd.f32 %v831, %v920
      %923 = vrot.lane.b32.xlu0 %v641, 104
      %v924 = vpop.permute.xlu0 %923
      %925 = vrot.lane.b32.xlu0 %v641, 72
      %v926 = vpop.permute.xlu0 %925
      %v927 = vsel %vm650, %v924, 0
      %v929 = vsel %vm650, %v926, 0
      %931 = vmatpush.xpose.msra.mxu0 0.0
      %932 = vmatpush.xpose.msra.mxu0 0.0
      %933 = vmatpush.xpose.msra.mxu0 0.0
      %934 = vmatpush.xpose.msra.mxu0 0.0
      %935 = vmatpush.xpose.msra.mxu0 0.0
      %936 = vmatpush.xpose.msra.mxu0 0.0
      %937 = vmatpush.xpose.msra.mxu0 0.0
      %938 = vmatpush.xpose.msra.mxu0 0.0
      %939 = vmatpush.xpose.msra.mxu0 0.0
      %940 = vmatpush.xpose.msra.mxu0 0.0
      %941 = vmatpush.xpose.msra.mxu0 0.0
      %942 = vmatpush.xpose.msra.mxu0 0.0
      %943 = vmatpush.xpose.msra.mxu0 0.0
      %944 = vmatpush.xpose.msra.mxu0 0.0
      %945 = vmatpush.xpose.msra.mxu0 0.0
      %946 = vmatpush.xpose.msra.mxu0 %v929
      %947 = vmatmul.f32.gmra.mxu0 %v927
      %v948 = vpop.f32.mrf.mxu0
      %v949 = vadd.f32 0.0, %v948
      %950 = vdwg.mxu0
      %v951 = vmul.f32 %v949, 0.35355338
      %v952 = vadd.f32 %v951, %v677
      %v953 = vsel %vm650, %v952, -inf
      %954 = vmax.xlane.f32.xlu0 %v953
      %v955 = vpop.xlane.xlu0 %954
      %v956 = vsub.f32 %v952, %v955
      %v957 = vmul.f32 %v956, 1.442695
      %v958 = vpow.pop %v957
      %v959 = vsel %vm650, %v958, 0.0
      %960 = vadd.xlane.f32.xlu0 %v959
      %v961 = vpop.xlane.xlu0 %960
      %v962 = vrcp.pop %v961
      %v963 = vmul.f32 %v958, %v962
      %964 = vrot.lane.b32.xlu0 %v641, 40
      %v965 = vpop.permute.xlu0 %964
      %v968 = vsel %vm650, %v963, 0
      %970 = vmatpush.msra.mxu0 0.0
      %971 = vmatpush.msra.mxu0 0.0
      %972 = vmatpush.msra.mxu0 0.0
      %973 = vmatpush.msra.mxu0 0.0
      %974 = vmatpush.msra.mxu0 0.0
      %975 = vmatpush.msra.mxu0 0.0
      %976 = vmatpush.msra.mxu0 0.0
      %977 = vmatpush.msra.mxu0 0.0
      %978 = vmatpush.msra.mxu0 0.0
      %979 = vmatpush.msra.mxu0 0.0
      %980 = vmatpush.msra.mxu0 0.0
      %981 = vmatpush.msra.mxu0 0.0
      %982 = vmatpush.msra.mxu0 0.0
      %983 = vmatpush.msra.mxu0 0.0
      %984 = vmatpush.msra.mxu0 0.0
      %985 = vmatpush.msra.mxu0 %v965
      %986 = vmatmul.f32.gmra.mxu0 %v968
      %v987 = vpop.f32.mrf.mxu0
      %v988 = vadd.f32 0.0, %v987
      %989 = vdwg.mxu0
      %v991 = vsel %vm650, %v988, 0
      %993 = vmatpush.msra.mxu0 0.0
      %994 = vmatpush.msra.mxu0 0.0
      %995 = vmatpush.msra.mxu0 0.0
      %996 = vmatpush.msra.mxu0 0.0
      %997 = vmatpush.msra.mxu0 0.0
      %998 = vmatpush.msra.mxu0 0.0
      %999 = vmatpush.msra.mxu0 0.0
      %1000 = vmatpush.msra.mxu0 0.0
      %1001 = vmatpush.msra.mxu0 0.0
      %1002 = vmatpush.msra.mxu0 0.0
      %1003 = vmatpush.msra.mxu0 0.0
      %1004 = vmatpush.msra.mxu0 0.0
      %1005 = vmatpush.msra.mxu0 0.0
      %1006 = vmatpush.msra.mxu0 0.0
      %1007 = vmatpush.msra.mxu0 0.0
      %1008 = vmatpush.msra.mxu0 %v614
      %1009 = vmatmul.f32.gmra.mxu0 %v991
      %v1010 = vpop.f32.mrf.mxu0
      %v1011 = vadd.f32 0.0, %v1010
      %1012 = vdwg.mxu0
      %v1013 = vadd.f32 %v922, %v1011
      %v1014 = vadd.f32 %v600, %v1013
      %v1015 = vsel %vm619, %v1014, 0.0
      %1016 = vadd.xlane.f32.xlu0 %v1015
      %v1017 = vpop.xlane.xlu0 %1016
      %v1018 = vrcp.pop 32.0
      %v1019 = vmul.f32 32.0, %v1018
      %v1020 = vsub.f32 1.0, %v1019
      %v1021 = vmul.f32 %v1018, %v1020
      %v1022 = vadd.f32 %v1018, %v1021
      %vm1023 = vweird.f32 %v1018
      %v1024 = vsel %vm1023, %v1018, %v1022
      %v1025 = vmul.f32 %v1017, %v1024
      %v1026 = vsub.f32 %v1014, %v1025
      %v1027 = vmul.f32 %v1026, %v1026
      %v1028 = vsel %vm619, %v1027, 0.0
      %1029 = vadd.xlane.f32.xlu0 %v1028
      %v1030 = vpop.xlane.xlu0 %1029
      %v1031 = vmul.f32 %v1030, %v1024
      %v1032 = vadd.f32 %v1031, 1e-06
      %v1033 = vrsqrt.pop %v1032
      %v1034 = vmul.f32 %v1033, %v1032
      %v1035 = vmul.f32 %v1034, %v1033
      %v1036 = vmul.f32 0.5, %v1035
      %v1037 = vsub.f32 1.5, %v1036
      %v1038 = vmul.f32 %v1033, %v1037
      %vm1039 = vweird.f32 %v1032
      %vm1040 = vweird.f32 %v1033
      %vm1041 = vmor %vm1039, %vm1040
      %v1042 = vsel %vm1041, %v1033, %v1038
      %v1043 = vmul.f32 %v1026, %v1042
      %v1044 = vperm.slane %v605, 0
      %v1045 = vmul.f32 %v1043, %v1044
      %v1046 = vperm.slane %v605, 1
      %v1047 = vadd.f32 %v1045, %v1046
      %v1048 = vld [vmem:[%s8] sm:$0xff]
      %v1049 = vld [vmem:[%s8 + $0x8] sm:$0xff]
      %v1050 = vld [vmem:[%s8 + $0x10] sm:$0xff]
      %v1051 = vld [vmem:[%s8 + $0x18] sm:$0xff]
      %v1052 = vld [vmem:[%s9] sm:$0x1]
      %v1053 = vld [vmem:[%s10] sm:$0xff]
      %v1054 = vld [vmem:[%s10 + $0x8] sm:$0xff]
      %v1055 = vld [vmem:[%s10 + $0x10] sm:$0xff]
      %v1056 = vld [vmem:[%s10 + $0x18] sm:$0xff]
      %v1057 = vld [vmem:[%s11] sm:$0x1]
      %v1059 = vperm.slane %v1052, 0
      %v1062 = vsel %vm619, %v1047, 0
      %1064 = vmatpush.msra.mxu0 0.0
      %1065 = vmatpush.msra.mxu0 0.0
      %1066 = vmatpush.msra.mxu0 0.0
      %1067 = vmatpush.msra.mxu0 0.0
      %1068 = vmatpush.msra.mxu0 0.0
      %1069 = vmatpush.msra.mxu0 0.0
      %1070 = vmatpush.msra.mxu0 0.0
      %1071 = vmatpush.msra.mxu0 0.0
      %1072 = vmatpush.msra.mxu0 0.0
      %1073 = vmatpush.msra.mxu0 0.0
      %1074 = vmatpush.msra.mxu0 0.0
      %1075 = vmatpush.msra.mxu0 0.0
      %1076 = vmatpush.msra.mxu0 %v1051
      %1077 = vmatpush.msra.mxu0 %v1050
      %1078 = vmatpush.msra.mxu0 %v1049
      %1079 = vmatpush.msra.mxu0 %v1048
      %1080 = vmatmul.f32.gmra.mxu0 %v1062
      %v1081 = vpop.f32.mrf.mxu0
      %v1082 = vadd.f32 %v1059, %v1081
      %1083 = vdwg.mxu0
      %v1085 = vsel %vm619, %v601, 0
      %1087 = vmatpush.msra.mxu0 0.0
      %1088 = vmatpush.msra.mxu0 0.0
      %1089 = vmatpush.msra.mxu0 0.0
      %1090 = vmatpush.msra.mxu0 0.0
      %1091 = vmatpush.msra.mxu0 0.0
      %1092 = vmatpush.msra.mxu0 0.0
      %1093 = vmatpush.msra.mxu0 0.0
      %1094 = vmatpush.msra.mxu0 0.0
      %1095 = vmatpush.msra.mxu0 0.0
      %1096 = vmatpush.msra.mxu0 0.0
      %1097 = vmatpush.msra.mxu0 0.0
      %1098 = vmatpush.msra.mxu0 0.0
      %1099 = vmatpush.msra.mxu0 %v1051
      %1100 = vmatpush.msra.mxu0 %v1050
      %1101 = vmatpush.msra.mxu0 %v1049
      %1102 = vmatpush.msra.mxu0 %v1048
      %1103 = vmatmul.f32.gmra.mxu0 %v1085
      %v1104 = vpop.f32.mrf.mxu0
      %v1105 = vadd.f32 %v1059, %v1104
      %1106 = vdwg.mxu0
      %v1108 = vperm.slane %v1057, 0
      %v1110 = vadd.f32 %v1108, 0.0
      %1112 = vrot.lane.b32.xlu0 %v1105, 96
      %v1113 = vpop.permute.xlu0 %1112
      %v1115 = vsel %vm650, %v1082, 0
      %v1117 = vsel %vm650, %v1113, 0
      %1119 = vmatpush.xpose.msra.mxu0 0.0
      %1120 = vmatpush.xpose.msra.mxu0 0.0
      %1121 = vmatpush.xpose.msra.mxu0 0.0
      %1122 = vmatpush.xpose.msra.mxu0 0.0
      %1123 = vmatpush.xpose.msra.mxu0 0.0
      %1124 = vmatpush.xpose.msra.mxu0 0.0
      %1125 = vmatpush.xpose.msra.mxu0 0.0
      %1126 = vmatpush.xpose.msra.mxu0 0.0
      %1127 = vmatpush.xpose.msra.mxu0 0.0
      %1128 = vmatpush.xpose.msra.mxu0 0.0
      %1129 = vmatpush.xpose.msra.mxu0 0.0
      %1130 = vmatpush.xpose.msra.mxu0 0.0
      %1131 = vmatpush.xpose.msra.mxu0 0.0
      %1132 = vmatpush.xpose.msra.mxu0 0.0
      %1133 = vmatpush.xpose.msra.mxu0 0.0
      %1134 = vmatpush.xpose.msra.mxu0 %v1117
      %1135 = vmatmul.f32.gmra.mxu0 %v1115
      %v1136 = vpop.f32.mrf.mxu0
      %v1137 = vadd.f32 0.0, %v1136
      %1138 = vdwg.mxu0
      %v1139 = vmul.f32 %v1137, 0.35355338
      %vm1140 = vcmask 39936
      %v1141 = vsel %vm1140, %v1139, -inf
      %1142 = vmax.xlane.f32.xlu0 %v1141
      %v1143 = vpop.xlane.xlu0 %1142
      %v1144 = vsub.f32 %v1139, %v1143
      %v1145 = vmul.f32 %v1144, 1.442695
      %v1146 = vpow.pop %v1145
      %v1147 = vsel %vm1140, %v1146, 0.0
      %1148 = vadd.xlane.f32.xlu0 %v1147
      %v1149 = vpop.xlane.xlu0 %1148
      %v1150 = vrcp.pop %v1149
      %v1151 = vmul.f32 %v1146, %v1150
      %1152 = vrot.lane.b32.xlu0 %v1105, 64
      %v1153 = vpop.permute.xlu0 %1152
      %v1155 = vsel %vm1140, %v1151, 0
      %vm1157 = vcmask 1044480
      %v1158 = vsel %vm1157, %v1153, 0
      %1160 = vmatpush.msra.mxu0 0.0
      %1161 = vmatpush.msra.mxu0 0.0
      %1162 = vmatpush.msra.mxu0 0.0
      %1163 = vmatpush.msra.mxu0 0.0
      %1164 = vmatpush.msra.mxu0 0.0
      %1165 = vmatpush.msra.mxu0 0.0
      %1166 = vmatpush.msra.mxu0 0.0
      %1167 = vmatpush.msra.mxu0 0.0
      %1168 = vmatpush.msra.mxu0 0.0
      %1169 = vmatpush.msra.mxu0 0.0
      %1170 = vmatpush.msra.mxu0 0.0
      %1171 = vmatpush.msra.mxu0 0.0
      %1172 = vmatpush.msra.mxu0 0.0
      %1173 = vmatpush.msra.mxu0 0.0
      %1174 = vmatpush.msra.mxu0 0.0
      %1175 = vmatpush.msra.mxu0 %v1158
      %1176 = vmatmul.f32.gmra.mxu0 %v1155
      %v1177 = vpop.f32.mrf.mxu0
      %v1178 = vadd.f32 0.0, %v1177
      %1179 = vdwg.mxu0
      %v1181 = vsel %vm650, %v1178, 0
      %1183 = vmatpush.msra.mxu0 0.0
      %1184 = vmatpush.msra.mxu0 0.0
      %1185 = vmatpush.msra.mxu0 0.0
      %1186 = vmatpush.msra.mxu0 0.0
      %1187 = vmatpush.msra.mxu0 0.0
      %1188 = vmatpush.msra.mxu0 0.0
      %1189 = vmatpush.msra.mxu0 0.0
      %1190 = vmatpush.msra.mxu0 0.0
      %1191 = vmatpush.msra.mxu0 0.0
      %1192 = vmatpush.msra.mxu0 0.0
      %1193 = vmatpush.msra.mxu0 0.0
      %1194 = vmatpush.msra.mxu0 0.0
      %1195 = vmatpush.msra.mxu0 0.0
      %1196 = vmatpush.msra.mxu0 0.0
      %1197 = vmatpush.msra.mxu0 0.0
      %1198 = vmatpush.msra.mxu0 %v1053
      %1199 = vmatmul.f32.gmra.mxu0 %v1181
      %v1200 = vpop.f32.mrf.mxu0
      %v1201 = vadd.f32 0.0, %v1200
      %1202 = vdwg.mxu0
      %v1203 = vadd.f32 %v1110, %v1201
      %1204 = vrot.lane.b32.xlu0 %v1082, 120
      %v1205 = vpop.permute.xlu0 %1204
      %1206 = vrot.lane.b32.xlu0 %v1105, 88
      %v1207 = vpop.permute.xlu0 %1206
      %v1208 = vsel %vm650, %v1205, 0
      %v1210 = vsel %vm650, %v1207, 0
      %1212 = vmatpush.xpose.msra.mxu0 0.0
      %1213 = vmatpush.xpose.msra.mxu0 0.0
      %1214 = vmatpush.xpose.msra.mxu0 0.0
      %1215 = vmatpush.xpose.msra.mxu0 0.0
      %1216 = vmatpush.xpose.msra.mxu0 0.0
      %1217 = vmatpush.xpose.msra.mxu0 0.0
      %1218 = vmatpush.xpose.msra.mxu0 0.0
      %1219 = vmatpush.xpose.msra.mxu0 0.0
      %1220 = vmatpush.xpose.msra.mxu0 0.0
      %1221 = vmatpush.xpose.msra.mxu0 0.0
      %1222 = vmatpush.xpose.msra.mxu0 0.0
      %1223 = vmatpush.xpose.msra.mxu0 0.0
      %1224 = vmatpush.xpose.msra.mxu0 0.0
      %1225 = vmatpush.xpose.msra.mxu0 0.0
      %1226 = vmatpush.xpose.msra.mxu0 0.0
      %1227 = vmatpush.xpose.msra.mxu0 %v1210
      %1228 = vmatmul.f32.gmra.mxu0 %v1208
      %v1229 = vpop.f32.mrf.mxu0
      %v1230 = vadd.f32 0.0, %v1229
      %1231 = vdwg.mxu0
      %v1232 = vmul.f32 %v1230, 0.35355338
      %v1233 = vsel %vm1140, %v1232, -inf
      %1234 = vmax.xlane.f32.xlu0 %v1233
      %v1235 = vpop.xlane.xlu0 %1234
      %v1236 = vsub.f32 %v1232, %v1235
      %v1237 = vmul.f32 %v1236, 1.442695
      %v1238 = vpow.pop %v1237
      %v1239 = vsel %vm1140, %v1238, 0.0
      %1240 = vadd.xlane.f32.xlu0 %v1239
      %v1241 = vpop.xlane.xlu0 %1240
      %v1242 = vrcp.pop %v1241
      %v1243 = vmul.f32 %v1238, %v1242
      %1244 = vrot.lane.b32.xlu0 %v1105, 56
      %v1245 = vpop.permute.xlu0 %1244
      %v1247 = vsel %vm1140, %v1243, 0
      %v1249 = vsel %vm1157, %v1245, 0
      %1251 = vmatpush.msra.mxu0 0.0
      %1252 = vmatpush.msra.mxu0 0.0
      %1253 = vmatpush.msra.mxu0 0.0
      %1254 = vmatpush.msra.mxu0 0.0
      %1255 = vmatpush.msra.mxu0 0.0
      %1256 = vmatpush.msra.mxu0 0.0
      %1257 = vmatpush.msra.mxu0 0.0
      %1258 = vmatpush.msra.mxu0 0.0
      %1259 = vmatpush.msra.mxu0 0.0
      %1260 = vmatpush.msra.mxu0 0.0
      %1261 = vmatpush.msra.mxu0 0.0
      %1262 = vmatpush.msra.mxu0 0.0
      %1263 = vmatpush.msra.mxu0 0.0
      %1264 = vmatpush.msra.mxu0 0.0
      %1265 = vmatpush.msra.mxu0 0.0
      %1266 = vmatpush.msra.mxu0 %v1249
      %1267 = vmatmul.f32.gmra.mxu0 %v1247
      %v1268 = vpop.f32.mrf.mxu0
      %v1269 = vadd.f32 0.0, %v1268
      %1270 = vdwg.mxu0
      %v1272 = vsel %vm650, %v1269, 0
      %1274 = vmatpush.msra.mxu0 0.0
      %1275 = vmatpush.msra.mxu0 0.0
      %1276 = vmatpush.msra.mxu0 0.0
      %1277 = vmatpush.msra.mxu0 0.0
      %1278 = vmatpush.msra.mxu0 0.0
      %1279 = vmatpush.msra.mxu0 0.0
      %1280 = vmatpush.msra.mxu0 0.0
      %1281 = vmatpush.msra.mxu0 0.0
      %1282 = vmatpush.msra.mxu0 0.0
      %1283 = vmatpush.msra.mxu0 0.0
      %1284 = vmatpush.msra.mxu0 0.0
      %1285 = vmatpush.msra.mxu0 0.0
      %1286 = vmatpush.msra.mxu0 0.0
      %1287 = vmatpush.msra.mxu0 0.0
      %1288 = vmatpush.msra.mxu0 0.0
      %1289 = vmatpush.msra.mxu0 %v1054
      %1290 = vmatmul.f32.gmra.mxu0 %v1272
      %v1291 = vpop.f32.mrf.mxu0
      %v1292 = vadd.f32 0.0, %v1291
      %1293 = vdwg.mxu0
      %v1294 = vadd.f32 %v1203, %v1292
      %1295 = vrot.lane.b32.xlu0 %v1082, 112
      %v1296 = vpop.permute.xlu0 %1295
      %1297 = vrot.lane.b32.xlu0 %v1105, 80
      %v1298 = vpop.permute.xlu0 %1297
      %v1299 = vsel %vm650, %v1296, 0
      %v1301 = vsel %vm650, %v1298, 0
      %1303 = vmatpush.xpose.msra.mxu0 0.0
      %1304 = vmatpush.xpose.msra.mxu0 0.0
      %1305 = vmatpush.xpose.msra.mxu0 0.0
      %1306 = vmatpush.xpose.msra.mxu0 0.0
      %1307 = vmatpush.xpose.msra.mxu0 0.0
      %1308 = vmatpush.xpose.msra.mxu0 0.0
      %1309 = vmatpush.xpose.msra.mxu0 0.0
      %1310 = vmatpush.xpose.msra.mxu0 0.0
      %1311 = vmatpush.xpose.msra.mxu0 0.0
      %1312 = vmatpush.xpose.msra.mxu0 0.0
      %1313 = vmatpush.xpose.msra.mxu0 0.0
      %1314 = vmatpush.xpose.msra.mxu0 0.0
      %1315 = vmatpush.xpose.msra.mxu0 0.0
      %1316 = vmatpush.xpose.msra.mxu0 0.0
      %1317 = vmatpush.xpose.msra.mxu0 0.0
      %1318 = vmatpush.xpose.msra.mxu0 %v1301
      %1319 = vmatmul.f32.gmra.mxu0 %v1299
      %v1320 = vpop.f32.mrf.mxu0
      %v1321 = vadd.f32 0.0, %v1320
      %1322 = vdwg.mxu0
      %v1323 = vmul.f32 %v1321, 0.35355338
      %v1324 = vsel %vm1140, %v1323, -inf
      %1325 = vmax.xlane.f32.xlu0 %v1324
      %v1326 = vpop.xlane.xlu0 %1325
      %v1327 = vsub.f32 %v1323, %v1326
      %v1328 = vmul.f32 %v1327, 1.442695
      %v1329 = vpow.pop %v1328
      %v1330 = vsel %vm1140, %v1329, 0.0
      %1331 = vadd.xlane.f32.xlu0 %v1330
      %v1332 = vpop.xlane.xlu0 %1331
      %v1333 = vrcp.pop %v1332
      %v1334 = vmul.f32 %v1329, %v1333
      %1335 = vrot.lane.b32.xlu0 %v1105, 48
      %v1336 = vpop.permute.xlu0 %1335
      %v1338 = vsel %vm1140, %v1334, 0
      %v1340 = vsel %vm1157, %v1336, 0
      %1342 = vmatpush.msra.mxu0 0.0
      %1343 = vmatpush.msra.mxu0 0.0
      %1344 = vmatpush.msra.mxu0 0.0
      %1345 = vmatpush.msra.mxu0 0.0
      %1346 = vmatpush.msra.mxu0 0.0
      %1347 = vmatpush.msra.mxu0 0.0
      %1348 = vmatpush.msra.mxu0 0.0
      %1349 = vmatpush.msra.mxu0 0.0
      %1350 = vmatpush.msra.mxu0 0.0
      %1351 = vmatpush.msra.mxu0 0.0
      %1352 = vmatpush.msra.mxu0 0.0
      %1353 = vmatpush.msra.mxu0 0.0
      %1354 = vmatpush.msra.mxu0 0.0
      %1355 = vmatpush.msra.mxu0 0.0
      %1356 = vmatpush.msra.mxu0 0.0
      %1357 = vmatpush.msra.mxu0 %v1340
      %1358 = vmatmul.f32.gmra.mxu0 %v1338
      %v1359 = vpop.f32.mrf.mxu0
      %v1360 = vadd.f32 0.0, %v1359
      %1361 = vdwg.mxu0
      %v1363 = vsel %vm650, %v1360, 0
      %1365 = vmatpush.msra.mxu0 0.0
      %1366 = vmatpush.msra.mxu0 0.0
      %1367 = vmatpush.msra.mxu0 0.0
      %1368 = vmatpush.msra.mxu0 0.0
      %1369 = vmatpush.msra.mxu0 0.0
      %1370 = vmatpush.msra.mxu0 0.0
      %1371 = vmatpush.msra.mxu0 0.0
      %1372 = vmatpush.msra.mxu0 0.0
      %1373 = vmatpush.msra.mxu0 0.0
      %1374 = vmatpush.msra.mxu0 0.0
      %1375 = vmatpush.msra.mxu0 0.0
      %1376 = vmatpush.msra.mxu0 0.0
      %1377 = vmatpush.msra.mxu0 0.0
      %1378 = vmatpush.msra.mxu0 0.0
      %1379 = vmatpush.msra.mxu0 0.0
      %1380 = vmatpush.msra.mxu0 %v1055
      %1381 = vmatmul.f32.gmra.mxu0 %v1363
      %v1382 = vpop.f32.mrf.mxu0
      %v1383 = vadd.f32 0.0, %v1382
      %1384 = vdwg.mxu0
      %v1385 = vadd.f32 %v1294, %v1383
      %1386 = vrot.lane.b32.xlu0 %v1082, 104
      %v1387 = vpop.permute.xlu0 %1386
      %1388 = vrot.lane.b32.xlu0 %v1105, 72
      %v1389 = vpop.permute.xlu0 %1388
      %v1390 = vsel %vm650, %v1387, 0
      %v1392 = vsel %vm650, %v1389, 0
      %1394 = vmatpush.xpose.msra.mxu0 0.0
      %1395 = vmatpush.xpose.msra.mxu0 0.0
      %1396 = vmatpush.xpose.msra.mxu0 0.0
      %1397 = vmatpush.xpose.msra.mxu0 0.0
      %1398 = vmatpush.xpose.msra.mxu0 0.0
      %1399 = vmatpush.xpose.msra.mxu0 0.0
      %1400 = vmatpush.xpose.msra.mxu0 0.0
      %1401 = vmatpush.xpose.msra.mxu0 0.0
      %1402 = vmatpush.xpose.msra.mxu0 0.0
      %1403 = vmatpush.xpose.msra.mxu0 0.0
      %1404 = vmatpush.xpose.msra.mxu0 0.0
      %1405 = vmatpush.xpose.msra.mxu0 0.0
      %1406 = vmatpush.xpose.msra.mxu0 0.0
      %1407 = vmatpush.xpose.msra.mxu0 0.0
      %1408 = vmatpush.xpose.msra.mxu0 0.0
      %1409 = vmatpush.xpose.msra.mxu0 %v1392
      %1410 = vmatmul.f32.gmra.mxu0 %v1390
      %v1411 = vpop.f32.mrf.mxu0
      %v1412 = vadd.f32 0.0, %v1411
      %1413 = vdwg.mxu0
      %v1414 = vmul.f32 %v1412, 0.35355338
      %v1415 = vsel %vm1140, %v1414, -inf
      %1416 = vmax.xlane.f32.xlu0 %v1415
      %v1417 = vpop.xlane.xlu0 %1416
      %v1418 = vsub.f32 %v1414, %v1417
      %v1419 = vmul.f32 %v1418, 1.442695
      %v1420 = vpow.pop %v1419
      %v1421 = vsel %vm1140, %v1420, 0.0
      %1422 = vadd.xlane.f32.xlu0 %v1421
      %v1423 = vpop.xlane.xlu0 %1422
      %v1424 = vrcp.pop %v1423
      %v1425 = vmul.f32 %v1420, %v1424
      %1426 = vrot.lane.b32.xlu0 %v1105, 40
      %v1427 = vpop.permute.xlu0 %1426
      %v1429 = vsel %vm1140, %v1425, 0
      %v1431 = vsel %vm1157, %v1427, 0
      %1433 = vmatpush.msra.mxu0 0.0
      %1434 = vmatpush.msra.mxu0 0.0
      %1435 = vmatpush.msra.mxu0 0.0
      %1436 = vmatpush.msra.mxu0 0.0
      %1437 = vmatpush.msra.mxu0 0.0
      %1438 = vmatpush.msra.mxu0 0.0
      %1439 = vmatpush.msra.mxu0 0.0
      %1440 = vmatpush.msra.mxu0 0.0
      %1441 = vmatpush.msra.mxu0 0.0
      %1442 = vmatpush.msra.mxu0 0.0
      %1443 = vmatpush.msra.mxu0 0.0
      %1444 = vmatpush.msra.mxu0 0.0
      %1445 = vmatpush.msra.mxu0 0.0
      %1446 = vmatpush.msra.mxu0 0.0
      %1447 = vmatpush.msra.mxu0 0.0
      %1448 = vmatpush.msra.mxu0 %v1431
      %1449 = vmatmul.f32.gmra.mxu0 %v1429
      %v1450 = vpop.f32.mrf.mxu0
      %v1451 = vadd.f32 0.0, %v1450
      %1452 = vdwg.mxu0
      %v1454 = vsel %vm650, %v1451, 0
      %1456 = vmatpush.msra.mxu0 0.0
      %1457 = vmatpush.msra.mxu0 0.0
      %1458 = vmatpush.msra.mxu0 0.0
      %1459 = vmatpush.msra.mxu0 0.0
      %1460 = vmatpush.msra.mxu0 0.0
      %1461 = vmatpush.msra.mxu0 0.0
      %1462 = vmatpush.msra.mxu0 0.0
      %1463 = vmatpush.msra.mxu0 0.0
      %1464 = vmatpush.msra.mxu0 0.0
      %1465 = vmatpush.msra.mxu0 0.0
      %1466 = vmatpush.msra.mxu0 0.0
      %1467 = vmatpush.msra.mxu0 0.0
      %1468 = vmatpush.msra.mxu0 0.0
      %1469 = vmatpush.msra.mxu0 0.0
      %1470 = vmatpush.msra.mxu0 0.0
      %1471 = vmatpush.msra.mxu0 %v1056
      %1472 = vmatmul.f32.gmra.mxu0 %v1454
      %v1473 = vpop.f32.mrf.mxu0
      %v1474 = vadd.f32 0.0, %v1473
      %1475 = vdwg.mxu0
      %v1476 = vadd.f32 %v1385, %v1474
      %v1477 = vadd.f32 %v1047, %v1476
      %v1478 = vsel %vm619, %v1477, 0.0
      %1479 = vadd.xlane.f32.xlu0 %v1478
      %v1480 = vpop.xlane.xlu0 %1479
      %v1481 = vmul.f32 %v1480, %v1024
      %v1482 = vsub.f32 %v1477, %v1481
      %v1483 = vmul.f32 %v1482, %v1482
      %v1484 = vsel %vm619, %v1483, 0.0
      %1485 = vadd.xlane.f32.xlu0 %v1484
      %v1486 = vpop.xlane.xlu0 %1485
      %v1487 = vmul.f32 %v1486, %v1024
      %v1488 = vadd.f32 %v1487, 1e-06
      %v1489 = vrsqrt.pop %v1488
      %v1490 = vmul.f32 %v1489, %v1488
      %v1491 = vmul.f32 %v1490, %v1489
      %v1492 = vmul.f32 0.5, %v1491
      %v1493 = vsub.f32 1.5, %v1492
      %v1494 = vmul.f32 %v1489, %v1493
      %vm1495 = vweird.f32 %v1488
      %vm1496 = vweird.f32 %v1489
      %vm1497 = vmor %vm1495, %vm1496
      %v1498 = vsel %vm1497, %v1489, %v1494
      %v1499 = vmul.f32 %v1482, %v1498
      %v1500 = vperm.slane %v605, 2
      %v1501 = vmul.f32 %v1499, %v1500
      %v1502 = vperm.slane %v605, 3
      %v1503 = vadd.f32 %v1501, %v1502
      %v1504 = vld [vmem:[%s12] sm:$0xff]
      %v1505 = vld [vmem:[%s12 + $0x8] sm:$0xff]
      %v1506 = vld [vmem:[%s12 + $0x10] sm:$0xff]
      %v1507 = vld [vmem:[%s12 + $0x18] sm:$0xff]
      %v1508 = vld [vmem:[%s13] sm:$0x1]
      %v1509 = vld [vmem:[%s14] sm:$0xff]
      %v1510 = vld [vmem:[%s14 + $0x8] sm:$0xff]
      %v1511 = vld [vmem:[%s14 + $0x10] sm:$0xff]
      %v1512 = vld [vmem:[%s14 + $0x18] sm:$0xff]
      %v1513 = vld [vmem:[%s14 + $0x20] sm:$0xff]
      %v1514 = vld [vmem:[%s14 + $0x28] sm:$0xff]
      %v1515 = vld [vmem:[%s14 + $0x30] sm:$0xff]
      %v1516 = vld [vmem:[%s14 + $0x38] sm:$0xff]
      %v1517 = vld [vmem:[%s15] sm:$0x1]
      %v1519 = vperm.slane %v1508, 0
      %v1522 = vsel %vm619, %v1503, 0
      %1524 = vmatpush.msra.mxu0 0.0
      %1525 = vmatpush.msra.mxu0 0.0
      %1526 = vmatpush.msra.mxu0 0.0
      %1527 = vmatpush.msra.mxu0 0.0
      %1528 = vmatpush.msra.mxu0 0.0
      %1529 = vmatpush.msra.mxu0 0.0
      %1530 = vmatpush.msra.mxu0 0.0
      %1531 = vmatpush.msra.mxu0 0.0
      %1532 = vmatpush.msra.mxu0 0.0
      %1533 = vmatpush.msra.mxu0 0.0
      %1534 = vmatpush.msra.mxu0 0.0
      %1535 = vmatpush.msra.mxu0 0.0
      %1536 = vmatpush.msra.mxu0 %v1507
      %1537 = vmatpush.msra.mxu0 %v1506
      %1538 = vmatpush.msra.mxu0 %v1505
      %1539 = vmatpush.msra.mxu0 %v1504
      %1540 = vmatmul.f32.gmra.mxu0 %v1522
      %v1541 = vpop.f32.mrf.mxu0
      %v1542 = vadd.f32 %v1519, %v1541
      %1543 = vdwg.mxu0
      %v1544 = vmul.f32 %v1542, %v1542
      %v1545 = vmul.f32 %v1542, %v1544
      %v1546 = vmul.f32 %v1545, 0.044715
      %v1547 = vadd.f32 %v1542, %v1546
      %v1548 = vmul.f32 %v1547, 0.7978846
      %v1549 = vtanh.pop %v1548
      %v1550 = vadd.f32 %v1549, 1.0
      %v1551 = vmul.f32 %v1550, 0.5
      %v1552 = vmul.f32 %v1542, %v1551
      %v1554 = vperm.slane %v1517, 0
      %vm1556 = vcmask 523264
      %v1558 = vsel %vm1556, %v1552, 0
      %1560 = vmatpush.msra.mxu0 0.0
      %1561 = vmatpush.msra.mxu0 0.0
      %1562 = vmatpush.msra.mxu0 0.0
      %1563 = vmatpush.msra.mxu0 0.0
      %1564 = vmatpush.msra.mxu0 0.0
      %1565 = vmatpush.msra.mxu0 0.0
      %1566 = vmatpush.msra.mxu0 0.0
      %1567 = vmatpush.msra.mxu0 0.0
      %1568 = vmatpush.msra.mxu0 %v1516
      %1569 = vmatpush.msra.mxu0 %v1515
      %1570 = vmatpush.msra.mxu0 %v1514
      %1571 = vmatpush.msra.mxu0 %v1513
      %1572 = vmatpush.msra.mxu0 %v1512
      %1573 = vmatpush.msra.mxu0 %v1511
      %1574 = vmatpush.msra.mxu0 %v1510
      %1575 = vmatpush.msra.mxu0 %v1509
      %1576 = vmatmul.f32.gmra.mxu0 %v1558
      %v1577 = vpop.f32.mrf.mxu0
      %v1578 = vadd.f32 %v1554, %v1577
      %1579 = vdwg.mxu0
      %v1580 = vadd.f32 %v1503, %v1578
      %v1581 = vsel %vm619, %v1580, 0.0
      %1582 = vadd.xlane.f32.xlu0 %v1581
      %v1583 = vpop.xlane.xlu0 %1582
      %v1584 = vmul.f32 %v1583, %v1024
      %v1585 = vsub.f32 %v1580, %v1584
      %v1586 = vmul.f32 %v1585, %v1585
      %v1587 = vsel %vm619, %v1586, 0.0
      %1588 = vadd.xlane.f32.xlu0 %v1587
      %v1589 = vpop.xlane.xlu0 %1588
      %v1590 = vmul.f32 %v1589, %v1024
      %v1591 = vadd.f32 %v1590, 1e-06
      %v1592 = vrsqrt.pop %v1591
      %v1593 = vmul.f32 %v1592, %v1591
      %v1594 = vmul.f32 %v1593, %v1592
      %v1595 = vmul.f32 0.5, %v1594
      %v1596 = vsub.f32 1.5, %v1595
      %v1597 = vmul.f32 %v1592, %v1596
      %vm1598 = vweird.f32 %v1591
      %vm1599 = vweird.f32 %v1592
      %vm1600 = vmor %vm1598, %vm1599
      %v1601 = vsel %vm1600, %v1592, %v1597
      %v1602 = vmul.f32 %v1585, %v1601
      %v1603 = vperm.slane %v605, 4
      %v1604 = vmul.f32 %v1602, %v1603
      %v1605 = vperm.slane %v605, 5
      %v1606 = vadd.f32 %v1604, %v1605
      %v1607 = vld [vmem:[%s16] sm:$0xff]
      %v1608 = vld [vmem:[%s16 + $0x8] sm:$0xff]
      %v1609 = vld [vmem:[%s16 + $0x10] sm:$0xff]
      %v1610 = vld [vmem:[%s16 + $0x18] sm:$0xff]
      %v1611 = vld [vmem:[%s17] sm:$0x1]
      %v1613 = vperm.slane %v1611, 0
      %v1616 = vsel %vm619, %v1606, 0
      %1618 = vmatpush.msra.mxu0 0.0
      %1619 = vmatpush.msra.mxu0 0.0
      %1620 = vmatpush.msra.mxu0 0.0
      %1621 = vmatpush.msra.mxu0 0.0
      %1622 = vmatpush.msra.mxu0 0.0
      %1623 = vmatpush.msra.mxu0 0.0
      %1624 = vmatpush.msra.mxu0 0.0
      %1625 = vmatpush.msra.mxu0 0.0
      %1626 = vmatpush.msra.mxu0 0.0
      %1627 = vmatpush.msra.mxu0 0.0
      %1628 = vmatpush.msra.mxu0 0.0
      %1629 = vmatpush.msra.mxu0 0.0
      %1630 = vmatpush.msra.mxu0 %v1610
      %1631 = vmatpush.msra.mxu0 %v1609
      %1632 = vmatpush.msra.mxu0 %v1608
      %1633 = vmatpush.msra.mxu0 %v1607
      %1634 = vmatmul.f32.gmra.mxu0 %v1616
      %v1635 = vpop.f32.mrf.mxu0
      %v1636 = vadd.f32 %v1613, %v1635
      %1637 = vdwg.mxu0
      %vm1638 = vcmask 8192
      %v1639 = vsel %vm1638, %v1636, -inf
      %1640 = vmax.xlane.f32.xlu0 %v1639
      %v1641 = vpop.xlane.xlu0 %1640
      %v1642 = vsub.f32 %v1636, %v1641
      %v1643 = vmul.f32 %v1642, 1.442695
      %v1644 = vpow.pop %v1643
      %v1645 = vsel %vm1638, %v1644, 0.0
      %1646 = vadd.xlane.f32.xlu0 %v1645
      %v1647 = vpop.xlane.xlu0 %1646
      %v1648 = vrcp.pop %v1647
      %v1649 = vmul.f32 %v1647, %v1648
      %v1650 = vsub.f32 1.0, %v1649
      %v1651 = vmul.f32 %v1648, %v1650
      %v1652 = vadd.f32 %v1648, %v1651
      %vm1653 = vweird.f32 %v1647
      %vm1654 = vweird.f32 %v1648
      %vm1655 = vmor %vm1653, %vm1654
      %v1656 = vsel %vm1655, %v1648, %v1652
      %v1657 = vand.u32 2147483647, %v1647
      %vm1658 = vcmp.eq.f32.partialorder %v1657, 8.507059e+37
      %v1659 = vand.u32 %v1647, 2147483648
      %v1660 = vor.u32 1.1754944e-38, %v1659
      %v1661 = vsel %vm1658, %v1660, %v1656
      %v1662 = vmul.f32 %v1644, %v1661
      %1663 = vst.msk [vmem:[%s599] sm:$0x1] %vm1638, %v1662
      %p1664 = scmp.lt.s32.totalorder %s29, 3
      %s1665 = scalar_select %p1664, %s29, 3
      %s1666 = scalar_lea.vmem %s18, %s1665
      // Predicated region
      $region93: #{_forward_impl.5} parent=91 // pred_check
        %p1667 = pneg %p440
      $region94: #{_forward_impl.5} parent=91 // pred_check_branch
        %1669 = sbr.rel (%p1667) target = $region96
      $region95: #{_forward_impl.5} parent=91 // pred_region
        _
      $region96: #{_forward_impl.5} parent=91 // pred_fallthru
        _
    $region92: #{_forward_impl.5} parent=5 // pred_fallthru
      _
    %p1670 = scmp.le.s32.totalorder 2, %s24
    // Predicated region
    $region97: #{_forward_impl.5} parent=5 // pred_check
      %p1671 = pneg %p1670
    $region98: #{_forward_impl.5} parent=5 // pred_check_branch
      %1673 = sbr.rel (%p1671) target = $region100
    $region99: #{_forward_impl.5} parent=5 // pred_region
      %s1674 = ssub.s32 %s24, 2
      // Predicated region
      $region101: #{_forward_impl.5} parent=99 // pred_check
        %p1675 = pneg %p446
      $region102: #{_forward_impl.5} parent=99 // pred_check_branch
        %1677 = sbr.rel (%p1675) target = $region104
      $region103: #{_forward_impl.5} parent=99 // pred_region
        %p1678 = scmp.lt.s32.totalorder %s30, 3
        %s1679 = scalar_select %p1678, %s30, 3
        %s1680 = scalar_lea.vmem %s18, %s1679
      $region104: #{_forward_impl.5} parent=99 // pred_fallthru
        _
    $region100: #{_forward_impl.5} parent=5 // pred_fallthru
      _
  $region6: #{_forward_impl.5} parent=0 // loop_footer
    %s28 = sadd.s32 1, %s24
  $region7: #{_forward_impl.5} parent=0 // loop_footer_branch
    %23 = sbr.rel target = $region3
  $region8: #{_forward_impl.5} parent=0 // loop_exit
    _

</llo_original>
